<compile_context>
chip_gen: v5e
topology: v5e:2x2
jax: 0.10.0
libtpu: 0.0.40
codegen_flags: <defaults>
</compile_context>

<pallas_src>
import functools
import math

import jax
import jax.numpy as jnp
from jax.experimental import pallas as pl
from jax.experimental.pallas import tpu as pltpu

# ----------------------------- config (small) -------------------------------
VOCAB = 128
MAX_POS = 16
HIDDEN = 32
N_HEADS = 4
HEAD_DIM = HIDDEN // N_HEADS
INTERMEDIATE = 64
N_LAYERS = 2
LN_EPS = 1e-12


# --------------------------- in-kernel helpers -------------------------------
def _layernorm(x, g, b):
    mu = jnp.mean(x, axis=-1, keepdims=True)
    xc = x - mu
    var = jnp.mean(xc * xc, axis=-1, keepdims=True)
    return xc * jax.lax.rsqrt(var + LN_EPS) * g + b


def _gelu_tanh(x):
    # TODO(synk): HF BERT default hidden_act is exact erf-GELU; erf has no
    # guaranteed Mosaic lowering, so the tanh approximation ("gelu_new") is used.
    c = math.sqrt(2.0 / math.pi)
    return 0.5 * x * (1.0 + jnp.tanh(c * (x + 0.044715 * x * x * x)))


# ----------------------------- fused kernel ----------------------------------
def _fused_encoder_kernel(
    emb_ref, bias_ref,                      # activations: (B*S, H), (B, S)
    eg_ref, eb_ref,                         # embedding LN gamma/beta: (1, H)
    wq_ref, bq_ref,                         # per-head: (L*nH, H, Dh), (L*nH, 1, Dh)
    wk_ref, bk_ref,
    wv_ref, bv_ref,
    wo_ref, bo_ref,                         # (L*nH, Dh, H), (L, 1, H)
    ln1g_ref, ln1b_ref,                     # (L, 1, H)
    wff1_ref, bff1_ref, wff2_ref, bff2_ref, # (L,H,I) (L,1,I) (L,I,H) (L,1,H)
    ln2g_ref, ln2b_ref,                     # (L, 1, H)
    pw_ref, pb_ref,                         # pooler: (H, H), (1, H)
    out_ref,                                # (B, H)
    *, batch, seq,
):
    B, S, H, nH, Dh = batch, seq, HIDDEN, N_HEADS, HEAD_DIM
    scale = 1.0 / math.sqrt(Dh)

    # embedding LayerNorm
    x = _layernorm(emb_ref[...].astype(jnp.float32), eg_ref[...], eb_ref[...])

    # additive key-axis mask bias, broadcast once (hoisted out of all loops)
    bias = jnp.broadcast_to(bias_ref[...][:, None, :], (B, S, S))

    for l in range(N_LAYERS):               # static, L=2: fine unrolled
        # ---- self-attention (per-head weight slabs, no lane slicing / concat) ----
        attn_out = jnp.zeros((B * S, H), jnp.float32)
        for h in range(nH):                 # static unroll over heads
            idx = l * nH + h                # leading-axis (sublane-cheap) index
            qh = (jnp.dot(x, wq_ref[idx], preferred_element_type=jnp.float32)
                  + bq_ref[idx]).reshape(B, S, Dh)
            kh = (jnp.dot(x, wk_ref[idx], preferred_element_type=jnp.float32)
                  + bk_ref[idx]).reshape(B, S, Dh)
            vh = (jnp.dot(x, wv_ref[idx], preferred_element_type=jnp.float32)
                  + bv_ref[idx]).reshape(B, S, Dh)

            s = jnp.einsum("bqd,bkd->bqk", qh, kh,
                           preferred_element_type=jnp.float32) * scale + bias
            s = s - jnp.max(s, axis=-1, keepdims=True)
            p = jnp.exp(s)
            p = p / jnp.sum(p, axis=-1, keepdims=True)   # exact softmax denom

            ctx = jnp.einsum("bqk,bkd->bqd", p, vh,
                             preferred_element_type=jnp.float32).reshape(B * S, Dh)
            # accumulate per-head output projection (replaces lane-axis concat)
            attn_out = attn_out + jnp.dot(ctx, wo_ref[idx],
                                          preferred_element_type=jnp.float32)
        attn_out = attn_out + bo_ref[l]
        x = _layernorm(attn_out + x, ln1g_ref[l], ln1b_ref[l])

        # ---- feed-forward ----
        ff = jnp.dot(x, wff1_ref[l], preferred_element_type=jnp.float32) + bff1_ref[l]
        ff = _gelu_tanh(ff)
        ff = jnp.dot(ff, wff2_ref[l], preferred_element_type=jnp.float32) + bff2_ref[l]
        x = _layernorm(ff + x, ln2g_ref[l], ln2b_ref[l])

    # ---- pooler: dense(tanh) on the [CLS] token of each sequence ----
    cls = x.reshape(B, S, H)[:, 0, :]                               # (B, H)
    pooled = jnp.tanh(
        jnp.dot(cls, pw_ref[...], preferred_element_type=jnp.float32) + pb_ref[...]
    )
    # nn.Dropout(0.1): identity in eval mode
    out_ref[...] = pooled.astype(out_ref.dtype)


# ----------------------------- parameter init --------------------------------
def init_params(key):
    def normal(k, shape):
        return 0.02 * jax.random.normal(k, shape, dtype=jnp.float32)

    H, nH, Dh, I, L = HIDDEN, N_HEADS, HEAD_DIM, INTERMEDIATE, N_LAYERS
    keys = iter(jax.random.split(key, 4 + 6 * L))

    p = {
        "word_emb": normal(next(keys), (VOCAB, H)),
        "pos_emb": normal(next(keys), (MAX_POS, H)),
        "type_emb": normal(next(keys), (2, H)),
        "emb_ln_g": jnp.ones((1, H), jnp.float32),
        "emb_ln_b": jnp.zeros((1, H), jnp.float32),
        "pooler_w": normal(next(keys), (H, H)),
        "pooler_b": jnp.zeros((1, H), jnp.float32),
    }

    wq, wk, wv, wo = [], [], [], []
    ln1g, ln1b, wff1, bff1, wff2, bff2, ln2g, ln2b = ([] for _ in range(8))
    for _ in range(L):
        # standard (H,H) dense weights, split per head at init time so the
        # kernel only ever indexes the leading axis (no in-kernel lane slices)
        wq_full = normal(next(keys), (H, H))
        wk_full = normal(next(keys), (H, H))
        wv_full = normal(next(keys), (H, H))
        wo_full = normal(next(keys), (H, H))
        wq.append(wq_full.reshape(H, nH, Dh).transpose(1, 0, 2))   # (nH, H, Dh)
        wk.append(wk_full.reshape(H, nH, Dh).transpose(1, 0, 2))
        wv.append(wv_full.reshape(H, nH, Dh).transpose(1, 0, 2))
        wo.append(wo_full.reshape(nH, Dh, H))                      # rows h*Dh:(h+1)*Dh

        ln1g.append(jnp.ones((1, H), jnp.float32))
        ln1b.append(jnp.zeros((1, H), jnp.float32))
        wff1.append(normal(next(keys), (H, I)))
        bff1.append(jnp.zeros((1, I), jnp.float32))
        wff2.append(normal(next(keys), (I, H)))
        bff2.append(jnp.zeros((1, H), jnp.float32))
        ln2g.append(jnp.ones((1, H), jnp.float32))
        ln2b.append(jnp.zeros((1, H), jnp.float32))

    p["layers"] = {
        "wq": jnp.stack(wq).reshape(L * nH, H, Dh),
        "bq": jnp.zeros((L * nH, 1, Dh), jnp.float32),
        "wk": jnp.stack(wk).reshape(L * nH, H, Dh),
        "bk": jnp.zeros((L * nH, 1, Dh), jnp.float32),
        "wv": jnp.stack(wv).reshape(L * nH, H, Dh),
        "bv": jnp.zeros((L * nH, 1, Dh), jnp.float32),
        "wo": jnp.stack(wo).reshape(L * nH, Dh, H),
        "bo": jnp.zeros((L, 1, H), jnp.float32),
        "ln1_g": jnp.stack(ln1g), "ln1_b": jnp.stack(ln1b),
        "w_ff1": jnp.stack(wff1), "b_ff1": jnp.stack(bff1),
        "w_ff2": jnp.stack(wff2), "b_ff2": jnp.stack(bff2),
        "ln2_g": jnp.stack(ln2g), "ln2_b": jnp.stack(ln2b),
    }
    return p


# ----------------------------- forward ----------------------------------------
def text_encoder_forward(params, input_ids, attention_mask):
    B, S = input_ids.shape
    H, nH, Dh, I, L = HIDDEN, N_HEADS, HEAD_DIM, INTERMEDIATE, N_LAYERS

    # embeddings: word + position + token_type(=0)  (gather is glue, plain JAX)
    word = params["word_emb"][input_ids]                       # (B, S, H)
    pos = params["pos_emb"][jnp.arange(S)][None, :, :]         # (1, S, H)
    typ = params["type_emb"][0][None, None, :]                 # token_type_ids == 0
    emb = (word + pos + typ).reshape(B * S, H).astype(jnp.float32)

    # additive mask bias, computed once per forward
    mask_bias = (1.0 - attention_mask.astype(jnp.float32)) * (-1e9)   # (B, S)

    lyr = params["layers"]
    inputs = (
        emb, mask_bias,
        params["emb_ln_g"], params["emb_ln_b"],
        lyr["wq"], lyr["bq"], lyr["wk"], lyr["bk"], lyr["wv"], lyr["bv"],
        lyr["wo"], lyr["bo"],
        lyr["ln1_g"], lyr["ln1_b"],
        lyr["w_ff1"], lyr["b_ff1"], lyr["w_ff2"], lyr["b_ff2"],
        lyr["ln2_g"], lyr["ln2_b"],
        params["pooler_w"], params["pooler_b"],
    )

    # no grid, no pipelining: every operand is a full block resident in VMEM
    vmem_spec = pl.BlockSpec(memory_space=pltpu.MemorySpace.VMEM)

    # advisory cost hint for the XLA scheduler
    per_layer_flops = 2 * (
        3 * nH * (B * S) * H * Dh          # per-head Q/K/V projections
        + 2 * nH * B * S * S * Dh          # scores + context
        + nH * (B * S) * Dh * H            # output projection
        + 2 * (B * S) * H * I              # FFN
    )
    flops = L * per_layer_flops + 2 * B * H * H                  # + pooler
    transcendentals = L * (nH * B * S * S + B * S * I) + B * H   # exp / tanh
    bytes_accessed = sum(int(a.size) * a.dtype.itemsize for a in inputs) + B * H * 4

    kernel = functools.partial(_fused_encoder_kernel, batch=B, seq=S)
    return pl.pallas_call(
        kernel,
        out_shape=jax.ShapeDtypeStruct((B, H), jnp.float32),
        in_specs=[vmem_spec] * len(inputs),
        out_specs=vmem_spec,
        cost_estimate=pl.CostEstimate(
            flops=flops,
            transcendentals=transcendentals,
            bytes_accessed=bytes_accessed,
        ),
    )(*inputs)


# ----------------------------- main --------------------------------------------
if __name__ == "__main__":
    B, S = 2, 8
    key = jax.random.PRNGKey(0)
    k_par, k_ids = jax.random.split(key)

    params = init_params(k_par)
    input_ids = jax.random.randint(k_ids, (B, S), 0, VOCAB, dtype=jnp.int32)
    # deterministic attention mask: first sequence full, second padded after 5 tokens
    attention_mask = jnp.array(
        [[1] * S, [1] * 5 + [0] * (S - 5)], dtype=jnp.int32
    )

    fwd = jax.jit(text_encoder_forward)
    out = jax.block_until_ready(fwd(params, input_ids, attention_mask))
    assert out.shape == (B, HIDDEN)
    assert bool(jnp.all(jnp.isfinite(out)))
    print("KERNEL_OK")
</pallas_src>

<mosaic_0001>
module attributes {stable_mosaic.version = 11 : i64} {
  func.func @_fused_encoder_kernel(%arg0: memref<16x32xf32, #tpu.memory_space<vmem>>, %arg1: memref<2x8xf32, #tpu.memory_space<vmem>>, %arg2: memref<1x32xf32, #tpu.memory_space<vmem>>, %arg3: memref<1x32xf32, #tpu.memory_space<vmem>>, %arg4: memref<8x32x8xf32, #tpu.memory_space<vmem>>, %arg5: memref<8x1x8xf32, #tpu.memory_space<vmem>>, %arg6: memref<8x32x8xf32, #tpu.memory_space<vmem>>, %arg7: memref<8x1x8xf32, #tpu.memory_space<vmem>>, %arg8: memref<8x32x8xf32, #tpu.memory_space<vmem>>, %arg9: memref<8x1x8xf32, #tpu.memory_space<vmem>>, %arg10: memref<8x8x32xf32, #tpu.memory_space<vmem>>, %arg11: memref<2x1x32xf32, #tpu.memory_space<vmem>>, %arg12: memref<2x1x32xf32, #tpu.memory_space<vmem>>, %arg13: memref<2x1x32xf32, #tpu.memory_space<vmem>>, %arg14: memref<2x32x64xf32, #tpu.memory_space<vmem>>, %arg15: memref<2x1x64xf32, #tpu.memory_space<vmem>>, %arg16: memref<2x64x32xf32, #tpu.memory_space<vmem>>, %arg17: memref<2x1x32xf32, #tpu.memory_space<vmem>>, %arg18: memref<2x1x32xf32, #tpu.memory_space<vmem>>, %arg19: memref<2x1x32xf32, #tpu.memory_space<vmem>>, %arg20: memref<32x32xf32, #tpu.memory_space<vmem>>, %arg21: memref<1x32xf32, #tpu.memory_space<vmem>>, %arg22: memref<2x32xf32, #tpu.memory_space<vmem>>) attributes {dimension_semantics = [], scalar_prefetch = 0 : i64, scratch_operands = 0 : i64, tpu.core_type = #tpu.core_type<tc>} {
    %c0 = arith.constant 0 : index
    %c0_0 = arith.constant 0 : index
    %0 = vector.load %arg0[%c0, %c0_0] : memref<16x32xf32, #tpu.memory_space<vmem>>, vector<16x32xf32>
    %c0_1 = arith.constant 0 : index
    %c0_2 = arith.constant 0 : index
    %1 = vector.load %arg2[%c0_1, %c0_2] : memref<1x32xf32, #tpu.memory_space<vmem>>, vector<1x32xf32>
    %c0_3 = arith.constant 0 : index
    %c0_4 = arith.constant 0 : index
    %2 = vector.load %arg3[%c0_3, %c0_4] : memref<1x32xf32, #tpu.memory_space<vmem>>, vector<1x32xf32>
    %cst = arith.constant dense<0.000000e+00> : vector<16xf32>
    %3 = vector.multi_reduction <add>, %0, %cst [1] : vector<16x32xf32> to vector<16xf32>
    %4 = vector.shape_cast %3 : vector<16xf32> to vector<16x1xf32>
    %cst_5 = arith.constant 3.200000e+01 : f32
    %5 = vector.broadcast %cst_5 : f32 to vector<16x1xf32>
    %6 = arith.divf %4, %5 : vector<16x1xf32>
    %7 = vector.broadcast %6 : vector<16x1xf32> to vector<16x32xf32>
    %8 = arith.subf %0, %7 : vector<16x32xf32>
    %9 = arith.mulf %8, %8 : vector<16x32xf32>
    %cst_6 = arith.constant dense<0.000000e+00> : vector<16xf32>
    %10 = vector.multi_reduction <add>, %9, %cst_6 [1] : vector<16x32xf32> to vector<16xf32>
    %11 = vector.shape_cast %10 : vector<16xf32> to vector<16x1xf32>
    %cst_7 = arith.constant 3.200000e+01 : f32
    %12 = vector.broadcast %cst_7 : f32 to vector<16x1xf32>
    %13 = arith.divf %11, %12 : vector<16x1xf32>
    %cst_8 = arith.constant 9.99999996E-13 : f32
    %14 = vector.broadcast %cst_8 : f32 to vector<16x1xf32>
    %15 = arith.addf %13, %14 : vector<16x1xf32>
    %16 = math.rsqrt %15 : vector<16x1xf32>
    %17 = vector.broadcast %16 : vector<16x1xf32> to vector<16x32xf32>
    %18 = arith.mulf %8, %17 : vector<16x32xf32>
    %19 = vector.broadcast %1 : vector<1x32xf32> to vector<16x32xf32>
    %20 = arith.mulf %18, %19 : vector<16x32xf32>
    %21 = vector.broadcast %2 : vector<1x32xf32> to vector<16x32xf32>
    %22 = arith.addf %20, %21 : vector<16x32xf32>
    %c0_9 = arith.constant 0 : index
    %c0_10 = arith.constant 0 : index
    %23 = vector.load %arg1[%c0_9, %c0_10] : memref<2x8xf32, #tpu.memory_space<vmem>>, vector<2x8xf32>
    %24 = vector.shape_cast %23 : vector<2x8xf32> to vector<2x1x8xf32>
    %25 = vector.shape_cast %24 : vector<2x1x8xf32> to vector<2x1x8xf32>
    %26 = vector.broadcast %25 : vector<2x1x8xf32> to vector<2x8x8xf32>
    %cst_11 = arith.constant 0.000000e+00 : f32
    %27 = vector.broadcast %cst_11 : f32 to vector<16x32xf32>
    %c0_12 = arith.constant 0 : index
    %c0_13 = arith.constant 0 : index
    %c0_14 = arith.constant 0 : index
    %28 = vector.load %arg4[%c0_12, %c0_13, %c0_14] : memref<8x32x8xf32, #tpu.memory_space<vmem>>, vector<1x32x8xf32>
    %29 = vector.shape_cast %28 : vector<1x32x8xf32> to vector<32x8xf32>
    %cst_15 = arith.constant dense<0.000000e+00> : vector<16x8xf32>
    %30 = tpu.matmul %22, %29, %cst_15 {dimension_numbers = #tpu.dot_dimension_numbers<[1], [0], [0], [1], [0, 0, 1, 1], [], []>} : vector<16x32xf32>, vector<32x8xf32>, vector<16x8xf32> -> vector<16x8xf32>
    %c0_16 = arith.constant 0 : index
    %c0_17 = arith.constant 0 : index
    %c0_18 = arith.constant 0 : index
    %31 = vector.load %arg5[%c0_16, %c0_17, %c0_18] : memref<8x1x8xf32, #tpu.memory_space<vmem>>, vector<1x1x8xf32>
    %32 = vector.shape_cast %31 : vector<1x1x8xf32> to vector<1x8xf32>
    %33 = vector.broadcast %32 : vector<1x8xf32> to vector<16x8xf32>
    %34 = arith.addf %30, %33 : vector<16x8xf32>
    %35 = vector.shape_cast %34 : vector<16x8xf32> to vector<2x8x8xf32>
    %c0_19 = arith.constant 0 : index
    %c0_20 = arith.constant 0 : index
    %c0_21 = arith.constant 0 : index
    %36 = vector.load %arg6[%c0_19, %c0_20, %c0_21] : memref<8x32x8xf32, #tpu.memory_space<vmem>>, vector<1x32x8xf32>
    %37 = vector.shape_cast %36 : vector<1x32x8xf32> to vector<32x8xf32>
    %cst_22 = arith.constant dense<0.000000e+00> : vector<16x8xf32>
    %38 = tpu.matmul %22, %37, %cst_22 {dimension_numbers = #tpu.dot_dimension_numbers<[1], [0], [0], [1], [0, 0, 1, 1], [], []>} : vector<16x32xf32>, vector<32x8xf32>, vector<16x8xf32> -> vector<16x8xf32>
    %c0_23 = arith.constant 0 : index
    %c0_24 = arith.constant 0 : index
    %c0_25 = arith.constant 0 : index
    %39 = vector.load %arg7[%c0_23, %c0_24, %c0_25] : memref<8x1x8xf32, #tpu.memory_space<vmem>>, vector<1x1x8xf32>
    %40 = vector.shape_cast %39 : vector<1x1x8xf32> to vector<1x8xf32>
    %41 = vector.broadcast %40 : vector<1x8xf32> to vector<16x8xf32>
    %42 = arith.addf %38, %41 : vector<16x8xf32>
    %43 = vector.shape_cast %42 : vector<16x8xf32> to vector<2x8x8xf32>
    %c0_26 = arith.constant 0 : index
    %c0_27 = arith.constant 0 : index
    %c0_28 = arith.constant 0 : index
    %44 = vector.load %arg8[%c0_26, %c0_27, %c0_28] : memref<8x32x8xf32, #tpu.memory_space<vmem>>, vector<1x32x8xf32>
    %45 = vector.shape_cast %44 : vector<1x32x8xf32> to vector<32x8xf32>
    %cst_29 = arith.constant dense<0.000000e+00> : vector<16x8xf32>
    %46 = tpu.matmul %22, %45, %cst_29 {dimension_numbers = #tpu.dot_dimension_numbers<[1], [0], [0], [1], [0, 0, 1, 1], [], []>} : vector<16x32xf32>, vector<32x8xf32>, vector<16x8xf32> -> vector<16x8xf32>
    %c0_30 = arith.constant 0 : index
    %c0_31 = arith.constant 0 : index
    %c0_32 = arith.constant 0 : index
    %47 = vector.load %arg9[%c0_30, %c0_31, %c0_32] : memref<8x1x8xf32, #tpu.memory_space<vmem>>, vector<1x1x8xf32>
    %48 = vector.shape_cast %47 : vector<1x1x8xf32> to vector<1x8xf32>
    %49 = vector.broadcast %48 : vector<1x8xf32> to vector<16x8xf32>
    %50 = arith.addf %46, %49 : vector<16x8xf32>
    %51 = vector.shape_cast %50 : vector<16x8xf32> to vector<2x8x8xf32>
    "tpu.trace_start"() <{level = 10 : i32, message = "bqd,bkd->bqk"}> : () -> ()
    %cst_33 = arith.constant dense<0.000000e+00> : vector<2x8x8xf32>
    %52 = tpu.matmul %35, %43, %cst_33 {dimension_numbers = #tpu.dot_dimension_numbers<[2], [2], [1], [1], [0, 0, 0, 1, 1, 1], [0], [0]>} : vector<2x8x8xf32>, vector<2x8x8xf32>, vector<2x8x8xf32> -> vector<2x8x8xf32>
    "tpu.trace_stop"() : () -> ()
    %cst_34 = arith.constant 0.353553385 : f32
    %53 = vector.broadcast %cst_34 : f32 to vector<2x8x8xf32>
    %54 = arith.mulf %52, %53 : vector<2x8x8xf32>
    %55 = arith.addf %54, %26 : vector<2x8x8xf32>
    %cst_35 = arith.constant dense<0xFF800000> : vector<2x8xf32>
    %56 = vector.multi_reduction <maximumf>, %55, %cst_35 [2] : vector<2x8x8xf32> to vector<2x8xf32>
    %57 = vector.shape_cast %56 : vector<2x8xf32> to vector<2x8x1xf32>
    %58 = vector.broadcast %57 : vector<2x8x1xf32> to vector<2x8x8xf32>
    %59 = arith.subf %55, %58 : vector<2x8x8xf32>
    %60 = math.exp %59 : vector<2x8x8xf32>
    %cst_36 = arith.constant dense<0.000000e+00> : vector<2x8xf32>
    %61 = vector.multi_reduction <add>, %60, %cst_36 [2] : vector<2x8x8xf32> to vector<2x8xf32>
    %62 = vector.shape_cast %61 : vector<2x8xf32> to vector<2x8x1xf32>
    %63 = vector.broadcast %62 : vector<2x8x1xf32> to vector<2x8x8xf32>
    %64 = arith.divf %60, %63 : vector<2x8x8xf32>
    "tpu.trace_start"() <{level = 10 : i32, message = "bqk,bkd->bqd"}> : () -> ()
    %cst_37 = arith.constant dense<0.000000e+00> : vector<2x8x8xf32>
    %65 = tpu.matmul %64, %51, %cst_37 {dimension_numbers = #tpu.dot_dimension_numbers<[2], [1], [1], [2], [0, 0, 0, 1, 1, 2], [0], [0]>} : vector<2x8x8xf32>, vector<2x8x8xf32>, vector<2x8x8xf32> -> vector<2x8x8xf32>
    "tpu.trace_stop"() : () -> ()
    %66 = vector.shape_cast %65 : vector<2x8x8xf32> to vector<16x8xf32>
    %c0_38 = arith.constant 0 : index
    %c0_39 = arith.constant 0 : index
    %c0_40 = arith.constant 0 : index
    %67 = vector.load %arg10[%c0_38, %c0_39, %c0_40] : memref<8x8x32xf32, #tpu.memory_space<vmem>>, vector<1x8x32xf32>
    %68 = vector.shape_cast %67 : vector<1x8x32xf32> to vector<8x32xf32>
    %cst_41 = arith.constant dense<0.000000e+00> : vector<16x32xf32>
    %69 = tpu.matmul %66, %68, %cst_41 {dimension_numbers = #tpu.dot_dimension_numbers<[1], [0], [0], [1], [0, 0, 1, 1], [], []>} : vector<16x8xf32>, vector<8x32xf32>, vector<16x32xf32> -> vector<16x32xf32>
    %70 = arith.addf %27, %69 : vector<16x32xf32>
    %c1 = arith.constant 1 : index
    %c0_42 = arith.constant 0 : index
    %c0_43 = arith.constant 0 : index
    %71 = vector.load %arg4[%c1, %c0_42, %c0_43] : memref<8x32x8xf32, #tpu.memory_space<vmem>>, vector<1x32x8xf32>
    %72 = vector.shape_cast %71 : vector<1x32x8xf32> to vector<32x8xf32>
    %cst_44 = arith.constant dense<0.000000e+00> : vector<16x8xf32>
    %73 = tpu.matmul %22, %72, %cst_44 {dimension_numbers = #tpu.dot_dimension_numbers<[1], [0], [0], [1], [0, 0, 1, 1], [], []>} : vector<16x32xf32>, vector<32x8xf32>, vector<16x8xf32> -> vector<16x8xf32>
    %c1_45 = arith.constant 1 : index
    %c0_46 = arith.constant 0 : index
    %c0_47 = arith.constant 0 : index
    %74 = vector.load %arg5[%c1_45, %c0_46, %c0_47] : memref<8x1x8xf32, #tpu.memory_space<vmem>>, vector<1x1x8xf32>
    %75 = vector.shape_cast %74 : vector<1x1x8xf32> to vector<1x8xf32>
    %76 = vector.broadcast %75 : vector<1x8xf32> to vector<16x8xf32>
    %77 = arith.addf %73, %76 : vector<16x8xf32>
    %78 = vector.shape_cast %77 : vector<16x8xf32> to vector<2x8x8xf32>
    %c1_48 = arith.constant 1 : index
    %c0_49 = arith.constant 0 : index
    %c0_50 = arith.constant 0 : index
    %79 = vector.load %arg6[%c1_48, %c0_49, %c0_50] : memref<8x32x8xf32, #tpu.memory_space<vmem>>, vector<1x32x8xf32>
    %80 = vector.shape_cast %79 : vector<1x32x8xf32> to vector<32x8xf32>
    %cst_51 = arith.constant dense<0.000000e+00> : vector<16x8xf32>
    %81 = tpu.matmul %22, %80, %cst_51 {dimension_numbers = #tpu.dot_dimension_numbers<[1], [0], [0], [1], [0, 0, 1, 1], [], []>} : vector<16x32xf32>, vector<32x8xf32>, vector<16x8xf32> -> vector<16x8xf32>
    %c1_52 = arith.constant 1 : index
    %c0_53 = arith.constant 0 : index
    %c0_54 = arith.constant 0 : index
    %82 = vector.load %arg7[%c1_52, %c0_53, %c0_54] : memref<8x1x8xf32, #tpu.memory_space<vmem>>, vector<1x1x8xf32>
    %83 = vector.shape_cast %82 : vector<1x1x8xf32> to vector<1x8xf32>
    %84 = vector.broadcast %83 : vector<1x8xf32> to vector<16x8xf32>
    %85 = arith.addf %81, %84 : vector<16x8xf32>
    %86 = vector.shape_cast %85 : vector<16x8xf32> to vector<2x8x8xf32>
    %c1_55 = arith.constant 1 : index
    %c0_56 = arith.constant 0 : index
    %c0_57 = arith.constant 0 : index
    %87 = vector.load %arg8[%c1_55, %c0_56, %c0_57] : memref<8x32x8xf32, #tpu.memory_space<vmem>>, vector<1x32x8xf32>
    %88 = vector.shape_cast %87 : vector<1x32x8xf32> to vector<32x8xf32>
    %cst_58 = arith.constant dense<0.000000e+00> : vector<16x8xf32>
    %89 = tpu.matmul %22, %88, %cst_58 {dimension_numbers = #tpu.dot_dimension_numbers<[1], [0], [0], [1], [0, 0, 1, 1], [], []>} : vector<16x32xf32>, vector<32x8xf32>, vector<16x8xf32> -> vector<16x8xf32>
    %c1_59 = arith.constant 1 : index
    %c0_60 = arith.constant 0 : index
    %c0_61 = arith.constant 0 : index
    %90 = vector.load %arg9[%c1_59, %c0_60, %c0_61] : memref<8x1x8xf32, #tpu.memory_space<vmem>>, vector<1x1x8xf32>
    %91 = vector.shape_cast %90 : vector<1x1x8xf32> to vector<1x8xf32>
    %92 = vector.broadcast %91 : vector<1x8xf32> to vector<16x8xf32>
    %93 = arith.addf %89, %92 : vector<16x8xf32>
    %94 = vector.shape_cast %93 : vector<16x8xf32> to vector<2x8x8xf32>
    "tpu.trace_start"() <{level = 10 : i32, message = "bqd,bkd->bqk"}> : () -> ()
    %cst_62 = arith.constant dense<0.000000e+00> : vector<2x8x8xf32>
    %95 = tpu.matmul %78, %86, %cst_62 {dimension_numbers = #tpu.dot_dimension_numbers<[2], [2], [1], [1], [0, 0, 0, 1, 1, 1], [0], [0]>} : vector<2x8x8xf32>, vector<2x8x8xf32>, vector<2x8x8xf32> -> vector<2x8x8xf32>
    "tpu.trace_stop"() : () -> ()
    %cst_63 = arith.constant 0.353553385 : f32
    %96 = vector.broadcast %cst_63 : f32 to vector<2x8x8xf32>
    %97 = arith.mulf %95, %96 : vector<2x8x8xf32>
    %98 = arith.addf %97, %26 : vector<2x8x8xf32>
    %cst_64 = arith.constant dense<0xFF800000> : vector<2x8xf32>
    %99 = vector.multi_reduction <maximumf>, %98, %cst_64 [2] : vector<2x8x8xf32> to vector<2x8xf32>
    %100 = vector.shape_cast %99 : vector<2x8xf32> to vector<2x8x1xf32>
    %101 = vector.broadcast %100 : vector<2x8x1xf32> to vector<2x8x8xf32>
    %102 = arith.subf %98, %101 : vector<2x8x8xf32>
    %103 = math.exp %102 : vector<2x8x8xf32>
    %cst_65 = arith.constant dense<0.000000e+00> : vector<2x8xf32>
    %104 = vector.multi_reduction <add>, %103, %cst_65 [2] : vector<2x8x8xf32> to vector<2x8xf32>
    %105 = vector.shape_cast %104 : vector<2x8xf32> to vector<2x8x1xf32>
    %106 = vector.broadcast %105 : vector<2x8x1xf32> to vector<2x8x8xf32>
    %107 = arith.divf %103, %106 : vector<2x8x8xf32>
    "tpu.trace_start"() <{level = 10 : i32, message = "bqk,bkd->bqd"}> : () -> ()
    %cst_66 = arith.constant dense<0.000000e+00> : vector<2x8x8xf32>
    %108 = tpu.matmul %107, %94, %cst_66 {dimension_numbers = #tpu.dot_dimension_numbers<[2], [1], [1], [2], [0, 0, 0, 1, 1, 2], [0], [0]>} : vector<2x8x8xf32>, vector<2x8x8xf32>, vector<2x8x8xf32> -> vector<2x8x8xf32>
    "tpu.trace_stop"() : () -> ()
    %109 = vector.shape_cast %108 : vector<2x8x8xf32> to vector<16x8xf32>
    %c1_67 = arith.constant 1 : index
    %c0_68 = arith.constant 0 : index
    %c0_69 = arith.constant 0 : index
    %110 = vector.load %arg10[%c1_67, %c0_68, %c0_69] : memref<8x8x32xf32, #tpu.memory_space<vmem>>, vector<1x8x32xf32>
    %111 = vector.shape_cast %110 : vector<1x8x32xf32> to vector<8x32xf32>
    %cst_70 = arith.constant dense<0.000000e+00> : vector<16x32xf32>
    %112 = tpu.matmul %109, %111, %cst_70 {dimension_numbers = #tpu.dot_dimension_numbers<[1], [0], [0], [1], [0, 0, 1, 1], [], []>} : vector<16x8xf32>, vector<8x32xf32>, vector<16x32xf32> -> vector<16x32xf32>
    %113 = arith.addf %70, %112 : vector<16x32xf32>
    %c2 = arith.constant 2 : index
    %c0_71 = arith.constant 0 : index
    %c0_72 = arith.constant 0 : index
    %114 = vector.load %arg4[%c2, %c0_71, %c0_72] : memref<8x32x8xf32, #tpu.memory_space<vmem>>, vector<1x32x8xf32>
    %115 = vector.shape_cast %114 : vector<1x32x8xf32> to vector<32x8xf32>
    %cst_73 = arith.constant dense<0.000000e+00> : vector<16x8xf32>
    %116 = tpu.matmul %22, %115, %cst_73 {dimension_numbers = #tpu.dot_dimension_numbers<[1], [0], [0], [1], [0, 0, 1, 1], [], []>} : vector<16x32xf32>, vector<32x8xf32>, vector<16x8xf32> -> vector<16x8xf32>
    %c2_74 = arith.constant 2 : index
    %c0_75 = arith.constant 0 : index
    %c0_76 = arith.constant 0 : index
    %117 = vector.load %arg5[%c2_74, %c0_75, %c0_76] : memref<8x1x8xf32, #tpu.memory_space<vmem>>, vector<1x1x8xf32>
    %118 = vector.shape_cast %117 : vector<1x1x8xf32> to vector<1x8xf32>
    %119 = vector.broadcast %118 : vector<1x8xf32> to vector<16x8xf32>
    %120 = arith.addf %116, %119 : vector<16x8xf32>
    %121 = vector.shape_cast %120 : vector<16x8xf32> to vector<2x8x8xf32>
    %c2_77 = arith.constant 2 : index
    %c0_78 = arith.constant 0 : index
    %c0_79 = arith.constant 0 : index
    %122 = vector.load %arg6[%c2_77, %c0_78, %c0_79] : memref<8x32x8xf32, #tpu.memory_space<vmem>>, vector<1x32x8xf32>
    %123 = vector.shape_cast %122 : vector<1x32x8xf32> to vector<32x8xf32>
    %cst_80 = arith.constant dense<0.000000e+00> : vector<16x8xf32>
    %124 = tpu.matmul %22, %123, %cst_80 {dimension_numbers = #tpu.dot_dimension_numbers<[1], [0], [0], [1], [0, 0, 1, 1], [], []>} : vector<16x32xf32>, vector<32x8xf32>, vector<16x8xf32> -> vector<16x8xf32>
    %c2_81 = arith.constant 2 : index
    %c0_82 = arith.constant 0 : index
    %c0_83 = arith.constant 0 : index
    %125 = vector.load %arg7[%c2_81, %c0_82, %c0_83] : memref<8x1x8xf32, #tpu.memory_space<vmem>>, vector<1x1x8xf32>
    %126 = vector.shape_cast %125 : vector<1x1x8xf32> to vector<1x8xf32>
    %127 = vector.broadcast %126 : vector<1x8xf32> to vector<16x8xf32>
    %128 = arith.addf %124, %127 : vector<16x8xf32>
    %129 = vector.shape_cast %128 : vector<16x8xf32> to vector<2x8x8xf32>
    %c2_84 = arith.constant 2 : index
    %c0_85 = arith.constant 0 : index
    %c0_86 = arith.constant 0 : index
    %130 = vector.load %arg8[%c2_84, %c0_85, %c0_86] : memref<8x32x8xf32, #tpu.memory_space<vmem>>, vector<1x32x8xf32>
    %131 = vector.shape_cast %130 : vector<1x32x8xf32> to vector<32x8xf32>
    %cst_87 = arith.constant dense<0.000000e+00> : vector<16x8xf32>
    %132 = tpu.matmul %22, %131, %cst_87 {dimension_numbers = #tpu.dot_dimension_numbers<[1], [0], [0], [1], [0, 0, 1, 1], [], []>} : vector<16x32xf32>, vector<32x8xf32>, vector<16x8xf32> -> vector<16x8xf32>
    %c2_88 = arith.constant 2 : index
    %c0_89 = arith.constant 0 : index
    %c0_90 = arith.constant 0 : index
    %133 = vector.load %arg9[%c2_88, %c0_89, %c0_90] : memref<8x1x8xf32, #tpu.memory_space<vmem>>, vector<1x1x8xf32>
    %134 = vector.shape_cast %133 : vector<1x1x8xf32> to vector<1x8xf32>
    %135 = vector.broadcast %134 : vector<1x8xf32> to vector<16x8xf32>
    %136 = arith.addf %132, %135 : vector<16x8xf32>
    %137 = vector.shape_cast %136 : vector<16x8xf32> to vector<2x8x8xf32>
    "tpu.trace_start"() <{level = 10 : i32, message = "bqd,bkd->bqk"}> : () -> ()
    %cst_91 = arith.constant dense<0.000000e+00> : vector<2x8x8xf32>
    %138 = tpu.matmul %121, %129, %cst_91 {dimension_numbers = #tpu.dot_dimension_numbers<[2], [2], [1], [1], [0, 0, 0, 1, 1, 1], [0], [0]>} : vector<2x8x8xf32>, vector<2x8x8xf32>, vector<2x8x8xf32> -> vector<2x8x8xf32>
    "tpu.trace_stop"() : () -> ()
    %cst_92 = arith.constant 0.353553385 : f32
    %139 = vector.broadcast %cst_92 : f32 to vector<2x8x8xf32>
    %140 = arith.mulf %138, %139 : vector<2x8x8xf32>
    %141 = arith.addf %140, %26 : vector<2x8x8xf32>
    %cst_93 = arith.constant dense<0xFF800000> : vector<2x8xf32>
    %142 = vector.multi_reduction <maximumf>, %141, %cst_93 [2] : vector<2x8x8xf32> to vector<2x8xf32>
    %143 = vector.shape_cast %142 : vector<2x8xf32> to vector<2x8x1xf32>
    %144 = vector.broadcast %143 : vector<2x8x1xf32> to vector<2x8x8xf32>
    %145 = arith.subf %141, %144 : vector<2x8x8xf32>
    %146 = math.exp %145 : vector<2x8x8xf32>
    %cst_94 = arith.constant dense<0.000000e+00> : vector<2x8xf32>
    %147 = vector.multi_reduction <add>, %146, %cst_94 [2] : vector<2x8x8xf32> to vector<2x8xf32>
    %148 = vector.shape_cast %147 : vector<2x8xf32> to vector<2x8x1xf32>
    %149 = vector.broadcast %148 : vector<2x8x1xf32> to vector<2x8x8xf32>
    %150 = arith.divf %146, %149 : vector<2x8x8xf32>
    "tpu.trace_start"() <{level = 10 : i32, message = "bqk,bkd->bqd"}> : () -> ()
    %cst_95 = arith.constant dense<0.000000e+00> : vector<2x8x8xf32>
    %151 = tpu.matmul %150, %137, %cst_95 {dimension_numbers = #tpu.dot_dimension_numbers<[2], [1], [1], [2], [0, 0, 0, 1, 1, 2], [0], [0]>} : vector<2x8x8xf32>, vector<2x8x8xf32>, vector<2x8x8xf32> -> vector<2x8x8xf32>
    "tpu.trace_stop"() : () -> ()
    %152 = vector.shape_cast %151 : vector<2x8x8xf32> to vector<16x8xf32>
    %c2_96 = arith.constant 2 : index
    %c0_97 = arith.constant 0 : index
    %c0_98 = arith.constant 0 : index
    %153 = vector.load %arg10[%c2_96, %c0_97, %c0_98] : memref<8x8x32xf32, #tpu.memory_space<vmem>>, vector<1x8x32xf32>
    %154 = vector.shape_cast %153 : vector<1x8x32xf32> to vector<8x32xf32>
    %cst_99 = arith.constant dense<0.000000e+00> : vector<16x32xf32>
    %155 = tpu.matmul %152, %154, %cst_99 {dimension_numbers = #tpu.dot_dimension_numbers<[1], [0], [0], [1], [0, 0, 1, 1], [], []>} : vector<16x8xf32>, vector<8x32xf32>, vector<16x32xf32> -> vector<16x32xf32>
    %156 = arith.addf %113, %155 : vector<16x32xf32>
    %c3 = arith.constant 3 : index
    %c0_100 = arith.constant 0 : index
    %c0_101 = arith.constant 0 : index
    %157 = vector.load %arg4[%c3, %c0_100, %c0_101] : memref<8x32x8xf32, #tpu.memory_space<vmem>>, vector<1x32x8xf32>
    %158 = vector.shape_cast %157 : vector<1x32x8xf32> to vector<32x8xf32>
    %cst_102 = arith.constant dense<0.000000e+00> : vector<16x8xf32>
    %159 = tpu.matmul %22, %158, %cst_102 {dimension_numbers = #tpu.dot_dimension_numbers<[1], [0], [0], [1], [0, 0, 1, 1], [], []>} : vector<16x32xf32>, vector<32x8xf32>, vector<16x8xf32> -> vector<16x8xf32>
    %c3_103 = arith.constant 3 : index
    %c0_104 = arith.constant 0 : index
    %c0_105 = arith.constant 0 : index
    %160 = vector.load %arg5[%c3_103, %c0_104, %c0_105] : memref<8x1x8xf32, #tpu.memory_space<vmem>>, vector<1x1x8xf32>
    %161 = vector.shape_cast %160 : vector<1x1x8xf32> to vector<1x8xf32>
    %162 = vector.broadcast %161 : vector<1x8xf32> to vector<16x8xf32>
    %163 = arith.addf %159, %162 : vector<16x8xf32>
    %164 = vector.shape_cast %163 : vector<16x8xf32> to vector<2x8x8xf32>
    %c3_106 = arith.constant 3 : index
    %c0_107 = arith.constant 0 : index
    %c0_108 = arith.constant 0 : index
    %165 = vector.load %arg6[%c3_106, %c0_107, %c0_108] : memref<8x32x8xf32, #tpu.memory_space<vmem>>, vector<1x32x8xf32>
    %166 = vector.shape_cast %165 : vector<1x32x8xf32> to vector<32x8xf32>
    %cst_109 = arith.constant dense<0.000000e+00> : vector<16x8xf32>
    %167 = tpu.matmul %22, %166, %cst_109 {dimension_numbers = #tpu.dot_dimension_numbers<[1], [0], [0], [1], [0, 0, 1, 1], [], []>} : vector<16x32xf32>, vector<32x8xf32>, vector<16x8xf32> -> vector<16x8xf32>
    %c3_110 = arith.constant 3 : index
    %c0_111 = arith.constant 0 : index
    %c0_112 = arith.constant 0 : index
    %168 = vector.load %arg7[%c3_110, %c0_111, %c0_112] : memref<8x1x8xf32, #tpu.memory_space<vmem>>, vector<1x1x8xf32>
    %169 = vector.shape_cast %168 : vector<1x1x8xf32> to vector<1x8xf32>
    %170 = vector.broadcast %169 : vector<1x8xf32> to vector<16x8xf32>
    %171 = arith.addf %167, %170 : vector<16x8xf32>
    %172 = vector.shape_cast %171 : vector<16x8xf32> to vector<2x8x8xf32>
    %c3_113 = arith.constant 3 : index
    %c0_114 = arith.constant 0 : index
    %c0_115 = arith.constant 0 : index
    %173 = vector.load %arg8[%c3_113, %c0_114, %c0_115] : memref<8x32x8xf32, #tpu.memory_space<vmem>>, vector<1x32x8xf32>
    %174 = vector.shape_cast %173 : vector<1x32x8xf32> to vector<32x8xf32>
    %cst_116 = arith.constant dense<0.000000e+00> : vector<16x8xf32>
    %175 = tpu.matmul %22, %174, %cst_116 {dimension_numbers = #tpu.dot_dimension_numbers<[1], [0], [0], [1], [0, 0, 1, 1], [], []>} : vector<16x32xf32>, vector<32x8xf32>, vector<16x8xf32> -> vector<16x8xf32>
    %c3_117 = arith.constant 3 : index
    %c0_118 = arith.constant 0 : index
    %c0_119 = arith.constant 0 : index
    %176 = vector.load %arg9[%c3_117, %c0_118, %c0_119] : memref<8x1x8xf32, #tpu.memory_space<vmem>>, vector<1x1x8xf32>
    %177 = vector.shape_cast %176 : vector<1x1x8xf32> to vector<1x8xf32>
    %178 = vector.broadcast %177 : vector<1x8xf32> to vector<16x8xf32>
    %179 = arith.addf %175, %178 : vector<16x8xf32>
    %180 = vector.shape_cast %179 : vector<16x8xf32> to vector<2x8x8xf32>
    "tpu.trace_start"() <{level = 10 : i32, message = "bqd,bkd->bqk"}> : () -> ()
    %cst_120 = arith.constant dense<0.000000e+00> : vector<2x8x8xf32>
    %181 = tpu.matmul %164, %172, %cst_120 {dimension_numbers = #tpu.dot_dimension_numbers<[2], [2], [1], [1], [0, 0, 0, 1, 1, 1], [0], [0]>} : vector<2x8x8xf32>, vector<2x8x8xf32>, vector<2x8x8xf32> -> vector<2x8x8xf32>
    "tpu.trace_stop"() : () -> ()
    %cst_121 = arith.constant 0.353553385 : f32
    %182 = vector.broadcast %cst_121 : f32 to vector<2x8x8xf32>
    %183 = arith.mulf %181, %182 : vector<2x8x8xf32>
    %184 = arith.addf %183, %26 : vector<2x8x8xf32>
    %cst_122 = arith.constant dense<0xFF800000> : vector<2x8xf32>
    %185 = vector.multi_reduction <maximumf>, %184, %cst_122 [2] : vector<2x8x8xf32> to vector<2x8xf32>
    %186 = vector.shape_cast %185 : vector<2x8xf32> to vector<2x8x1xf32>
    %187 = vector.broadcast %186 : vector<2x8x1xf32> to vector<2x8x8xf32>
    %188 = arith.subf %184, %187 : vector<2x8x8xf32>
    %189 = math.exp %188 : vector<2x8x8xf32>
    %cst_123 = arith.constant dense<0.000000e+00> : vector<2x8xf32>
    %190 = vector.multi_reduction <add>, %189, %cst_123 [2] : vector<2x8x8xf32> to vector<2x8xf32>
    %191 = vector.shape_cast %190 : vector<2x8xf32> to vector<2x8x1xf32>
    %192 = vector.broadcast %191 : vector<2x8x1xf32> to vector<2x8x8xf32>
    %193 = arith.divf %189, %192 : vector<2x8x8xf32>
    "tpu.trace_start"() <{level = 10 : i32, message = "bqk,bkd->bqd"}> : () -> ()
    %cst_124 = arith.constant dense<0.000000e+00> : vector<2x8x8xf32>
    %194 = tpu.matmul %193, %180, %cst_124 {dimension_numbers = #tpu.dot_dimension_numbers<[2], [1], [1], [2], [0, 0, 0, 1, 1, 2], [0], [0]>} : vector<2x8x8xf32>, vector<2x8x8xf32>, vector<2x8x8xf32> -> vector<2x8x8xf32>
    "tpu.trace_stop"() : () -> ()
    %195 = vector.shape_cast %194 : vector<2x8x8xf32> to vector<16x8xf32>
    %c3_125 = arith.constant 3 : index
    %c0_126 = arith.constant 0 : index
    %c0_127 = arith.constant 0 : index
    %196 = vector.load %arg10[%c3_125, %c0_126, %c0_127] : memref<8x8x32xf32, #tpu.memory_space<vmem>>, vector<1x8x32xf32>
    %197 = vector.shape_cast %196 : vector<1x8x32xf32> to vector<8x32xf32>
    %cst_128 = arith.constant dense<0.000000e+00> : vector<16x32xf32>
    %198 = tpu.matmul %195, %197, %cst_128 {dimension_numbers = #tpu.dot_dimension_numbers<[1], [0], [0], [1], [0, 0, 1, 1], [], []>} : vector<16x8xf32>, vector<8x32xf32>, vector<16x32xf32> -> vector<16x32xf32>
    %199 = arith.addf %156, %198 : vector<16x32xf32>
    %c0_129 = arith.constant 0 : index
    %c0_130 = arith.constant 0 : index
    %c0_131 = arith.constant 0 : index
    %200 = vector.load %arg11[%c0_129, %c0_130, %c0_131] : memref<2x1x32xf32, #tpu.memory_space<vmem>>, vector<1x1x32xf32>
    %201 = vector.shape_cast %200 : vector<1x1x32xf32> to vector<1x32xf32>
    %202 = vector.broadcast %201 : vector<1x32xf32> to vector<16x32xf32>
    %203 = arith.addf %199, %202 : vector<16x32xf32>
    %204 = arith.addf %203, %22 : vector<16x32xf32>
    %c0_132 = arith.constant 0 : index
    %c0_133 = arith.constant 0 : index
    %c0_134 = arith.constant 0 : index
    %205 = vector.load %arg12[%c0_132, %c0_133, %c0_134] : memref<2x1x32xf32, #tpu.memory_space<vmem>>, vector<1x1x32xf32>
    %206 = vector.shape_cast %205 : vector<1x1x32xf32> to vector<1x32xf32>
    %c0_135 = arith.constant 0 : index
    %c0_136 = arith.constant 0 : index
    %c0_137 = arith.constant 0 : index
    %207 = vector.load %arg13[%c0_135, %c0_136, %c0_137] : memref<2x1x32xf32, #tpu.memory_space<vmem>>, vector<1x1x32xf32>
    %208 = vector.shape_cast %207 : vector<1x1x32xf32> to vector<1x32xf32>
    %cst_138 = arith.constant dense<0.000000e+00> : vector<16xf32>
    %209 = vector.multi_reduction <add>, %204, %cst_138 [1] : vector<16x32xf32> to vector<16xf32>
    %210 = vector.shape_cast %209 : vector<16xf32> to vector<16x1xf32>
    %cst_139 = arith.constant 3.200000e+01 : f32
    %211 = vector.broadcast %cst_139 : f32 to vector<16x1xf32>
    %212 = arith.divf %210, %211 : vector<16x1xf32>
    %213 = vector.broadcast %212 : vector<16x1xf32> to vector<16x32xf32>
    %214 = arith.subf %204, %213 : vector<16x32xf32>
    %215 = arith.mulf %214, %214 : vector<16x32xf32>
    %cst_140 = arith.constant dense<0.000000e+00> : vector<16xf32>
    %216 = vector.multi_reduction <add>, %215, %cst_140 [1] : vector<16x32xf32> to vector<16xf32>
    %217 = vector.shape_cast %216 : vector<16xf32> to vector<16x1xf32>
    %cst_141 = arith.constant 3.200000e+01 : f32
    %218 = vector.broadcast %cst_141 : f32 to vector<16x1xf32>
    %219 = arith.divf %217, %218 : vector<16x1xf32>
    %cst_142 = arith.constant 9.99999996E-13 : f32
    %220 = vector.broadcast %cst_142 : f32 to vector<16x1xf32>
    %221 = arith.addf %219, %220 : vector<16x1xf32>
    %222 = math.rsqrt %221 : vector<16x1xf32>
    %223 = vector.broadcast %222 : vector<16x1xf32> to vector<16x32xf32>
    %224 = arith.mulf %214, %223 : vector<16x32xf32>
    %225 = vector.broadcast %206 : vector<1x32xf32> to vector<16x32xf32>
    %226 = arith.mulf %224, %225 : vector<16x32xf32>
    %227 = vector.broadcast %208 : vector<1x32xf32> to vector<16x32xf32>
    %228 = arith.addf %226, %227 : vector<16x32xf32>
    %c0_143 = arith.constant 0 : index
    %c0_144 = arith.constant 0 : index
    %c0_145 = arith.constant 0 : index
    %229 = vector.load %arg14[%c0_143, %c0_144, %c0_145] : memref<2x32x64xf32, #tpu.memory_space<vmem>>, vector<1x32x64xf32>
    %230 = vector.shape_cast %229 : vector<1x32x64xf32> to vector<32x64xf32>
    %cst_146 = arith.constant dense<0.000000e+00> : vector<16x64xf32>
    %231 = tpu.matmul %228, %230, %cst_146 {dimension_numbers = #tpu.dot_dimension_numbers<[1], [0], [0], [1], [0, 0, 1, 1], [], []>} : vector<16x32xf32>, vector<32x64xf32>, vector<16x64xf32> -> vector<16x64xf32>
    %c0_147 = arith.constant 0 : index
    %c0_148 = arith.constant 0 : index
    %c0_149 = arith.constant 0 : index
    %232 = vector.load %arg15[%c0_147, %c0_148, %c0_149] : memref<2x1x64xf32, #tpu.memory_space<vmem>>, vector<1x1x64xf32>
    %233 = vector.shape_cast %232 : vector<1x1x64xf32> to vector<1x64xf32>
    %234 = vector.broadcast %233 : vector<1x64xf32> to vector<16x64xf32>
    %235 = arith.addf %231, %234 : vector<16x64xf32>
    %cst_150 = arith.constant 5.000000e-01 : f32
    %236 = vector.broadcast %cst_150 : f32 to vector<16x64xf32>
    %237 = arith.mulf %236, %235 : vector<16x64xf32>
    %cst_151 = arith.constant 4.471500e-02 : f32
    %238 = vector.broadcast %cst_151 : f32 to vector<16x64xf32>
    %239 = arith.mulf %238, %235 : vector<16x64xf32>
    %240 = arith.mulf %239, %235 : vector<16x64xf32>
    %241 = arith.mulf %240, %235 : vector<16x64xf32>
    %242 = arith.addf %235, %241 : vector<16x64xf32>
    %cst_152 = arith.constant 0.797884583 : f32
    %243 = vector.broadcast %cst_152 : f32 to vector<16x64xf32>
    %244 = arith.mulf %243, %242 : vector<16x64xf32>
    %245 = math.tanh %244 : vector<16x64xf32>
    %cst_153 = arith.constant 1.000000e+00 : f32
    %246 = vector.broadcast %cst_153 : f32 to vector<16x64xf32>
    %247 = arith.addf %246, %245 : vector<16x64xf32>
    %248 = arith.mulf %237, %247 : vector<16x64xf32>
    %c0_154 = arith.constant 0 : index
    %c0_155 = arith.constant 0 : index
    %c0_156 = arith.constant 0 : index
    %249 = vector.load %arg16[%c0_154, %c0_155, %c0_156] : memref<2x64x32xf32, #tpu.memory_space<vmem>>, vector<1x64x32xf32>
    %250 = vector.shape_cast %249 : vector<1x64x32xf32> to vector<64x32xf32>
    %cst_157 = arith.constant dense<0.000000e+00> : vector<16x32xf32>
    %251 = tpu.matmul %248, %250, %cst_157 {dimension_numbers = #tpu.dot_dimension_numbers<[1], [0], [0], [1], [0, 0, 1, 1], [], []>} : vector<16x64xf32>, vector<64x32xf32>, vector<16x32xf32> -> vector<16x32xf32>
    %c0_158 = arith.constant 0 : index
    %c0_159 = arith.constant 0 : index
    %c0_160 = arith.constant 0 : index
    %252 = vector.load %arg17[%c0_158, %c0_159, %c0_160] : memref<2x1x32xf32, #tpu.memory_space<vmem>>, vector<1x1x32xf32>
    %253 = vector.shape_cast %252 : vector<1x1x32xf32> to vector<1x32xf32>
    %254 = vector.broadcast %253 : vector<1x32xf32> to vector<16x32xf32>
    %255 = arith.addf %251, %254 : vector<16x32xf32>
    %256 = arith.addf %255, %228 : vector<16x32xf32>
    %c0_161 = arith.constant 0 : index
    %c0_162 = arith.constant 0 : index
    %c0_163 = arith.constant 0 : index
    %257 = vector.load %arg18[%c0_161, %c0_162, %c0_163] : memref<2x1x32xf32, #tpu.memory_space<vmem>>, vector<1x1x32xf32>
    %258 = vector.shape_cast %257 : vector<1x1x32xf32> to vector<1x32xf32>
    %c0_164 = arith.constant 0 : index
    %c0_165 = arith.constant 0 : index
    %c0_166 = arith.constant 0 : index
    %259 = vector.load %arg19[%c0_164, %c0_165, %c0_166] : memref<2x1x32xf32, #tpu.memory_space<vmem>>, vector<1x1x32xf32>
    %260 = vector.shape_cast %259 : vector<1x1x32xf32> to vector<1x32xf32>
    %cst_167 = arith.constant dense<0.000000e+00> : vector<16xf32>
    %261 = vector.multi_reduction <add>, %256, %cst_167 [1] : vector<16x32xf32> to vector<16xf32>
    %262 = vector.shape_cast %261 : vector<16xf32> to vector<16x1xf32>
    %cst_168 = arith.constant 3.200000e+01 : f32
    %263 = vector.broadcast %cst_168 : f32 to vector<16x1xf32>
    %264 = arith.divf %262, %263 : vector<16x1xf32>
    %265 = vector.broadcast %264 : vector<16x1xf32> to vector<16x32xf32>
    %266 = arith.subf %256, %265 : vector<16x32xf32>
    %267 = arith.mulf %266, %266 : vector<16x32xf32>
    %cst_169 = arith.constant dense<0.000000e+00> : vector<16xf32>
    %268 = vector.multi_reduction <add>, %267, %cst_169 [1] : vector<16x32xf32> to vector<16xf32>
    %269 = vector.shape_cast %268 : vector<16xf32> to vector<16x1xf32>
    %cst_170 = arith.constant 3.200000e+01 : f32
    %270 = vector.broadcast %cst_170 : f32 to vector<16x1xf32>
    %271 = arith.divf %269, %270 : vector<16x1xf32>
    %cst_171 = arith.constant 9.99999996E-13 : f32
    %272 = vector.broadcast %cst_171 : f32 to vector<16x1xf32>
    %273 = arith.addf %271, %272 : vector<16x1xf32>
    %274 = math.rsqrt %273 : vector<16x1xf32>
    %275 = vector.broadcast %274 : vector<16x1xf32> to vector<16x32xf32>
    %276 = arith.mulf %266, %275 : vector<16x32xf32>
    %277 = vector.broadcast %258 : vector<1x32xf32> to vector<16x32xf32>
    %278 = arith.mulf %276, %277 : vector<16x32xf32>
    %279 = vector.broadcast %260 : vector<1x32xf32> to vector<16x32xf32>
    %280 = arith.addf %278, %279 : vector<16x32xf32>
    %cst_172 = arith.constant 0.000000e+00 : f32
    %281 = vector.broadcast %cst_172 : f32 to vector<16x32xf32>
    %c4 = arith.constant 4 : index
    %c0_173 = arith.constant 0 : index
    %c0_174 = arith.constant 0 : index
    %282 = vector.load %arg4[%c4, %c0_173, %c0_174] : memref<8x32x8xf32, #tpu.memory_space<vmem>>, vector<1x32x8xf32>
    %283 = vector.shape_cast %282 : vector<1x32x8xf32> to vector<32x8xf32>
    %cst_175 = arith.constant dense<0.000000e+00> : vector<16x8xf32>
    %284 = tpu.matmul %280, %283, %cst_175 {dimension_numbers = #tpu.dot_dimension_numbers<[1], [0], [0], [1], [0, 0, 1, 1], [], []>} : vector<16x32xf32>, vector<32x8xf32>, vector<16x8xf32> -> vector<16x8xf32>
    %c4_176 = arith.constant 4 : index
    %c0_177 = arith.constant 0 : index
    %c0_178 = arith.constant 0 : index
    %285 = vector.load %arg5[%c4_176, %c0_177, %c0_178] : memref<8x1x8xf32, #tpu.memory_space<vmem>>, vector<1x1x8xf32>
    %286 = vector.shape_cast %285 : vector<1x1x8xf32> to vector<1x8xf32>
    %287 = vector.broadcast %286 : vector<1x8xf32> to vector<16x8xf32>
    %288 = arith.addf %284, %287 : vector<16x8xf32>
    %289 = vector.shape_cast %288 : vector<16x8xf32> to vector<2x8x8xf32>
    %c4_179 = arith.constant 4 : index
    %c0_180 = arith.constant 0 : index
    %c0_181 = arith.constant 0 : index
    %290 = vector.load %arg6[%c4_179, %c0_180, %c0_181] : memref<8x32x8xf32, #tpu.memory_space<vmem>>, vector<1x32x8xf32>
    %291 = vector.shape_cast %290 : vector<1x32x8xf32> to vector<32x8xf32>
    %cst_182 = arith.constant dense<0.000000e+00> : vector<16x8xf32>
    %292 = tpu.matmul %280, %291, %cst_182 {dimension_numbers = #tpu.dot_dimension_numbers<[1], [0], [0], [1], [0, 0, 1, 1], [], []>} : vector<16x32xf32>, vector<32x8xf32>, vector<16x8xf32> -> vector<16x8xf32>
    %c4_183 = arith.constant 4 : index
    %c0_184 = arith.constant 0 : index
    %c0_185 = arith.constant 0 : index
    %293 = vector.load %arg7[%c4_183, %c0_184, %c0_185] : memref<8x1x8xf32, #tpu.memory_space<vmem>>, vector<1x1x8xf32>
    %294 = vector.shape_cast %293 : vector<1x1x8xf32> to vector<1x8xf32>
    %295 = vector.broadcast %294 : vector<1x8xf32> to vector<16x8xf32>
    %296 = arith.addf %292, %295 : vector<16x8xf32>
    %297 = vector.shape_cast %296 : vector<16x8xf32> to vector<2x8x8xf32>
    %c4_186 = arith.constant 4 : index
    %c0_187 = arith.constant 0 : index
    %c0_188 = arith.constant 0 : index
    %298 = vector.load %arg8[%c4_186, %c0_187, %c0_188] : memref<8x32x8xf32, #tpu.memory_space<vmem>>, vector<1x32x8xf32>
    %299 = vector.shape_cast %298 : vector<1x32x8xf32> to vector<32x8xf32>
    %cst_189 = arith.constant dense<0.000000e+00> : vector<16x8xf32>
    %300 = tpu.matmul %280, %299, %cst_189 {dimension_numbers = #tpu.dot_dimension_numbers<[1], [0], [0], [1], [0, 0, 1, 1], [], []>} : vector<16x32xf32>, vector<32x8xf32>, vector<16x8xf32> -> vector<16x8xf32>
    %c4_190 = arith.constant 4 : index
    %c0_191 = arith.constant 0 : index
    %c0_192 = arith.constant 0 : index
    %301 = vector.load %arg9[%c4_190, %c0_191, %c0_192] : memref<8x1x8xf32, #tpu.memory_space<vmem>>, vector<1x1x8xf32>
    %302 = vector.shape_cast %301 : vector<1x1x8xf32> to vector<1x8xf32>
    %303 = vector.broadcast %302 : vector<1x8xf32> to vector<16x8xf32>
    %304 = arith.addf %300, %303 : vector<16x8xf32>
    %305 = vector.shape_cast %304 : vector<16x8xf32> to vector<2x8x8xf32>
    "tpu.trace_start"() <{level = 10 : i32, message = "bqd,bkd->bqk"}> : () -> ()
    %cst_193 = arith.constant dense<0.000000e+00> : vector<2x8x8xf32>
    %306 = tpu.matmul %289, %297, %cst_193 {dimension_numbers = #tpu.dot_dimension_numbers<[2], [2], [1], [1], [0, 0, 0, 1, 1, 1], [0], [0]>} : vector<2x8x8xf32>, vector<2x8x8xf32>, vector<2x8x8xf32> -> vector<2x8x8xf32>
    "tpu.trace_stop"() : () -> ()
    %cst_194 = arith.constant 0.353553385 : f32
    %307 = vector.broadcast %cst_194 : f32 to vector<2x8x8xf32>
    %308 = arith.mulf %306, %307 : vector<2x8x8xf32>
    %309 = arith.addf %308, %26 : vector<2x8x8xf32>
    %cst_195 = arith.constant dense<0xFF800000> : vector<2x8xf32>
    %310 = vector.multi_reduction <maximumf>, %309, %cst_195 [2] : vector<2x8x8xf32> to vector<2x8xf32>
    %311 = vector.shape_cast %310 : vector<2x8xf32> to vector<2x8x1xf32>
    %312 = vector.broadcast %311 : vector<2x8x1xf32> to vector<2x8x8xf32>
    %313 = arith.subf %309, %312 : vector<2x8x8xf32>
    %314 = math.exp %313 : vector<2x8x8xf32>
    %cst_196 = arith.constant dense<0.000000e+00> : vector<2x8xf32>
    %315 = vector.multi_reduction <add>, %314, %cst_196 [2] : vector<2x8x8xf32> to vector<2x8xf32>
    %316 = vector.shape_cast %315 : vector<2x8xf32> to vector<2x8x1xf32>
    %317 = vector.broadcast %316 : vector<2x8x1xf32> to vector<2x8x8xf32>
    %318 = arith.divf %314, %317 : vector<2x8x8xf32>
    "tpu.trace_start"() <{level = 10 : i32, message = "bqk,bkd->bqd"}> : () -> ()
    %cst_197 = arith.constant dense<0.000000e+00> : vector<2x8x8xf32>
    %319 = tpu.matmul %318, %305, %cst_197 {dimension_numbers = #tpu.dot_dimension_numbers<[2], [1], [1], [2], [0, 0, 0, 1, 1, 2], [0], [0]>} : vector<2x8x8xf32>, vector<2x8x8xf32>, vector<2x8x8xf32> -> vector<2x8x8xf32>
    "tpu.trace_stop"() : () -> ()
    %320 = vector.shape_cast %319 : vector<2x8x8xf32> to vector<16x8xf32>
    %c4_198 = arith.constant 4 : index
    %c0_199 = arith.constant 0 : index
    %c0_200 = arith.constant 0 : index
    %321 = vector.load %arg10[%c4_198, %c0_199, %c0_200] : memref<8x8x32xf32, #tpu.memory_space<vmem>>, vector<1x8x32xf32>
    %322 = vector.shape_cast %321 : vector<1x8x32xf32> to vector<8x32xf32>
    %cst_201 = arith.constant dense<0.000000e+00> : vector<16x32xf32>
    %323 = tpu.matmul %320, %322, %cst_201 {dimension_numbers = #tpu.dot_dimension_numbers<[1], [0], [0], [1], [0, 0, 1, 1], [], []>} : vector<16x8xf32>, vector<8x32xf32>, vector<16x32xf32> -> vector<16x32xf32>
    %324 = arith.addf %281, %323 : vector<16x32xf32>
    %c5 = arith.constant 5 : index
    %c0_202 = arith.constant 0 : index
    %c0_203 = arith.constant 0 : index
    %325 = vector.load %arg4[%c5, %c0_202, %c0_203] : memref<8x32x8xf32, #tpu.memory_space<vmem>>, vector<1x32x8xf32>
    %326 = vector.shape_cast %325 : vector<1x32x8xf32> to vector<32x8xf32>
    %cst_204 = arith.constant dense<0.000000e+00> : vector<16x8xf32>
    %327 = tpu.matmul %280, %326, %cst_204 {dimension_numbers = #tpu.dot_dimension_numbers<[1], [0], [0], [1], [0, 0, 1, 1], [], []>} : vector<16x32xf32>, vector<32x8xf32>, vector<16x8xf32> -> vector<16x8xf32>
    %c5_205 = arith.constant 5 : index
    %c0_206 = arith.constant 0 : index
    %c0_207 = arith.constant 0 : index
    %328 = vector.load %arg5[%c5_205, %c0_206, %c0_207] : memref<8x1x8xf32, #tpu.memory_space<vmem>>, vector<1x1x8xf32>
    %329 = vector.shape_cast %328 : vector<1x1x8xf32> to vector<1x8xf32>
    %330 = vector.broadcast %329 : vector<1x8xf32> to vector<16x8xf32>
    %331 = arith.addf %327, %330 : vector<16x8xf32>
    %332 = vector.shape_cast %331 : vector<16x8xf32> to vector<2x8x8xf32>
    %c5_208 = arith.constant 5 : index
    %c0_209 = arith.constant 0 : index
    %c0_210 = arith.constant 0 : index
    %333 = vector.load %arg6[%c5_208, %c0_209, %c0_210] : memref<8x32x8xf32, #tpu.memory_space<vmem>>, vector<1x32x8xf32>
    %334 = vector.shape_cast %333 : vector<1x32x8xf32> to vector<32x8xf32>
    %cst_211 = arith.constant dense<0.000000e+00> : vector<16x8xf32>
    %335 = tpu.matmul %280, %334, %cst_211 {dimension_numbers = #tpu.dot_dimension_numbers<[1], [0], [0], [1], [0, 0, 1, 1], [], []>} : vector<16x32xf32>, vector<32x8xf32>, vector<16x8xf32> -> vector<16x8xf32>
    %c5_212 = arith.constant 5 : index
    %c0_213 = arith.constant 0 : index
    %c0_214 = arith.constant 0 : index
    %336 = vector.load %arg7[%c5_212, %c0_213, %c0_214] : memref<8x1x8xf32, #tpu.memory_space<vmem>>, vector<1x1x8xf32>
    %337 = vector.shape_cast %336 : vector<1x1x8xf32> to vector<1x8xf32>
    %338 = vector.broadcast %337 : vector<1x8xf32> to vector<16x8xf32>
    %339 = arith.addf %335, %338 : vector<16x8xf32>
    %340 = vector.shape_cast %339 : vector<16x8xf32> to vector<2x8x8xf32>
    %c5_215 = arith.constant 5 : index
    %c0_216 = arith.constant 0 : index
    %c0_217 = arith.constant 0 : index
    %341 = vector.load %arg8[%c5_215, %c0_216, %c0_217] : memref<8x32x8xf32, #tpu.memory_space<vmem>>, vector<1x32x8xf32>
    %342 = vector.shape_cast %341 : vector<1x32x8xf32> to vector<32x8xf32>
    %cst_218 = arith.constant dense<0.000000e+00> : vector<16x8xf32>
    %343 = tpu.matmul %280, %342, %cst_218 {dimension_numbers = #tpu.dot_dimension_numbers<[1], [0], [0], [1], [0, 0, 1, 1], [], []>} : vector<16x32xf32>, vector<32x8xf32>, vector<16x8xf32> -> vector<16x8xf32>
    %c5_219 = arith.constant 5 : index
    %c0_220 = arith.constant 0 : index
    %c0_221 = arith.constant 0 : index
    %344 = vector.load %arg9[%c5_219, %c0_220, %c0_221] : memref<8x1x8xf32, #tpu.memory_space<vmem>>, vector<1x1x8xf32>
    %345 = vector.shape_cast %344 : vector<1x1x8xf32> to vector<1x8xf32>
    %346 = vector.broadcast %345 : vector<1x8xf32> to vector<16x8xf32>
    %347 = arith.addf %343, %346 : vector<16x8xf32>
    %348 = vector.shape_cast %347 : vector<16x8xf32> to vector<2x8x8xf32>
    "tpu.trace_start"() <{level = 10 : i32, message = "bqd,bkd->bqk"}> : () -> ()
    %cst_222 = arith.constant dense<0.000000e+00> : vector<2x8x8xf32>
    %349 = tpu.matmul %332, %340, %cst_222 {dimension_numbers = #tpu.dot_dimension_numbers<[2], [2], [1], [1], [0, 0, 0, 1, 1, 1], [0], [0]>} : vector<2x8x8xf32>, vector<2x8x8xf32>, vector<2x8x8xf32> -> vector<2x8x8xf32>
    "tpu.trace_stop"() : () -> ()
    %cst_223 = arith.constant 0.353553385 : f32
    %350 = vector.broadcast %cst_223 : f32 to vector<2x8x8xf32>
    %351 = arith.mulf %349, %350 : vector<2x8x8xf32>
    %352 = arith.addf %351, %26 : vector<2x8x8xf32>
    %cst_224 = arith.constant dense<0xFF800000> : vector<2x8xf32>
    %353 = vector.multi_reduction <maximumf>, %352, %cst_224 [2] : vector<2x8x8xf32> to vector<2x8xf32>
    %354 = vector.shape_cast %353 : vector<2x8xf32> to vector<2x8x1xf32>
    %355 = vector.broadcast %354 : vector<2x8x1xf32> to vector<2x8x8xf32>
    %356 = arith.subf %352, %355 : vector<2x8x8xf32>
    %357 = math.exp %356 : vector<2x8x8xf32>
    %cst_225 = arith.constant dense<0.000000e+00> : vector<2x8xf32>
    %358 = vector.multi_reduction <add>, %357, %cst_225 [2] : vector<2x8x8xf32> to vector<2x8xf32>
    %359 = vector.shape_cast %358 : vector<2x8xf32> to vector<2x8x1xf32>
    %360 = vector.broadcast %359 : vector<2x8x1xf32> to vector<2x8x8xf32>
    %361 = arith.divf %357, %360 : vector<2x8x8xf32>
    "tpu.trace_start"() <{level = 10 : i32, message = "bqk,bkd->bqd"}> : () -> ()
    %cst_226 = arith.constant dense<0.000000e+00> : vector<2x8x8xf32>
    %362 = tpu.matmul %361, %348, %cst_226 {dimension_numbers = #tpu.dot_dimension_numbers<[2], [1], [1], [2], [0, 0, 0, 1, 1, 2], [0], [0]>} : vector<2x8x8xf32>, vector<2x8x8xf32>, vector<2x8x8xf32> -> vector<2x8x8xf32>
    "tpu.trace_stop"() : () -> ()
    %363 = vector.shape_cast %362 : vector<2x8x8xf32> to vector<16x8xf32>
    %c5_227 = arith.constant 5 : index
    %c0_228 = arith.constant 0 : index
    %c0_229 = arith.constant 0 : index
    %364 = vector.load %arg10[%c5_227, %c0_228, %c0_229] : memref<8x8x32xf32, #tpu.memory_space<vmem>>, vector<1x8x32xf32>
    %365 = vector.shape_cast %364 : vector<1x8x32xf32> to vector<8x32xf32>
    %cst_230 = arith.constant dense<0.000000e+00> : vector<16x32xf32>
    %366 = tpu.matmul %363, %365, %cst_230 {dimension_numbers = #tpu.dot_dimension_numbers<[1], [0], [0], [1], [0, 0, 1, 1], [], []>} : vector<16x8xf32>, vector<8x32xf32>, vector<16x32xf32> -> vector<16x32xf32>
    %367 = arith.addf %324, %366 : vector<16x32xf32>
    %c6 = arith.constant 6 : index
    %c0_231 = arith.constant 0 : index
    %c0_232 = arith.constant 0 : index
    %368 = vector.load %arg4[%c6, %c0_231, %c0_232] : memref<8x32x8xf32, #tpu.memory_space<vmem>>, vector<1x32x8xf32>
    %369 = vector.shape_cast %368 : vector<1x32x8xf32> to vector<32x8xf32>
    %cst_233 = arith.constant dense<0.000000e+00> : vector<16x8xf32>
    %370 = tpu.matmul %280, %369, %cst_233 {dimension_numbers = #tpu.dot_dimension_numbers<[1], [0], [0], [1], [0, 0, 1, 1], [], []>} : vector<16x32xf32>, vector<32x8xf32>, vector<16x8xf32> -> vector<16x8xf32>
    %c6_234 = arith.constant 6 : index
    %c0_235 = arith.constant 0 : index
    %c0_236 = arith.constant 0 : index
    %371 = vector.load %arg5[%c6_234, %c0_235, %c0_236] : memref<8x1x8xf32, #tpu.memory_space<vmem>>, vector<1x1x8xf32>
    %372 = vector.shape_cast %371 : vector<1x1x8xf32> to vector<1x8xf32>
    %373 = vector.broadcast %372 : vector<1x8xf32> to vector<16x8xf32>
    %374 = arith.addf %370, %373 : vector<16x8xf32>
    %375 = vector.shape_cast %374 : vector<16x8xf32> to vector<2x8x8xf32>
    %c6_237 = arith.constant 6 : index
    %c0_238 = arith.constant 0 : index
    %c0_239 = arith.constant 0 : index
    %376 = vector.load %arg6[%c6_237, %c0_238, %c0_239] : memref<8x32x8xf32, #tpu.memory_space<vmem>>, vector<1x32x8xf32>
    %377 = vector.shape_cast %376 : vector<1x32x8xf32> to vector<32x8xf32>
    %cst_240 = arith.constant dense<0.000000e+00> : vector<16x8xf32>
    %378 = tpu.matmul %280, %377, %cst_240 {dimension_numbers = #tpu.dot_dimension_numbers<[1], [0], [0], [1], [0, 0, 1, 1], [], []>} : vector<16x32xf32>, vector<32x8xf32>, vector<16x8xf32> -> vector<16x8xf32>
    %c6_241 = arith.constant 6 : index
    %c0_242 = arith.constant 0 : index
    %c0_243 = arith.constant 0 : index
    %379 = vector.load %arg7[%c6_241, %c0_242, %c0_243] : memref<8x1x8xf32, #tpu.memory_space<vmem>>, vector<1x1x8xf32>
    %380 = vector.shape_cast %379 : vector<1x1x8xf32> to vector<1x8xf32>
    %381 = vector.broadcast %380 : vector<1x8xf32> to vector<16x8xf32>
    %382 = arith.addf %378, %381 : vector<16x8xf32>
    %383 = vector.shape_cast %382 : vector<16x8xf32> to vector<2x8x8xf32>
    %c6_244 = arith.constant 6 : index
    %c0_245 = arith.constant 0 : index
    %c0_246 = arith.constant 0 : index
    %384 = vector.load %arg8[%c6_244, %c0_245, %c0_246] : memref<8x32x8xf32, #tpu.memory_space<vmem>>, vector<1x32x8xf32>
    %385 = vector.shape_cast %384 : vector<1x32x8xf32> to vector<32x8xf32>
    %cst_247 = arith.constant dense<0.000000e+00> : vector<16x8xf32>
    %386 = tpu.matmul %280, %385, %cst_247 {dimension_numbers = #tpu.dot_dimension_numbers<[1], [0], [0], [1], [0, 0, 1, 1], [], []>} : vector<16x32xf32>, vector<32x8xf32>, vector<16x8xf32> -> vector<16x8xf32>
    %c6_248 = arith.constant 6 : index
    %c0_249 = arith.constant 0 : index
    %c0_250 = arith.constant 0 : index
    %387 = vector.load %arg9[%c6_248, %c0_249, %c0_250] : memref<8x1x8xf32, #tpu.memory_space<vmem>>, vector<1x1x8xf32>
    %388 = vector.shape_cast %387 : vector<1x1x8xf32> to vector<1x8xf32>
    %389 = vector.broadcast %388 : vector<1x8xf32> to vector<16x8xf32>
    %390 = arith.addf %386, %389 : vector<16x8xf32>
    %391 = vector.shape_cast %390 : vector<16x8xf32> to vector<2x8x8xf32>
    "tpu.trace_start"() <{level = 10 : i32, message = "bqd,bkd->bqk"}> : () -> ()
    %cst_251 = arith.constant dense<0.000000e+00> : vector<2x8x8xf32>
    %392 = tpu.matmul %375, %383, %cst_251 {dimension_numbers = #tpu.dot_dimension_numbers<[2], [2], [1], [1], [0, 0, 0, 1, 1, 1], [0], [0]>} : vector<2x8x8xf32>, vector<2x8x8xf32>, vector<2x8x8xf32> -> vector<2x8x8xf32>
    "tpu.trace_stop"() : () -> ()
    %cst_252 = arith.constant 0.353553385 : f32
    %393 = vector.broadcast %cst_252 : f32 to vector<2x8x8xf32>
    %394 = arith.mulf %392, %393 : vector<2x8x8xf32>
    %395 = arith.addf %394, %26 : vector<2x8x8xf32>
    %cst_253 = arith.constant dense<0xFF800000> : vector<2x8xf32>
    %396 = vector.multi_reduction <maximumf>, %395, %cst_253 [2] : vector<2x8x8xf32> to vector<2x8xf32>
    %397 = vector.shape_cast %396 : vector<2x8xf32> to vector<2x8x1xf32>
    %398 = vector.broadcast %397 : vector<2x8x1xf32> to vector<2x8x8xf32>
    %399 = arith.subf %395, %398 : vector<2x8x8xf32>
    %400 = math.exp %399 : vector<2x8x8xf32>
    %cst_254 = arith.constant dense<0.000000e+00> : vector<2x8xf32>
    %401 = vector.multi_reduction <add>, %400, %cst_254 [2] : vector<2x8x8xf32> to vector<2x8xf32>
    %402 = vector.shape_cast %401 : vector<2x8xf32> to vector<2x8x1xf32>
    %403 = vector.broadcast %402 : vector<2x8x1xf32> to vector<2x8x8xf32>
    %404 = arith.divf %400, %403 : vector<2x8x8xf32>
    "tpu.trace_start"() <{level = 10 : i32, message = "bqk,bkd->bqd"}> : () -> ()
    %cst_255 = arith.constant dense<0.000000e+00> : vector<2x8x8xf32>
    %405 = tpu.matmul %404, %391, %cst_255 {dimension_numbers = #tpu.dot_dimension_numbers<[2], [1], [1], [2], [0, 0, 0, 1, 1, 2], [0], [0]>} : vector<2x8x8xf32>, vector<2x8x8xf32>, vector<2x8x8xf32> -> vector<2x8x8xf32>
    "tpu.trace_stop"() : () -> ()
    %406 = vector.shape_cast %405 : vector<2x8x8xf32> to vector<16x8xf32>
    %c6_256 = arith.constant 6 : index
    %c0_257 = arith.constant 0 : index
    %c0_258 = arith.constant 0 : index
    %407 = vector.load %arg10[%c6_256, %c0_257, %c0_258] : memref<8x8x32xf32, #tpu.memory_space<vmem>>, vector<1x8x32xf32>
    %408 = vector.shape_cast %407 : vector<1x8x32xf32> to vector<8x32xf32>
    %cst_259 = arith.constant dense<0.000000e+00> : vector<16x32xf32>
    %409 = tpu.matmul %406, %408, %cst_259 {dimension_numbers = #tpu.dot_dimension_numbers<[1], [0], [0], [1], [0, 0, 1, 1], [], []>} : vector<16x8xf32>, vector<8x32xf32>, vector<16x32xf32> -> vector<16x32xf32>
    %410 = arith.addf %367, %409 : vector<16x32xf32>
    %c7 = arith.constant 7 : index
    %c0_260 = arith.constant 0 : index
    %c0_261 = arith.constant 0 : index
    %411 = vector.load %arg4[%c7, %c0_260, %c0_261] : memref<8x32x8xf32, #tpu.memory_space<vmem>>, vector<1x32x8xf32>
    %412 = vector.shape_cast %411 : vector<1x32x8xf32> to vector<32x8xf32>
    %cst_262 = arith.constant dense<0.000000e+00> : vector<16x8xf32>
    %413 = tpu.matmul %280, %412, %cst_262 {dimension_numbers = #tpu.dot_dimension_numbers<[1], [0], [0], [1], [0, 0, 1, 1], [], []>} : vector<16x32xf32>, vector<32x8xf32>, vector<16x8xf32> -> vector<16x8xf32>
    %c7_263 = arith.constant 7 : index
    %c0_264 = arith.constant 0 : index
    %c0_265 = arith.constant 0 : index
    %414 = vector.load %arg5[%c7_263, %c0_264, %c0_265] : memref<8x1x8xf32, #tpu.memory_space<vmem>>, vector<1x1x8xf32>
    %415 = vector.shape_cast %414 : vector<1x1x8xf32> to vector<1x8xf32>
    %416 = vector.broadcast %415 : vector<1x8xf32> to vector<16x8xf32>
    %417 = arith.addf %413, %416 : vector<16x8xf32>
    %418 = vector.shape_cast %417 : vector<16x8xf32> to vector<2x8x8xf32>
    %c7_266 = arith.constant 7 : index
    %c0_267 = arith.constant 0 : index
    %c0_268 = arith.constant 0 : index
    %419 = vector.load %arg6[%c7_266, %c0_267, %c0_268] : memref<8x32x8xf32, #tpu.memory_space<vmem>>, vector<1x32x8xf32>
    %420 = vector.shape_cast %419 : vector<1x32x8xf32> to vector<32x8xf32>
    %cst_269 = arith.constant dense<0.000000e+00> : vector<16x8xf32>
    %421 = tpu.matmul %280, %420, %cst_269 {dimension_numbers = #tpu.dot_dimension_numbers<[1], [0], [0], [1], [0, 0, 1, 1], [], []>} : vector<16x32xf32>, vector<32x8xf32>, vector<16x8xf32> -> vector<16x8xf32>
    %c7_270 = arith.constant 7 : index
    %c0_271 = arith.constant 0 : index
    %c0_272 = arith.constant 0 : index
    %422 = vector.load %arg7[%c7_270, %c0_271, %c0_272] : memref<8x1x8xf32, #tpu.memory_space<vmem>>, vector<1x1x8xf32>
    %423 = vector.shape_cast %422 : vector<1x1x8xf32> to vector<1x8xf32>
    %424 = vector.broadcast %423 : vector<1x8xf32> to vector<16x8xf32>
    %425 = arith.addf %421, %424 : vector<16x8xf32>
    %426 = vector.shape_cast %425 : vector<16x8xf32> to vector<2x8x8xf32>
    %c7_273 = arith.constant 7 : index
    %c0_274 = arith.constant 0 : index
    %c0_275 = arith.constant 0 : index
    %427 = vector.load %arg8[%c7_273, %c0_274, %c0_275] : memref<8x32x8xf32, #tpu.memory_space<vmem>>, vector<1x32x8xf32>
    %428 = vector.shape_cast %427 : vector<1x32x8xf32> to vector<32x8xf32>
    %cst_276 = arith.constant dense<0.000000e+00> : vector<16x8xf32>
    %429 = tpu.matmul %280, %428, %cst_276 {dimension_numbers = #tpu.dot_dimension_numbers<[1], [0], [0], [1], [0, 0, 1, 1], [], []>} : vector<16x32xf32>, vector<32x8xf32>, vector<16x8xf32> -> vector<16x8xf32>
    %c7_277 = arith.constant 7 : index
    %c0_278 = arith.constant 0 : index
    %c0_279 = arith.constant 0 : index
    %430 = vector.load %arg9[%c7_277, %c0_278, %c0_279] : memref<8x1x8xf32, #tpu.memory_space<vmem>>, vector<1x1x8xf32>
    %431 = vector.shape_cast %430 : vector<1x1x8xf32> to vector<1x8xf32>
    %432 = vector.broadcast %431 : vector<1x8xf32> to vector<16x8xf32>
    %433 = arith.addf %429, %432 : vector<16x8xf32>
    %434 = vector.shape_cast %433 : vector<16x8xf32> to vector<2x8x8xf32>
    "tpu.trace_start"() <{level = 10 : i32, message = "bqd,bkd->bqk"}> : () -> ()
    %cst_280 = arith.constant dense<0.000000e+00> : vector<2x8x8xf32>
    %435 = tpu.matmul %418, %426, %cst_280 {dimension_numbers = #tpu.dot_dimension_numbers<[2], [2], [1], [1], [0, 0, 0, 1, 1, 1], [0], [0]>} : vector<2x8x8xf32>, vector<2x8x8xf32>, vector<2x8x8xf32> -> vector<2x8x8xf32>
    "tpu.trace_stop"() : () -> ()
    %cst_281 = arith.constant 0.353553385 : f32
    %436 = vector.broadcast %cst_281 : f32 to vector<2x8x8xf32>
    %437 = arith.mulf %435, %436 : vector<2x8x8xf32>
    %438 = arith.addf %437, %26 : vector<2x8x8xf32>
    %cst_282 = arith.constant dense<0xFF800000> : vector<2x8xf32>
    %439 = vector.multi_reduction <maximumf>, %438, %cst_282 [2] : vector<2x8x8xf32> to vector<2x8xf32>
    %440 = vector.shape_cast %439 : vector<2x8xf32> to vector<2x8x1xf32>
    %441 = vector.broadcast %440 : vector<2x8x1xf32> to vector<2x8x8xf32>
    %442 = arith.subf %438, %441 : vector<2x8x8xf32>
    %443 = math.exp %442 : vector<2x8x8xf32>
    %cst_283 = arith.constant dense<0.000000e+00> : vector<2x8xf32>
    %444 = vector.multi_reduction <add>, %443, %cst_283 [2] : vector<2x8x8xf32> to vector<2x8xf32>
    %445 = vector.shape_cast %444 : vector<2x8xf32> to vector<2x8x1xf32>
    %446 = vector.broadcast %445 : vector<2x8x1xf32> to vector<2x8x8xf32>
    %447 = arith.divf %443, %446 : vector<2x8x8xf32>
    "tpu.trace_start"() <{level = 10 : i32, message = "bqk,bkd->bqd"}> : () -> ()
    %cst_284 = arith.constant dense<0.000000e+00> : vector<2x8x8xf32>
    %448 = tpu.matmul %447, %434, %cst_284 {dimension_numbers = #tpu.dot_dimension_numbers<[2], [1], [1], [2], [0, 0, 0, 1, 1, 2], [0], [0]>} : vector<2x8x8xf32>, vector<2x8x8xf32>, vector<2x8x8xf32> -> vector<2x8x8xf32>
    "tpu.trace_stop"() : () -> ()
    %449 = vector.shape_cast %448 : vector<2x8x8xf32> to vector<16x8xf32>
    %c7_285 = arith.constant 7 : index
    %c0_286 = arith.constant 0 : index
    %c0_287 = arith.constant 0 : index
    %450 = vector.load %arg10[%c7_285, %c0_286, %c0_287] : memref<8x8x32xf32, #tpu.memory_space<vmem>>, vector<1x8x32xf32>
    %451 = vector.shape_cast %450 : vector<1x8x32xf32> to vector<8x32xf32>
    %cst_288 = arith.constant dense<0.000000e+00> : vector<16x32xf32>
    %452 = tpu.matmul %449, %451, %cst_288 {dimension_numbers = #tpu.dot_dimension_numbers<[1], [0], [0], [1], [0, 0, 1, 1], [], []>} : vector<16x8xf32>, vector<8x32xf32>, vector<16x32xf32> -> vector<16x32xf32>
    %453 = arith.addf %410, %452 : vector<16x32xf32>
    %c1_289 = arith.constant 1 : index
    %c0_290 = arith.constant 0 : index
    %c0_291 = arith.constant 0 : index
    %454 = vector.load %arg11[%c1_289, %c0_290, %c0_291] : memref<2x1x32xf32, #tpu.memory_space<vmem>>, vector<1x1x32xf32>
    %455 = vector.shape_cast %454 : vector<1x1x32xf32> to vector<1x32xf32>
    %456 = vector.broadcast %455 : vector<1x32xf32> to vector<16x32xf32>
    %457 = arith.addf %453, %456 : vector<16x32xf32>
    %458 = arith.addf %457, %280 : vector<16x32xf32>
    %c1_292 = arith.constant 1 : index
    %c0_293 = arith.constant 0 : index
    %c0_294 = arith.constant 0 : index
    %459 = vector.load %arg12[%c1_292, %c0_293, %c0_294] : memref<2x1x32xf32, #tpu.memory_space<vmem>>, vector<1x1x32xf32>
    %460 = vector.shape_cast %459 : vector<1x1x32xf32> to vector<1x32xf32>
    %c1_295 = arith.constant 1 : index
    %c0_296 = arith.constant 0 : index
    %c0_297 = arith.constant 0 : index
    %461 = vector.load %arg13[%c1_295, %c0_296, %c0_297] : memref<2x1x32xf32, #tpu.memory_space<vmem>>, vector<1x1x32xf32>
    %462 = vector.shape_cast %461 : vector<1x1x32xf32> to vector<1x32xf32>
    %cst_298 = arith.constant dense<0.000000e+00> : vector<16xf32>
    %463 = vector.multi_reduction <add>, %458, %cst_298 [1] : vector<16x32xf32> to vector<16xf32>
    %464 = vector.shape_cast %463 : vector<16xf32> to vector<16x1xf32>
    %cst_299 = arith.constant 3.200000e+01 : f32
    %465 = vector.broadcast %cst_299 : f32 to vector<16x1xf32>
    %466 = arith.divf %464, %465 : vector<16x1xf32>
    %467 = vector.broadcast %466 : vector<16x1xf32> to vector<16x32xf32>
    %468 = arith.subf %458, %467 : vector<16x32xf32>
    %469 = arith.mulf %468, %468 : vector<16x32xf32>
    %cst_300 = arith.constant dense<0.000000e+00> : vector<16xf32>
    %470 = vector.multi_reduction <add>, %469, %cst_300 [1] : vector<16x32xf32> to vector<16xf32>
    %471 = vector.shape_cast %470 : vector<16xf32> to vector<16x1xf32>
    %cst_301 = arith.constant 3.200000e+01 : f32
    %472 = vector.broadcast %cst_301 : f32 to vector<16x1xf32>
    %473 = arith.divf %471, %472 : vector<16x1xf32>
    %cst_302 = arith.constant 9.99999996E-13 : f32
    %474 = vector.broadcast %cst_302 : f32 to vector<16x1xf32>
    %475 = arith.addf %473, %474 : vector<16x1xf32>
    %476 = math.rsqrt %475 : vector<16x1xf32>
    %477 = vector.broadcast %476 : vector<16x1xf32> to vector<16x32xf32>
    %478 = arith.mulf %468, %477 : vector<16x32xf32>
    %479 = vector.broadcast %460 : vector<1x32xf32> to vector<16x32xf32>
    %480 = arith.mulf %478, %479 : vector<16x32xf32>
    %481 = vector.broadcast %462 : vector<1x32xf32> to vector<16x32xf32>
    %482 = arith.addf %480, %481 : vector<16x32xf32>
    %c1_303 = arith.constant 1 : index
    %c0_304 = arith.constant 0 : index
    %c0_305 = arith.constant 0 : index
    %483 = vector.load %arg14[%c1_303, %c0_304, %c0_305] : memref<2x32x64xf32, #tpu.memory_space<vmem>>, vector<1x32x64xf32>
    %484 = vector.shape_cast %483 : vector<1x32x64xf32> to vector<32x64xf32>
    %cst_306 = arith.constant dense<0.000000e+00> : vector<16x64xf32>
    %485 = tpu.matmul %482, %484, %cst_306 {dimension_numbers = #tpu.dot_dimension_numbers<[1], [0], [0], [1], [0, 0, 1, 1], [], []>} : vector<16x32xf32>, vector<32x64xf32>, vector<16x64xf32> -> vector<16x64xf32>
    %c1_307 = arith.constant 1 : index
    %c0_308 = arith.constant 0 : index
    %c0_309 = arith.constant 0 : index
    %486 = vector.load %arg15[%c1_307, %c0_308, %c0_309] : memref<2x1x64xf32, #tpu.memory_space<vmem>>, vector<1x1x64xf32>
    %487 = vector.shape_cast %486 : vector<1x1x64xf32> to vector<1x64xf32>
    %488 = vector.broadcast %487 : vector<1x64xf32> to vector<16x64xf32>
    %489 = arith.addf %485, %488 : vector<16x64xf32>
    %cst_310 = arith.constant 5.000000e-01 : f32
    %490 = vector.broadcast %cst_310 : f32 to vector<16x64xf32>
    %491 = arith.mulf %490, %489 : vector<16x64xf32>
    %cst_311 = arith.constant 4.471500e-02 : f32
    %492 = vector.broadcast %cst_311 : f32 to vector<16x64xf32>
    %493 = arith.mulf %492, %489 : vector<16x64xf32>
    %494 = arith.mulf %493, %489 : vector<16x64xf32>
    %495 = arith.mulf %494, %489 : vector<16x64xf32>
    %496 = arith.addf %489, %495 : vector<16x64xf32>
    %cst_312 = arith.constant 0.797884583 : f32
    %497 = vector.broadcast %cst_312 : f32 to vector<16x64xf32>
    %498 = arith.mulf %497, %496 : vector<16x64xf32>
    %499 = math.tanh %498 : vector<16x64xf32>
    %cst_313 = arith.constant 1.000000e+00 : f32
    %500 = vector.broadcast %cst_313 : f32 to vector<16x64xf32>
    %501 = arith.addf %500, %499 : vector<16x64xf32>
    %502 = arith.mulf %491, %501 : vector<16x64xf32>
    %c1_314 = arith.constant 1 : index
    %c0_315 = arith.constant 0 : index
    %c0_316 = arith.constant 0 : index
    %503 = vector.load %arg16[%c1_314, %c0_315, %c0_316] : memref<2x64x32xf32, #tpu.memory_space<vmem>>, vector<1x64x32xf32>
    %504 = vector.shape_cast %503 : vector<1x64x32xf32> to vector<64x32xf32>
    %cst_317 = arith.constant dense<0.000000e+00> : vector<16x32xf32>
    %505 = tpu.matmul %502, %504, %cst_317 {dimension_numbers = #tpu.dot_dimension_numbers<[1], [0], [0], [1], [0, 0, 1, 1], [], []>} : vector<16x64xf32>, vector<64x32xf32>, vector<16x32xf32> -> vector<16x32xf32>
    %c1_318 = arith.constant 1 : index
    %c0_319 = arith.constant 0 : index
    %c0_320 = arith.constant 0 : index
    %506 = vector.load %arg17[%c1_318, %c0_319, %c0_320] : memref<2x1x32xf32, #tpu.memory_space<vmem>>, vector<1x1x32xf32>
    %507 = vector.shape_cast %506 : vector<1x1x32xf32> to vector<1x32xf32>
    %508 = vector.broadcast %507 : vector<1x32xf32> to vector<16x32xf32>
    %509 = arith.addf %505, %508 : vector<16x32xf32>
    %510 = arith.addf %509, %482 : vector<16x32xf32>
    %c1_321 = arith.constant 1 : index
    %c0_322 = arith.constant 0 : index
    %c0_323 = arith.constant 0 : index
    %511 = vector.load %arg18[%c1_321, %c0_322, %c0_323] : memref<2x1x32xf32, #tpu.memory_space<vmem>>, vector<1x1x32xf32>
    %512 = vector.shape_cast %511 : vector<1x1x32xf32> to vector<1x32xf32>
    %c1_324 = arith.constant 1 : index
    %c0_325 = arith.constant 0 : index
    %c0_326 = arith.constant 0 : index
    %513 = vector.load %arg19[%c1_324, %c0_325, %c0_326] : memref<2x1x32xf32, #tpu.memory_space<vmem>>, vector<1x1x32xf32>
    %514 = vector.shape_cast %513 : vector<1x1x32xf32> to vector<1x32xf32>
    %cst_327 = arith.constant dense<0.000000e+00> : vector<16xf32>
    %515 = vector.multi_reduction <add>, %510, %cst_327 [1] : vector<16x32xf32> to vector<16xf32>
    %516 = vector.shape_cast %515 : vector<16xf32> to vector<16x1xf32>
    %cst_328 = arith.constant 3.200000e+01 : f32
    %517 = vector.broadcast %cst_328 : f32 to vector<16x1xf32>
    %518 = arith.divf %516, %517 : vector<16x1xf32>
    %519 = vector.broadcast %518 : vector<16x1xf32> to vector<16x32xf32>
    %520 = arith.subf %510, %519 : vector<16x32xf32>
    %521 = arith.mulf %520, %520 : vector<16x32xf32>
    %cst_329 = arith.constant dense<0.000000e+00> : vector<16xf32>
    %522 = vector.multi_reduction <add>, %521, %cst_329 [1] : vector<16x32xf32> to vector<16xf32>
    %523 = vector.shape_cast %522 : vector<16xf32> to vector<16x1xf32>
    %cst_330 = arith.constant 3.200000e+01 : f32
    %524 = vector.broadcast %cst_330 : f32 to vector<16x1xf32>
    %525 = arith.divf %523, %524 : vector<16x1xf32>
    %cst_331 = arith.constant 9.99999996E-13 : f32
    %526 = vector.broadcast %cst_331 : f32 to vector<16x1xf32>
    %527 = arith.addf %525, %526 : vector<16x1xf32>
    %528 = math.rsqrt %527 : vector<16x1xf32>
    %529 = vector.broadcast %528 : vector<16x1xf32> to vector<16x32xf32>
    %530 = arith.mulf %520, %529 : vector<16x32xf32>
    %531 = vector.broadcast %512 : vector<1x32xf32> to vector<16x32xf32>
    %532 = arith.mulf %530, %531 : vector<16x32xf32>
    %533 = vector.broadcast %514 : vector<1x32xf32> to vector<16x32xf32>
    %534 = arith.addf %532, %533 : vector<16x32xf32>
    %535 = vector.shape_cast %534 : vector<16x32xf32> to vector<2x8x32xf32>
    %536 = vector.extract_strided_slice %535 {offsets = [0, 0, 0], sizes = [2, 1, 32], strides = [1, 1, 1]} : vector<2x8x32xf32> to vector<2x1x32xf32>
    %537 = vector.shape_cast %536 : vector<2x1x32xf32> to vector<2x32xf32>
    %c0_332 = arith.constant 0 : index
    %c0_333 = arith.constant 0 : index
    %538 = vector.load %arg20[%c0_332, %c0_333] : memref<32x32xf32, #tpu.memory_space<vmem>>, vector<32x32xf32>
    %cst_334 = arith.constant dense<0.000000e+00> : vector<2x32xf32>
    %539 = tpu.matmul %537, %538, %cst_334 {dimension_numbers = #tpu.dot_dimension_numbers<[1], [0], [0], [1], [0, 0, 1, 1], [], []>} : vector<2x32xf32>, vector<32x32xf32>, vector<2x32xf32> -> vector<2x32xf32>
    %c0_335 = arith.constant 0 : index
    %c0_336 = arith.constant 0 : index
    %540 = vector.load %arg21[%c0_335, %c0_336] : memref<1x32xf32, #tpu.memory_space<vmem>>, vector<1x32xf32>
    %541 = vector.broadcast %540 : vector<1x32xf32> to vector<2x32xf32>
    %542 = arith.addf %539, %541 : vector<2x32xf32>
    %543 = math.tanh %542 : vector<2x32xf32>
    %c0_337 = arith.constant 0 : index
    %c0_338 = arith.constant 0 : index
    %544 = vector.load %arg22[%c0_337, %c0_338] : memref<2x32xf32, #tpu.memory_space<vmem>>, vector<2x32xf32>
    tpu.vector_store %arg22[%c0_337, %c0_338], %543 {strides = array<i32>} : memref<2x32xf32, #tpu.memory_space<vmem>>, vector<2x32xf32>,
    return
  }
}

</mosaic_0001>

<llo_original>
// kernel: text_encoder_forward.1
$region0: #{text_encoder_forward.1}
  #allocation0 [shape = 'u32[]', space=smem, size = 0x4, offset = 0x4, fixed_abs, tag = 'smem constant byte address 0x4 - core index']
  #allocation1 [shape = 'u32[72,128]{1,0:T(1,128)}', space=vmem, size = 0x9000, scoped, tag = 'internal scratch']
  %s0 = inlined_call_operand.vmem [shape: f32[16,32], index: 0, kind: input, shape index: {}]
  %s1 = inlined_call_operand.vmem [shape: f32[2,8], index: 1, kind: input, shape index: {}]
  %s2 = inlined_call_operand.vmem [shape: f32[1,32], index: 2, kind: input, shape index: {}]
  %s3 = inlined_call_operand.vmem [shape: f32[1,32], index: 3, kind: input, shape index: {}]
  %s4 = inlined_call_operand.vmem [shape: f32[8,32,8], index: 4, kind: input, shape index: {}]
  %s5 = inlined_call_operand.vmem [shape: f32[8,1,8], index: 5, kind: input, shape index: {}]
  %s6 = inlined_call_operand.vmem [shape: f32[8,32,8], index: 6, kind: input, shape index: {}]
  %s7 = inlined_call_operand.vmem [shape: f32[8,1,8], index: 7, kind: input, shape index: {}]
  %s8 = inlined_call_operand.vmem [shape: f32[8,32,8], index: 8, kind: input, shape index: {}]
  %s9 = inlined_call_operand.vmem [shape: f32[8,1,8], index: 9, kind: input, shape index: {}]
  %s10 = inlined_call_operand.vmem [shape: f32[8,8,32], index: 10, kind: input, shape index: {}]
  %s11 = inlined_call_operand.vmem [shape: f32[2,1,32], index: 11, kind: input, shape index: {}]
  %s12 = inlined_call_operand.vmem [shape: f32[2,1,32], index: 12, kind: input, shape index: {}]
  %s13 = inlined_call_operand.vmem [shape: f32[2,1,32], index: 13, kind: input, shape index: {}]
  %s14 = inlined_call_operand.vmem [shape: f32[2,32,64], index: 14, kind: input, shape index: {}]
  %s15 = inlined_call_operand.vmem [shape: f32[2,1,64], index: 15, kind: input, shape index: {}]
  %s16 = inlined_call_operand.vmem [shape: f32[2,64,32], index: 16, kind: input, shape index: {}]
  %s17 = inlined_call_operand.vmem [shape: f32[2,1,32], index: 17, kind: input, shape index: {}]
  %s18 = inlined_call_operand.vmem [shape: f32[2,1,32], index: 18, kind: input, shape index: {}]
  %s19 = inlined_call_operand.vmem [shape: f32[2,1,32], index: 19, kind: input, shape index: {}]
  %s20 = inlined_call_operand.vmem [shape: f32[32,32], index: 20, kind: input, shape index: {}]
  %s21 = inlined_call_operand.vmem [shape: f32[1,32], index: 21, kind: input, shape index: {}]
  %s22 = inlined_call_operand.hbm [shape: f32[2,32], index: 22, kind: output, shape index: {}]
  %s23 = sld [smem:[#allocation0]]
  $region98: #{text_encoder_forward.1} parent=0
    _
  %s25 = ssub.s32 1, %s23
  %s26 = scalar_select 0, %s25, %s23
  $region1: #{text_encoder_forward.1} parent=0
    #allocation2 [shape = 'u8[1024]{0}', space=vmem, size = 0x400, scoped, tag = 'output window, operand 0, single buffered']
    #allocation3 [shape = 's32[1]{0}', space=sflag, size = 0x4, scoped, tag = 'scoped memory for text_encoder_forward.1']
    %27 = vsyncpa [#allocation3], 0
    // Predicated region
    $region2: #{text_encoder_forward.1} parent=1 // pred_check
      _
    $region3: #{text_encoder_forward.1} parent=1 // pred_check_branch
      %29 = sbr.rel (0) target = $region5
    $region4: #{text_encoder_forward.1} parent=1 // pred_region
      _
    $region5: #{text_encoder_forward.1} parent=1 // pred_fallthru
      _
    // Predicated region
    $region6: #{text_encoder_forward.1} parent=1 // pred_check
      _
    $region7: #{text_encoder_forward.1} parent=1 // pred_check_branch
      %31 = sbr.rel (0) target = $region9
    $region8: #{text_encoder_forward.1} parent=1 // pred_region
      _
    $region9: #{text_encoder_forward.1} parent=1 // pred_fallthru
      _
    // Predicated region
    $region10: #{text_encoder_forward.1} parent=1 // pred_check
      _
    $region11: #{text_encoder_forward.1} parent=1 // pred_check_branch
      %33 = sbr.rel (0) target = $region13
    $region12: #{text_encoder_forward.1} parent=1 // pred_region
      _
    $region13: #{text_encoder_forward.1} parent=1 // pred_fallthru
      _
    // Predicated region
    $region14: #{text_encoder_forward.1} parent=1 // pred_check
      _
    $region15: #{text_encoder_forward.1} parent=1 // pred_check_branch
      %35 = sbr.rel (0) target = $region17
    $region16: #{text_encoder_forward.1} parent=1 // pred_region
      _
    $region17: #{text_encoder_forward.1} parent=1 // pred_fallthru
      _
    // Predicated region
    $region18: #{text_encoder_forward.1} parent=1 // pred_check
      _
    $region19: #{text_encoder_forward.1} parent=1 // pred_check_branch
      %37 = sbr.rel (0) target = $region21
    $region20: #{text_encoder_forward.1} parent=1 // pred_region
      _
    $region21: #{text_encoder_forward.1} parent=1 // pred_fallthru
      _
    // Predicated region
    $region22: #{text_encoder_forward.1} parent=1 // pred_check
      _
    $region23: #{text_encoder_forward.1} parent=1 // pred_check_branch
      %39 = sbr.rel (0) target = $region25
    $region24: #{text_encoder_forward.1} parent=1 // pred_region
      _
    $region25: #{text_encoder_forward.1} parent=1 // pred_fallthru
      _
    // Predicated region
    $region26: #{text_encoder_forward.1} parent=1 // pred_check
      _
    $region27: #{text_encoder_forward.1} parent=1 // pred_check_branch
      %41 = sbr.rel (0) target = $region29
    $region28: #{text_encoder_forward.1} parent=1 // pred_region
      _
    $region29: #{text_encoder_forward.1} parent=1 // pred_fallthru
      _
    // Predicated region
    $region30: #{text_encoder_forward.1} parent=1 // pred_check
      _
    $region31: #{text_encoder_forward.1} parent=1 // pred_check_branch
      %43 = sbr.rel (0) target = $region33
    $region32: #{text_encoder_forward.1} parent=1 // pred_region
      _
    $region33: #{text_encoder_forward.1} parent=1 // pred_fallthru
      _
    // Predicated region
    $region34: #{text_encoder_forward.1} parent=1 // pred_check
      _
    $region35: #{text_encoder_forward.1} parent=1 // pred_check_branch
      %45 = sbr.rel (0) target = $region37
    $region36: #{text_encoder_forward.1} parent=1 // pred_region
      _
    $region37: #{text_encoder_forward.1} parent=1 // pred_fallthru
      _
    // Predicated region
    $region38: #{text_encoder_forward.1} parent=1 // pred_check
      _
    $region39: #{text_encoder_forward.1} parent=1 // pred_check_branch
      %47 = sbr.rel (0) target = $region41
    $region40: #{text_encoder_forward.1} parent=1 // pred_region
      _
    $region41: #{text_encoder_forward.1} parent=1 // pred_fallthru
      _
    // Predicated region
    $region42: #{text_encoder_forward.1} parent=1 // pred_check
      _
    $region43: #{text_encoder_forward.1} parent=1 // pred_check_branch
      %49 = sbr.rel (0) target = $region45
    $region44: #{text_encoder_forward.1} parent=1 // pred_region
      _
    $region45: #{text_encoder_forward.1} parent=1 // pred_fallthru
      _
    // Predicated region
    $region46: #{text_encoder_forward.1} parent=1 // pred_check
      _
    $region47: #{text_encoder_forward.1} parent=1 // pred_check_branch
      %51 = sbr.rel (0) target = $region49
    $region48: #{text_encoder_forward.1} parent=1 // pred_region
      _
    $region49: #{text_encoder_forward.1} parent=1 // pred_fallthru
      _
    // Predicated region
    $region50: #{text_encoder_forward.1} parent=1 // pred_check
      _
    $region51: #{text_encoder_forward.1} parent=1 // pred_check_branch
      %53 = sbr.rel (0) target = $region53
    $region52: #{text_encoder_forward.1} parent=1 // pred_region
      _
    $region53: #{text_encoder_forward.1} parent=1 // pred_fallthru
      _
    // Predicated region
    $region54: #{text_encoder_forward.1} parent=1 // pred_check
      _
    $region55: #{text_encoder_forward.1} parent=1 // pred_check_branch
      %55 = sbr.rel (0) target = $region57
    $region56: #{text_encoder_forward.1} parent=1 // pred_region
      _
    $region57: #{text_encoder_forward.1} parent=1 // pred_fallthru
      _
    // Predicated region
    $region58: #{text_encoder_forward.1} parent=1 // pred_check
      _
    $region59: #{text_encoder_forward.1} parent=1 // pred_check_branch
      %57 = sbr.rel (0) target = $region61
    $region60: #{text_encoder_forward.1} parent=1 // pred_region
      _
    $region61: #{text_encoder_forward.1} parent=1 // pred_fallthru
      _
    // Predicated region
    $region62: #{text_encoder_forward.1} parent=1 // pred_check
      _
    $region63: #{text_encoder_forward.1} parent=1 // pred_check_branch
      %59 = sbr.rel (0) target = $region65
    $region64: #{text_encoder_forward.1} parent=1 // pred_region
      _
    $region65: #{text_encoder_forward.1} parent=1 // pred_fallthru
      _
    // Predicated region
    $region66: #{text_encoder_forward.1} parent=1 // pred_check
      _
    $region67: #{text_encoder_forward.1} parent=1 // pred_check_branch
      %61 = sbr.rel (0) target = $region69
    $region68: #{text_encoder_forward.1} parent=1 // pred_region
      _
    $region69: #{text_encoder_forward.1} parent=1 // pred_fallthru
      _
    // Predicated region
    $region70: #{text_encoder_forward.1} parent=1 // pred_check
      _
    $region71: #{text_encoder_forward.1} parent=1 // pred_check_branch
      %63 = sbr.rel (0) target = $region73
    $region72: #{text_encoder_forward.1} parent=1 // pred_region
      _
    $region73: #{text_encoder_forward.1} parent=1 // pred_fallthru
      _
    // Predicated region
    $region74: #{text_encoder_forward.1} parent=1 // pred_check
      _
    $region75: #{text_encoder_forward.1} parent=1 // pred_check_branch
      %65 = sbr.rel (0) target = $region77
    $region76: #{text_encoder_forward.1} parent=1 // pred_region
      _
    $region77: #{text_encoder_forward.1} parent=1 // pred_fallthru
      _
    // Predicated region
    $region78: #{text_encoder_forward.1} parent=1 // pred_check
      _
    $region79: #{text_encoder_forward.1} parent=1 // pred_check_branch
      %67 = sbr.rel (0) target = $region81
    $region80: #{text_encoder_forward.1} parent=1 // pred_region
      _
    $region81: #{text_encoder_forward.1} parent=1 // pred_fallthru
      _
    // Predicated region
    $region82: #{text_encoder_forward.1} parent=1 // pred_check
      _
    $region83: #{text_encoder_forward.1} parent=1 // pred_check_branch
      %69 = sbr.rel (0) target = $region85
    $region84: #{text_encoder_forward.1} parent=1 // pred_region
      _
    $region85: #{text_encoder_forward.1} parent=1 // pred_fallthru
      _
    // Predicated region
    $region86: #{text_encoder_forward.1} parent=1 // pred_check
      _
    $region87: #{text_encoder_forward.1} parent=1 // pred_check_branch
      %71 = sbr.rel (0) target = $region89
    $region88: #{text_encoder_forward.1} parent=1 // pred_region
      _
    $region89: #{text_encoder_forward.1} parent=1 // pred_fallthru
      _
    %v72 = vld [vmem:[%s0] sm:$0xff]
    %v73 = vld [vmem:[%s0 + $0x8] sm:$0xff]
    %v74 = vld [vmem:[%s2] sm:$0x1]
    %v75 = vld [vmem:[%s3] sm:$0x1]
    %vm76 = vcmask 261120
    %v77 = vsel %vm76, %v72, 0.0
    %78 = vadd.xlane.f32.xlu0 %v77
    %v79 = vpop.xlane.xlu0 %78
    %v80 = vsel %vm76, %v73, 0.0
    %81 = vadd.xlane.f32.xlu0 %v80
    %v82 = vpop.xlane.xlu0 %81
    %v83 = vrcp.pop 32.0
    %v84 = vmul.f32 32.0, %v83
    %v85 = vsub.f32 1.0, %v84
    %v86 = vmul.f32 %v83, %v85
    %v87 = vadd.f32 %v83, %v86
    %vm88 = vweird.f32 %v83
    %v89 = vsel %vm88, %v83, %v87
    %v90 = vmul.f32 %v79, %v89
    %v91 = vmul.f32 %v82, %v89
    %v92 = vsub.f32 %v72, %v90
    %v93 = vsub.f32 %v73, %v91
    %v94 = vmul.f32 %v92, %v92
    %v95 = vmul.f32 %v93, %v93
    %v96 = vsel %vm76, %v94, 0.0
    %97 = vadd.xlane.f32.xlu0 %v96
    %v98 = vpop.xlane.xlu0 %97
    %v99 = vsel %vm76, %v95, 0.0
    %100 = vadd.xlane.f32.xlu0 %v99
    %v101 = vpop.xlane.xlu0 %100
    %v102 = vmul.f32 %v98, %v89
    %v103 = vmul.f32 %v101, %v89
    %v104 = vadd.f32 %v102, 1e-12
    %v105 = vadd.f32 %v103, 1e-12
    %v106 = vrsqrt.pop %v104
    %v107 = vmul.f32 %v106, %v104
    %v108 = vmul.f32 %v107, %v106
    %v109 = vmul.f32 0.5, %v108
    %v110 = vsub.f32 1.5, %v109
    %v111 = vmul.f32 %v106, %v110
    %vm112 = vweird.f32 %v104
    %vm113 = vweird.f32 %v106
    %vm114 = vmor %vm112, %vm113
    %v115 = vsel %vm114, %v106, %v111
    %v116 = vrsqrt.pop %v105
    %v117 = vmul.f32 %v116, %v105
    %v118 = vmul.f32 %v117, %v116
    %v119 = vmul.f32 0.5, %v118
    %v120 = vsub.f32 1.5, %v119
    %v121 = vmul.f32 %v116, %v120
    %vm122 = vweird.f32 %v105
    %vm123 = vweird.f32 %v116
    %vm124 = vmor %vm122, %vm123
    %v125 = vsel %vm124, %v116, %v121
    %v126 = vmul.f32 %v92, %v115
    %v127 = vmul.f32 %v93, %v125
    %v129 = vperm.slane %v74, 0
    %v131 = vmul.f32 %v126, %v129
    %v132 = vmul.f32 %v127, %v129
    %v134 = vperm.slane %v75, 0
    %v136 = vadd.f32 %v131, %v134
    %v137 = vadd.f32 %v132, %v134
    %v138 = vld [vmem:[%s1] sm:$0x3]
    %v140 = vrot.slane %v138, 1
    %v141 = vperm.slane %v138, 0
    %v142 = vperm.slane %v140, 0
    %v145 = vld [vmem:[%s4] sm:$0xff]
    %v146 = vld [vmem:[%s4 + $0x8] sm:$0xff]
    %v147 = vld [vmem:[%s4 + $0x10] sm:$0xff]
    %v148 = vld [vmem:[%s4 + $0x18] sm:$0xff]
    %v149 = vld [vmem:[%s5] sm:$0x1]
    %v151 = vperm.slane %v149, 0
    %v154 = vsel %vm76, %v136, 0
    %v157 = vsel %vm76, %v137, 0
    %159 = vmatpush.msra.mxu0 0.0
    %160 = vmatpush.msra.mxu0 0.0
    %161 = vmatpush.msra.mxu0 0.0
    %162 = vmatpush.msra.mxu0 0.0
    %163 = vmatpush.msra.mxu0 0.0
    %164 = vmatpush.msra.mxu0 0.0
    %165 = vmatpush.msra.mxu0 0.0
    %166 = vmatpush.msra.mxu0 0.0
    %167 = vmatpush.msra.mxu0 0.0
    %168 = vmatpush.msra.mxu0 0.0
    %169 = vmatpush.msra.mxu0 0.0
    %170 = vmatpush.msra.mxu0 0.0
    %171 = vmatpush.msra.mxu0 %v148
    %172 = vmatpush.msra.mxu0 %v147
    %173 = vmatpush.msra.mxu0 %v146
    %174 = vmatpush.msra.mxu0 %v145
    %175 = vmatmul.f32.gmra.mxu0 %v154
    %v176 = vpop.f32.mrf.mxu0
    %v177 = vadd.f32 %v151, %v176
    %178 = vmatmul.f32.gmra.mxu0 %v157
    %v179 = vpop.f32.mrf.mxu0
    %v180 = vadd.f32 %v151, %v179
    %181 = vdwg.mxu0
    %v182 = vld [vmem:[%s6] sm:$0xff]
    %v183 = vld [vmem:[%s6 + $0x8] sm:$0xff]
    %v184 = vld [vmem:[%s6 + $0x10] sm:$0xff]
    %v185 = vld [vmem:[%s6 + $0x18] sm:$0xff]
    %v186 = vld [vmem:[%s7] sm:$0x1]
    %v188 = vperm.slane %v186, 0
    %190 = vmatpush.msra.mxu0 0.0
    %191 = vmatpush.msra.mxu0 0.0
    %192 = vmatpush.msra.mxu0 0.0
    %193 = vmatpush.msra.mxu0 0.0
    %194 = vmatpush.msra.mxu0 0.0
    %195 = vmatpush.msra.mxu0 0.0
    %196 = vmatpush.msra.mxu0 0.0
    %197 = vmatpush.msra.mxu0 0.0
    %198 = vmatpush.msra.mxu0 0.0
    %199 = vmatpush.msra.mxu0 0.0
    %200 = vmatpush.msra.mxu0 0.0
    %201 = vmatpush.msra.mxu0 0.0
    %202 = vmatpush.msra.mxu0 %v185
    %203 = vmatpush.msra.mxu0 %v184
    %204 = vmatpush.msra.mxu0 %v183
    %205 = vmatpush.msra.mxu0 %v182
    %206 = vmatmul.f32.gmra.mxu0 %v154
    %v207 = vpop.f32.mrf.mxu0
    %v208 = vadd.f32 %v188, %v207
    %209 = vmatmul.f32.gmra.mxu0 %v157
    %v210 = vpop.f32.mrf.mxu0
    %v211 = vadd.f32 %v188, %v210
    %212 = vdwg.mxu0
    %v213 = vld [vmem:[%s8] sm:$0xff]
    %v214 = vld [vmem:[%s8 + $0x8] sm:$0xff]
    %v215 = vld [vmem:[%s8 + $0x10] sm:$0xff]
    %v216 = vld [vmem:[%s8 + $0x18] sm:$0xff]
    %v217 = vld [vmem:[%s9] sm:$0x1]
    %v219 = vperm.slane %v217, 0
    %221 = vmatpush.msra.mxu0 0.0
    %222 = vmatpush.msra.mxu0 0.0
    %223 = vmatpush.msra.mxu0 0.0
    %224 = vmatpush.msra.mxu0 0.0
    %225 = vmatpush.msra.mxu0 0.0
    %226 = vmatpush.msra.mxu0 0.0
    %227 = vmatpush.msra.mxu0 0.0
    %228 = vmatpush.msra.mxu0 0.0
    %229 = vmatpush.msra.mxu0 0.0
    %230 = vmatpush.msra.mxu0 0.0
    %231 = vmatpush.msra.mxu0 0.0
    %232 = vmatpush.msra.mxu0 0.0
    %233 = vmatpush.msra.mxu0 %v216
    %234 = vmatpush.msra.mxu0 %v215
    %235 = vmatpush.msra.mxu0 %v214
    %236 = vmatpush.msra.mxu0 %v213
    %237 = vmatmul.f32.gmra.mxu0 %v154
    %v238 = vpop.f32.mrf.mxu0
    %v239 = vadd.f32 %v219, %v238
    %240 = vmatmul.f32.gmra.mxu0 %v157
    %v241 = vpop.f32.mrf.mxu0
    %v242 = vadd.f32 %v219, %v241
    %243 = vdwg.mxu0
    %vm244 = vcmask 64512
    %v246 = vsel %vm244, %v177, 0
    %v249 = vsel %vm244, %v208, 0
    %251 = vmatpush.xpose.msra.mxu0 0.0
    %252 = vmatpush.xpose.msra.mxu0 0.0
    %253 = vmatpush.xpose.msra.mxu0 0.0
    %254 = vmatpush.xpose.msra.mxu0 0.0
    %255 = vmatpush.xpose.msra.mxu0 0.0
    %256 = vmatpush.xpose.msra.mxu0 0.0
    %257 = vmatpush.xpose.msra.mxu0 0.0
    %258 = vmatpush.xpose.msra.mxu0 0.0
    %259 = vmatpush.xpose.msra.mxu0 0.0
    %260 = vmatpush.xpose.msra.mxu0 0.0
    %261 = vmatpush.xpose.msra.mxu0 0.0
    %262 = vmatpush.xpose.msra.mxu0 0.0
    %263 = vmatpush.xpose.msra.mxu0 0.0
    %264 = vmatpush.xpose.msra.mxu0 0.0
    %265 = vmatpush.xpose.msra.mxu0 0.0
    %266 = vmatpush.xpose.msra.mxu0 %v249
    %267 = vmatmul.f32.gmra.mxu0 %v246
    %v268 = vpop.f32.mrf.mxu0
    %v269 = vadd.f32 0.0, %v268
    %270 = vdwg.mxu0
    %v272 = vsel %vm244, %v180, 0
    %v275 = vsel %vm244, %v211, 0
    %277 = vmatpush.xpose.msra.mxu0 0.0
    %278 = vmatpush.xpose.msra.mxu0 0.0
    %279 = vmatpush.xpose.msra.mxu0 0.0
    %280 = vmatpush.xpose.msra.mxu0 0.0
    %281 = vmatpush.xpose.msra.mxu0 0.0
    %282 = vmatpush.xpose.msra.mxu0 0.0
    %283 = vmatpush.xpose.msra.mxu0 0.0
    %284 = vmatpush.xpose.msra.mxu0 0.0
    %285 = vmatpush.xpose.msra.mxu0 0.0
    %286 = vmatpush.xpose.msra.mxu0 0.0
    %287 = vmatpush.xpose.msra.mxu0 0.0
    %288 = vmatpush.xpose.msra.mxu0 0.0
    %289 = vmatpush.xpose.msra.mxu0 0.0
    %290 = vmatpush.xpose.msra.mxu0 0.0
    %291 = vmatpush.xpose.msra.mxu0 0.0
    %292 = vmatpush.xpose.msra.mxu0 %v275
    %293 = vmatmul.f32.gmra.mxu0 %v272
    %v294 = vpop.f32.mrf.mxu0
    %v295 = vadd.f32 0.0, %v294
    %296 = vdwg.mxu0
    %v297 = vmul.f32 %v269, 0.35355338
    %v298 = vmul.f32 %v295, 0.35355338
    %v299 = vadd.f32 %v297, %v141
    %v300 = vadd.f32 %v298, %v142
    %v301 = vsel %vm244, %v299, -inf
    %302 = vmax.xlane.f32.xlu0 %v301
    %v303 = vpop.xlane.xlu0 %302
    %v304 = vsel %vm244, %v300, -inf
    %305 = vmax.xlane.f32.xlu0 %v304
    %v306 = vpop.xlane.xlu0 %305
    %v307 = vsub.f32 %v299, %v303
    %v308 = vsub.f32 %v300, %v306
    %v309 = vmul.f32 %v307, 1.442695
    %v310 = vpow.pop %v309
    %v311 = vmul.f32 %v308, 1.442695
    %v312 = vpow.pop %v311
    %v313 = vsel %vm244, %v310, 0.0
    %314 = vadd.xlane.f32.xlu0 %v313
    %v315 = vpop.xlane.xlu0 %314
    %v316 = vsel %vm244, %v312, 0.0
    %317 = vadd.xlane.f32.xlu0 %v316
    %v318 = vpop.xlane.xlu0 %317
    %v319 = vrcp.pop %v315
    %v320 = vmul.f32 %v315, %v319
    %v321 = vsub.f32 1.0, %v320
    %v322 = vmul.f32 %v319, %v321
    %v323 = vadd.f32 %v319, %v322
    %vm324 = vweird.f32 %v315
    %vm325 = vweird.f32 %v319
    %vm326 = vmor %vm324, %vm325
    %v327 = vsel %vm326, %v319, %v323
    %v328 = vand.u32 2147483647, %v315
    %vm329 = vcmp.eq.f32.partialorder %v328, 8.507059e+37
    %v330 = vand.u32 %v315, 2147483648
    %v331 = vor.u32 1.1754944e-38, %v330
    %v332 = vsel %vm329, %v331, %v327
    %v333 = vmul.f32 %v310, %v332
    %v334 = vrcp.pop %v318
    %v335 = vmul.f32 %v318, %v334
    %v336 = vsub.f32 1.0, %v335
    %v337 = vmul.f32 %v334, %v336
    %v338 = vadd.f32 %v334, %v337
    %vm339 = vweird.f32 %v318
    %vm340 = vweird.f32 %v334
    %vm341 = vmor %vm339, %vm340
    %v342 = vsel %vm341, %v334, %v338
    %v343 = vand.u32 2147483647, %v318
    %vm344 = vcmp.eq.f32.partialorder %v343, 8.507059e+37
    %v345 = vand.u32 %v318, 2147483648
    %v346 = vor.u32 1.1754944e-38, %v345
    %v347 = vsel %vm344, %v346, %v342
    %v348 = vmul.f32 %v312, %v347
    %v350 = vsel %vm244, %v333, 0
    %352 = vmatpush.msra.mxu0 0.0
    %353 = vmatpush.msra.mxu0 0.0
    %354 = vmatpush.msra.mxu0 0.0
    %355 = vmatpush.msra.mxu0 0.0
    %356 = vmatpush.msra.mxu0 0.0
    %357 = vmatpush.msra.mxu0 0.0
    %358 = vmatpush.msra.mxu0 0.0
    %359 = vmatpush.msra.mxu0 0.0
    %360 = vmatpush.msra.mxu0 0.0
    %361 = vmatpush.msra.mxu0 0.0
    %362 = vmatpush.msra.mxu0 0.0
    %363 = vmatpush.msra.mxu0 0.0
    %364 = vmatpush.msra.mxu0 0.0
    %365 = vmatpush.msra.mxu0 0.0
    %366 = vmatpush.msra.mxu0 0.0
    %367 = vmatpush.msra.mxu0 %v239
    %368 = vmatmul.f32.gmra.mxu0 %v350
    %v369 = vpop.f32.mrf.mxu0
    %v370 = vadd.f32 0.0, %v369
    %371 = vdwg.mxu0
    %v373 = vsel %vm244, %v348, 0
    %375 = vmatpush.msra.mxu0 0.0
    %376 = vmatpush.msra.mxu0 0.0
    %377 = vmatpush.msra.mxu0 0.0
    %378 = vmatpush.msra.mxu0 0.0
    %379 = vmatpush.msra.mxu0 0.0
    %380 = vmatpush.msra.mxu0 0.0
    %381 = vmatpush.msra.mxu0 0.0
    %382 = vmatpush.msra.mxu0 0.0
    %383 = vmatpush.msra.mxu0 0.0
    %384 = vmatpush.msra.mxu0 0.0
    %385 = vmatpush.msra.mxu0 0.0
    %386 = vmatpush.msra.mxu0 0.0
    %387 = vmatpush.msra.mxu0 0.0
    %388 = vmatpush.msra.mxu0 0.0
    %389 = vmatpush.msra.mxu0 0.0
    %390 = vmatpush.msra.mxu0 %v242
    %391 = vmatmul.f32.gmra.mxu0 %v373
    %v392 = vpop.f32.mrf.mxu0
    %v393 = vadd.f32 0.0, %v392
    %394 = vdwg.mxu0
    %v395 = vld [vmem:[%s10] sm:$0xff]
    %s396 = scalar_lea.vmem %s4, 32
    %v397 = vld [vmem:[%s396] sm:$0xff]
    %v398 = vld [vmem:[%s396 + $0x8] sm:$0xff]
    %v399 = vld [vmem:[%s396 + $0x10] sm:$0xff]
    %v400 = vld [vmem:[%s396 + $0x18] sm:$0xff]
    %s401 = scalar_lea.vmem %s5, 1
    %v402 = vld [vmem:[%s401] sm:$0x1]
    %v404 = vperm.slane %v402, 0
    %406 = vmatpush.msra.mxu0 0.0
    %407 = vmatpush.msra.mxu0 0.0
    %408 = vmatpush.msra.mxu0 0.0
    %409 = vmatpush.msra.mxu0 0.0
    %410 = vmatpush.msra.mxu0 0.0
    %411 = vmatpush.msra.mxu0 0.0
    %412 = vmatpush.msra.mxu0 0.0
    %413 = vmatpush.msra.mxu0 0.0
    %414 = vmatpush.msra.mxu0 0.0
    %415 = vmatpush.msra.mxu0 0.0
    %416 = vmatpush.msra.mxu0 0.0
    %417 = vmatpush.msra.mxu0 0.0
    %418 = vmatpush.msra.mxu0 %v400
    %419 = vmatpush.msra.mxu0 %v399
    %420 = vmatpush.msra.mxu0 %v398
    %421 = vmatpush.msra.mxu0 %v397
    %422 = vmatmul.f32.gmra.mxu0 %v154
    %v423 = vpop.f32.mrf.mxu0
    %v424 = vadd.f32 %v404, %v423
    %425 = vmatmul.f32.gmra.mxu0 %v157
    %v426 = vpop.f32.mrf.mxu0
    %v427 = vadd.f32 %v404, %v426
    %428 = vdwg.mxu0
    %s429 = scalar_lea.vmem %s6, 32
    %v430 = vld [vmem:[%s429] sm:$0xff]
    %v431 = vld [vmem:[%s429 + $0x8] sm:$0xff]
    %v432 = vld [vmem:[%s429 + $0x10] sm:$0xff]
    %v433 = vld [vmem:[%s429 + $0x18] sm:$0xff]
    %s434 = scalar_lea.vmem %s7, 1
    %v435 = vld [vmem:[%s434] sm:$0x1]
    %v437 = vperm.slane %v435, 0
    %439 = vmatpush.msra.mxu0 0.0
    %440 = vmatpush.msra.mxu0 0.0
    %441 = vmatpush.msra.mxu0 0.0
    %442 = vmatpush.msra.mxu0 0.0
    %443 = vmatpush.msra.mxu0 0.0
    %444 = vmatpush.msra.mxu0 0.0
    %445 = vmatpush.msra.mxu0 0.0
    %446 = vmatpush.msra.mxu0 0.0
    %447 = vmatpush.msra.mxu0 0.0
    %448 = vmatpush.msra.mxu0 0.0
    %449 = vmatpush.msra.mxu0 0.0
    %450 = vmatpush.msra.mxu0 0.0
    %451 = vmatpush.msra.mxu0 %v433
    %452 = vmatpush.msra.mxu0 %v432
    %453 = vmatpush.msra.mxu0 %v431
    %454 = vmatpush.msra.mxu0 %v430
    %455 = vmatmul.f32.gmra.mxu0 %v154
    %v456 = vpop.f32.mrf.mxu0
    %v457 = vadd.f32 %v437, %v456
    %458 = vmatmul.f32.gmra.mxu0 %v157
    %v459 = vpop.f32.mrf.mxu0
    %v460 = vadd.f32 %v437, %v459
    %461 = vdwg.mxu0
    %s462 = scalar_lea.vmem %s8, 32
    %v463 = vld [vmem:[%s462] sm:$0xff]
    %v464 = vld [vmem:[%s462 + $0x8] sm:$0xff]
    %v465 = vld [vmem:[%s462 + $0x10] sm:$0xff]
    %v466 = vld [vmem:[%s462 + $0x18] sm:$0xff]
    %s467 = scalar_lea.vmem %s9, 1
    %v468 = vld [vmem:[%s467] sm:$0x1]
    %v470 = vperm.slane %v468, 0
    %472 = vmatpush.msra.mxu0 0.0
    %473 = vmatpush.msra.mxu0 0.0
    %474 = vmatpush.msra.mxu0 0.0
    %475 = vmatpush.msra.mxu0 0.0
    %476 = vmatpush.msra.mxu0 0.0
    %477 = vmatpush.msra.mxu0 0.0
    %478 = vmatpush.msra.mxu0 0.0
    %479 = vmatpush.msra.mxu0 0.0
    %480 = vmatpush.msra.mxu0 0.0
    %481 = vmatpush.msra.mxu0 0.0
    %482 = vmatpush.msra.mxu0 0.0
    %483 = vmatpush.msra.mxu0 0.0
    %484 = vmatpush.msra.mxu0 %v466
    %485 = vmatpush.msra.mxu0 %v465
    %486 = vmatpush.msra.mxu0 %v464
    %487 = vmatpush.msra.mxu0 %v463
    %488 = vmatmul.f32.gmra.mxu0 %v154
    %v489 = vpop.f32.mrf.mxu0
    %v490 = vadd.f32 %v470, %v489
    %491 = vmatmul.f32.gmra.mxu0 %v157
    %v492 = vpop.f32.mrf.mxu0
    %v493 = vadd.f32 %v470, %v492
    %494 = vdwg.mxu0
    %v496 = vsel %vm244, %v424, 0
    %v499 = vsel %vm244, %v457, 0
    %501 = vmatpush.xpose.msra.mxu0 0.0
    %502 = vmatpush.xpose.msra.mxu0 0.0
    %503 = vmatpush.xpose.msra.mxu0 0.0
    %504 = vmatpush.xpose.msra.mxu0 0.0
    %505 = vmatpush.xpose.msra.mxu0 0.0
    %506 = vmatpush.xpose.msra.mxu0 0.0
    %507 = vmatpush.xpose.msra.mxu0 0.0
    %508 = vmatpush.xpose.msra.mxu0 0.0
    %509 = vmatpush.xpose.msra.mxu0 0.0
    %510 = vmatpush.xpose.msra.mxu0 0.0
    %511 = vmatpush.xpose.msra.mxu0 0.0
    %512 = vmatpush.xpose.msra.mxu0 0.0
    %513 = vmatpush.xpose.msra.mxu0 0.0
    %514 = vmatpush.xpose.msra.mxu0 0.0
    %515 = vmatpush.xpose.msra.mxu0 0.0
    %516 = vmatpush.xpose.msra.mxu0 %v499
    %517 = vmatmul.f32.gmra.mxu0 %v496
    %v518 = vpop.f32.mrf.mxu0
    %v519 = vadd.f32 0.0, %v518
    %520 = vdwg.mxu0
    %v522 = vsel %vm244, %v427, 0
    %v525 = vsel %vm244, %v460, 0
    %527 = vmatpush.xpose.msra.mxu0 0.0
    %528 = vmatpush.xpose.msra.mxu0 0.0
    %529 = vmatpush.xpose.msra.mxu0 0.0
    %530 = vmatpush.xpose.msra.mxu0 0.0
    %531 = vmatpush.xpose.msra.mxu0 0.0
    %532 = vmatpush.xpose.msra.mxu0 0.0
    %533 = vmatpush.xpose.msra.mxu0 0.0
    %534 = vmatpush.xpose.msra.mxu0 0.0
    %535 = vmatpush.xpose.msra.mxu0 0.0
    %536 = vmatpush.xpose.msra.mxu0 0.0
    %537 = vmatpush.xpose.msra.mxu0 0.0
    %538 = vmatpush.xpose.msra.mxu0 0.0
    %539 = vmatpush.xpose.msra.mxu0 0.0
    %540 = vmatpush.xpose.msra.mxu0 0.0
    %541 = vmatpush.xpose.msra.mxu0 0.0
    %542 = vmatpush.xpose.msra.mxu0 %v525
    %543 = vmatmul.f32.gmra.mxu0 %v522
    %v544 = vpop.f32.mrf.mxu0
    %v545 = vadd.f32 0.0, %v544
    %546 = vdwg.mxu0
    %v547 = vmul.f32 %v519, 0.35355338
    %v548 = vmul.f32 %v545, 0.35355338
    %v549 = vadd.f32 %v547, %v141
    %v550 = vadd.f32 %v548, %v142
    %v551 = vsel %vm244, %v549, -inf
    %552 = vmax.xlane.f32.xlu0 %v551
    %v553 = vpop.xlane.xlu0 %552
    %v554 = vsel %vm244, %v550, -inf
    %555 = vmax.xlane.f32.xlu0 %v554
    %v556 = vpop.xlane.xlu0 %555
    %v557 = vsub.f32 %v549, %v553
    %v558 = vsub.f32 %v550, %v556
    %v559 = vmul.f32 %v557, 1.442695
    %v560 = vpow.pop %v559
    %v561 = vmul.f32 %v558, 1.442695
    %v562 = vpow.pop %v561
    %v563 = vsel %vm244, %v560, 0.0
    %564 = vadd.xlane.f32.xlu0 %v563
    %v565 = vpop.xlane.xlu0 %564
    %v566 = vsel %vm244, %v562, 0.0
    %567 = vadd.xlane.f32.xlu0 %v566
    %v568 = vpop.xlane.xlu0 %567
    %v569 = vrcp.pop %v565
    %v570 = vmul.f32 %v565, %v569
    %v571 = vsub.f32 1.0, %v570
    %v572 = vmul.f32 %v569, %v571
    %v573 = vadd.f32 %v569, %v572
    %vm574 = vweird.f32 %v565
    %vm575 = vweird.f32 %v569
    %vm576 = vmor %vm574, %vm575
    %v577 = vsel %vm576, %v569, %v573
    %v578 = vand.u32 2147483647, %v565
    %vm579 = vcmp.eq.f32.partialorder %v578, 8.507059e+37
    %v580 = vand.u32 %v565, 2147483648
    %v581 = vor.u32 1.1754944e-38, %v580
    %v582 = vsel %vm579, %v581, %v577
    %v583 = vmul.f32 %v560, %v582
    %v584 = vrcp.pop %v568
    %v585 = vmul.f32 %v568, %v584
    %v586 = vsub.f32 1.0, %v585
    %v587 = vmul.f32 %v584, %v586
    %v588 = vadd.f32 %v584, %v587
    %vm589 = vweird.f32 %v568
    %vm590 = vweird.f32 %v584
    %vm591 = vmor %vm589, %vm590
    %v592 = vsel %vm591, %v584, %v588
    %v593 = vand.u32 2147483647, %v568
    %vm594 = vcmp.eq.f32.partialorder %v593, 8.507059e+37
    %v595 = vand.u32 %v568, 2147483648
    %v596 = vor.u32 1.1754944e-38, %v595
    %v597 = vsel %vm594, %v596, %v592
    %v598 = vmul.f32 %v562, %v597
    %v600 = vsel %vm244, %v583, 0
    %602 = vmatpush.msra.mxu0 0.0
    %603 = vmatpush.msra.mxu0 0.0
    %604 = vmatpush.msra.mxu0 0.0
    %605 = vmatpush.msra.mxu0 0.0
    %606 = vmatpush.msra.mxu0 0.0
    %607 = vmatpush.msra.mxu0 0.0
    %608 = vmatpush.msra.mxu0 0.0
    %609 = vmatpush.msra.mxu0 0.0
    %610 = vmatpush.msra.mxu0 0.0
    %611 = vmatpush.msra.mxu0 0.0
    %612 = vmatpush.msra.mxu0 0.0
    %613 = vmatpush.msra.mxu0 0.0
    %614 = vmatpush.msra.mxu0 0.0
    %615 = vmatpush.msra.mxu0 0.0
    %616 = vmatpush.msra.mxu0 0.0
    %617 = vmatpush.msra.mxu0 %v490
    %618 = vmatmul.f32.gmra.mxu0 %v600
    %v619 = vpop.f32.mrf.mxu0
    %v620 = vadd.f32 0.0, %v619
    %621 = vdwg.mxu0
    %v623 = vsel %vm244, %v598, 0
    %625 = vmatpush.msra.mxu0 0.0
    %626 = vmatpush.msra.mxu0 0.0
    %627 = vmatpush.msra.mxu0 0.0
    %628 = vmatpush.msra.mxu0 0.0
    %629 = vmatpush.msra.mxu0 0.0
    %630 = vmatpush.msra.mxu0 0.0
    %631 = vmatpush.msra.mxu0 0.0
    %632 = vmatpush.msra.mxu0 0.0
    %633 = vmatpush.msra.mxu0 0.0
    %634 = vmatpush.msra.mxu0 0.0
    %635 = vmatpush.msra.mxu0 0.0
    %636 = vmatpush.msra.mxu0 0.0
    %637 = vmatpush.msra.mxu0 0.0
    %638 = vmatpush.msra.mxu0 0.0
    %639 = vmatpush.msra.mxu0 0.0
    %640 = vmatpush.msra.mxu0 %v493
    %641 = vmatmul.f32.gmra.mxu0 %v623
    %v642 = vpop.f32.mrf.mxu0
    %v643 = vadd.f32 0.0, %v642
    %644 = vdwg.mxu0
    %s645 = scalar_lea.vmem %s10, 8
    %v646 = vld [vmem:[%s645] sm:$0xff]
    %v648 = vsel %vm244, %v620, 0
    %v651 = vsel %vm244, %v643, 0
    %653 = vmatpush.msra.mxu0 0.0
    %654 = vmatpush.msra.mxu0 0.0
    %655 = vmatpush.msra.mxu0 0.0
    %656 = vmatpush.msra.mxu0 0.0
    %657 = vmatpush.msra.mxu0 0.0
    %658 = vmatpush.msra.mxu0 0.0
    %659 = vmatpush.msra.mxu0 0.0
    %660 = vmatpush.msra.mxu0 0.0
    %661 = vmatpush.msra.mxu0 0.0
    %662 = vmatpush.msra.mxu0 0.0
    %663 = vmatpush.msra.mxu0 0.0
    %664 = vmatpush.msra.mxu0 0.0
    %665 = vmatpush.msra.mxu0 0.0
    %666 = vmatpush.msra.mxu0 0.0
    %667 = vmatpush.msra.mxu0 0.0
    %668 = vmatpush.msra.mxu0 %v646
    %669 = vmatmul.f32.gmra.mxu0 %v648
    %v670 = vpop.f32.mrf.mxu0
    %v671 = vadd.f32 0.0, %v670
    %672 = vmatmul.f32.gmra.mxu0 %v651
    %v673 = vpop.f32.mrf.mxu0
    %v674 = vadd.f32 0.0, %v673
    %675 = vdwg.mxu0
    %v677 = vsel %vm244, %v370, 0
    %v680 = vsel %vm244, %v393, 0
    %682 = vmatpush.msra.mxu0 0.0
    %683 = vmatpush.msra.mxu0 0.0
    %684 = vmatpush.msra.mxu0 0.0
    %685 = vmatpush.msra.mxu0 0.0
    %686 = vmatpush.msra.mxu0 0.0
    %687 = vmatpush.msra.mxu0 0.0
    %688 = vmatpush.msra.mxu0 0.0
    %689 = vmatpush.msra.mxu0 0.0
    %690 = vmatpush.msra.mxu0 0.0
    %691 = vmatpush.msra.mxu0 0.0
    %692 = vmatpush.msra.mxu0 0.0
    %693 = vmatpush.msra.mxu0 0.0
    %694 = vmatpush.msra.mxu0 0.0
    %695 = vmatpush.msra.mxu0 0.0
    %696 = vmatpush.msra.mxu0 0.0
    %697 = vmatpush.msra.mxu0 %v395
    %698 = vmatmul.f32.gmra.mxu0 %v677
    %v699 = vpop.f32.mrf.mxu0
    %v700 = vadd.f32 %v671, %v699
    %701 = vmatmul.f32.gmra.mxu0 %v680
    %v702 = vpop.f32.mrf.mxu0
    %v703 = vadd.f32 %v674, %v702
    %704 = vdwg.mxu0
    %s705 = scalar_lea.vmem %s4, 64
    %v706 = vld [vmem:[%s705] sm:$0xff]
    %v707 = vld [vmem:[%s705 + $0x8] sm:$0xff]
    %v708 = vld [vmem:[%s705 + $0x10] sm:$0xff]
    %v709 = vld [vmem:[%s705 + $0x18] sm:$0xff]
    %s710 = scalar_lea.vmem %s5, 2
    %v711 = vld [vmem:[%s710] sm:$0x1]
    %v713 = vperm.slane %v711, 0
    %715 = vmatpush.msra.mxu0 0.0
    %716 = vmatpush.msra.mxu0 0.0
    %717 = vmatpush.msra.mxu0 0.0
    %718 = vmatpush.msra.mxu0 0.0
    %719 = vmatpush.msra.mxu0 0.0
    %720 = vmatpush.msra.mxu0 0.0
    %721 = vmatpush.msra.mxu0 0.0
    %722 = vmatpush.msra.mxu0 0.0
    %723 = vmatpush.msra.mxu0 0.0
    %724 = vmatpush.msra.mxu0 0.0
    %725 = vmatpush.msra.mxu0 0.0
    %726 = vmatpush.msra.mxu0 0.0
    %727 = vmatpush.msra.mxu0 %v709
    %728 = vmatpush.msra.mxu0 %v708
    %729 = vmatpush.msra.mxu0 %v707
    %730 = vmatpush.msra.mxu0 %v706
    %731 = vmatmul.f32.gmra.mxu0 %v154
    %v732 = vpop.f32.mrf.mxu0
    %v733 = vadd.f32 %v713, %v732
    %734 = vmatmul.f32.gmra.mxu0 %v157
    %v735 = vpop.f32.mrf.mxu0
    %v736 = vadd.f32 %v713, %v735
    %737 = vdwg.mxu0
    %s738 = scalar_lea.vmem %s6, 64
    %v739 = vld [vmem:[%s738] sm:$0xff]
    %v740 = vld [vmem:[%s738 + $0x8] sm:$0xff]
    %v741 = vld [vmem:[%s738 + $0x10] sm:$0xff]
    %v742 = vld [vmem:[%s738 + $0x18] sm:$0xff]
    %s743 = scalar_lea.vmem %s7, 2
    %v744 = vld [vmem:[%s743] sm:$0x1]
    %v746 = vperm.slane %v744, 0
    %748 = vmatpush.msra.mxu0 0.0
    %749 = vmatpush.msra.mxu0 0.0
    %750 = vmatpush.msra.mxu0 0.0
    %751 = vmatpush.msra.mxu0 0.0
    %752 = vmatpush.msra.mxu0 0.0
    %753 = vmatpush.msra.mxu0 0.0
    %754 = vmatpush.msra.mxu0 0.0
    %755 = vmatpush.msra.mxu0 0.0
    %756 = vmatpush.msra.mxu0 0.0
    %757 = vmatpush.msra.mxu0 0.0
    %758 = vmatpush.msra.mxu0 0.0
    %759 = vmatpush.msra.mxu0 0.0
    %760 = vmatpush.msra.mxu0 %v742
    %761 = vmatpush.msra.mxu0 %v741
    %762 = vmatpush.msra.mxu0 %v740
    %763 = vmatpush.msra.mxu0 %v739
    %764 = vmatmul.f32.gmra.mxu0 %v154
    %v765 = vpop.f32.mrf.mxu0
    %v766 = vadd.f32 %v746, %v765
    %767 = vmatmul.f32.gmra.mxu0 %v157
    %v768 = vpop.f32.mrf.mxu0
    %v769 = vadd.f32 %v746, %v768
    %770 = vdwg.mxu0
    %s771 = scalar_lea.vmem %s8, 64
    %v772 = vld [vmem:[%s771] sm:$0xff]
    %v773 = vld [vmem:[%s771 + $0x8] sm:$0xff]
    %v774 = vld [vmem:[%s771 + $0x10] sm:$0xff]
    %v775 = vld [vmem:[%s771 + $0x18] sm:$0xff]
    %s776 = scalar_lea.vmem %s9, 2
    %v777 = vld [vmem:[%s776] sm:$0x1]
    %v779 = vperm.slane %v777, 0
    %781 = vmatpush.msra.mxu0 0.0
    %782 = vmatpush.msra.mxu0 0.0
    %783 = vmatpush.msra.mxu0 0.0
    %784 = vmatpush.msra.mxu0 0.0
    %785 = vmatpush.msra.mxu0 0.0
    %786 = vmatpush.msra.mxu0 0.0
    %787 = vmatpush.msra.mxu0 0.0
    %788 = vmatpush.msra.mxu0 0.0
    %789 = vmatpush.msra.mxu0 0.0
    %790 = vmatpush.msra.mxu0 0.0
    %791 = vmatpush.msra.mxu0 0.0
    %792 = vmatpush.msra.mxu0 0.0
    %793 = vmatpush.msra.mxu0 %v775
    %794 = vmatpush.msra.mxu0 %v774
    %795 = vmatpush.msra.mxu0 %v773
    %796 = vmatpush.msra.mxu0 %v772
    %797 = vmatmul.f32.gmra.mxu0 %v154
    %v798 = vpop.f32.mrf.mxu0
    %v799 = vadd.f32 %v779, %v798
    %800 = vmatmul.f32.gmra.mxu0 %v157
    %v801 = vpop.f32.mrf.mxu0
    %v802 = vadd.f32 %v779, %v801
    %803 = vdwg.mxu0
    %v805 = vsel %vm244, %v733, 0
    %v808 = vsel %vm244, %v766, 0
    %810 = vmatpush.xpose.msra.mxu0 0.0
    %811 = vmatpush.xpose.msra.mxu0 0.0
    %812 = vmatpush.xpose.msra.mxu0 0.0
    %813 = vmatpush.xpose.msra.mxu0 0.0
    %814 = vmatpush.xpose.msra.mxu0 0.0
    %815 = vmatpush.xpose.msra.mxu0 0.0
    %816 = vmatpush.xpose.msra.mxu0 0.0
    %817 = vmatpush.xpose.msra.mxu0 0.0
    %818 = vmatpush.xpose.msra.mxu0 0.0
    %819 = vmatpush.xpose.msra.mxu0 0.0
    %820 = vmatpush.xpose.msra.mxu0 0.0
    %821 = vmatpush.xpose.msra.mxu0 0.0
    %822 = vmatpush.xpose.msra.mxu0 0.0
    %823 = vmatpush.xpose.msra.mxu0 0.0
    %824 = vmatpush.xpose.msra.mxu0 0.0
    %825 = vmatpush.xpose.msra.mxu0 %v808
    %826 = vmatmul.f32.gmra.mxu0 %v805
    %v827 = vpop.f32.mrf.mxu0
    %v828 = vadd.f32 0.0, %v827
    %829 = vdwg.mxu0
    %v831 = vsel %vm244, %v736, 0
    %v834 = vsel %vm244, %v769, 0
    %836 = vmatpush.xpose.msra.mxu0 0.0
    %837 = vmatpush.xpose.msra.mxu0 0.0
    %838 = vmatpush.xpose.msra.mxu0 0.0
    %839 = vmatpush.xpose.msra.mxu0 0.0
    %840 = vmatpush.xpose.msra.mxu0 0.0
    %841 = vmatpush.xpose.msra.mxu0 0.0
    %842 = vmatpush.xpose.msra.mxu0 0.0
    %843 = vmatpush.xpose.msra.mxu0 0.0
    %844 = vmatpush.xpose.msra.mxu0 0.0
    %845 = vmatpush.xpose.msra.mxu0 0.0
    %846 = vmatpush.xpose.msra.mxu0 0.0
    %847 = vmatpush.xpose.msra.mxu0 0.0
    %848 = vmatpush.xpose.msra.mxu0 0.0
    %849 = vmatpush.xpose.msra.mxu0 0.0
    %850 = vmatpush.xpose.msra.mxu0 0.0
    %851 = vmatpush.xpose.msra.mxu0 %v834
    %852 = vmatmul.f32.gmra.mxu0 %v831
    %v853 = vpop.f32.mrf.mxu0
    %v854 = vadd.f32 0.0, %v853
    %855 = vdwg.mxu0
    %v856 = vmul.f32 %v828, 0.35355338
    %v857 = vmul.f32 %v854, 0.35355338
    %v858 = vadd.f32 %v856, %v141
    %v859 = vadd.f32 %v857, %v142
    %v860 = vsel %vm244, %v858, -inf
    %861 = vmax.xlane.f32.xlu0 %v860
    %v862 = vpop.xlane.xlu0 %861
    %v863 = vsel %vm244, %v859, -inf
    %864 = vmax.xlane.f32.xlu0 %v863
    %v865 = vpop.xlane.xlu0 %864
    %v866 = vsub.f32 %v858, %v862
    %v867 = vsub.f32 %v859, %v865
    %v868 = vmul.f32 %v866, 1.442695
    %v869 = vpow.pop %v868
    %v870 = vmul.f32 %v867, 1.442695
    %v871 = vpow.pop %v870
    %v872 = vsel %vm244, %v869, 0.0
    %873 = vadd.xlane.f32.xlu0 %v872
    %v874 = vpop.xlane.xlu0 %873
    %v875 = vsel %vm244, %v871, 0.0
    %876 = vadd.xlane.f32.xlu0 %v875
    %v877 = vpop.xlane.xlu0 %876
    %v878 = vrcp.pop %v874
    %v879 = vmul.f32 %v874, %v878
    %v880 = vsub.f32 1.0, %v879
    %v881 = vmul.f32 %v878, %v880
    %v882 = vadd.f32 %v878, %v881
    %vm883 = vweird.f32 %v874
    %vm884 = vweird.f32 %v878
    %vm885 = vmor %vm883, %vm884
    %v886 = vsel %vm885, %v878, %v882
    %v887 = vand.u32 2147483647, %v874
    %vm888 = vcmp.eq.f32.partialorder %v887, 8.507059e+37
    %v889 = vand.u32 %v874, 2147483648
    %v890 = vor.u32 1.1754944e-38, %v889
    %v891 = vsel %vm888, %v890, %v886
    %v892 = vmul.f32 %v869, %v891
    %v893 = vrcp.pop %v877
    %v894 = vmul.f32 %v877, %v893
    %v895 = vsub.f32 1.0, %v894
    %v896 = vmul.f32 %v893, %v895
    %v897 = vadd.f32 %v893, %v896
    %vm898 = vweird.f32 %v877
    %vm899 = vweird.f32 %v893
    %vm900 = vmor %vm898, %vm899
    %v901 = vsel %vm900, %v893, %v897
    %v902 = vand.u32 2147483647, %v877
    %vm903 = vcmp.eq.f32.partialorder %v902, 8.507059e+37
    %v904 = vand.u32 %v877, 2147483648
    %v905 = vor.u32 1.1754944e-38, %v904
    %v906 = vsel %vm903, %v905, %v901
    %v907 = vmul.f32 %v871, %v906
    %v909 = vsel %vm244, %v892, 0
    %911 = vmatpush.msra.mxu0 0.0
    %912 = vmatpush.msra.mxu0 0.0
    %913 = vmatpush.msra.mxu0 0.0
    %914 = vmatpush.msra.mxu0 0.0
    %915 = vmatpush.msra.mxu0 0.0
    %916 = vmatpush.msra.mxu0 0.0
    %917 = vmatpush.msra.mxu0 0.0
    %918 = vmatpush.msra.mxu0 0.0
    %919 = vmatpush.msra.mxu0 0.0
    %920 = vmatpush.msra.mxu0 0.0
    %921 = vmatpush.msra.mxu0 0.0
    %922 = vmatpush.msra.mxu0 0.0
    %923 = vmatpush.msra.mxu0 0.0
    %924 = vmatpush.msra.mxu0 0.0
    %925 = vmatpush.msra.mxu0 0.0
    %926 = vmatpush.msra.mxu0 %v799
    %927 = vmatmul.f32.gmra.mxu0 %v909
    %v928 = vpop.f32.mrf.mxu0
    %v929 = vadd.f32 0.0, %v928
    %930 = vdwg.mxu0
    %v932 = vsel %vm244, %v907, 0
    %934 = vmatpush.msra.mxu0 0.0
    %935 = vmatpush.msra.mxu0 0.0
    %936 = vmatpush.msra.mxu0 0.0
    %937 = vmatpush.msra.mxu0 0.0
    %938 = vmatpush.msra.mxu0 0.0
    %939 = vmatpush.msra.mxu0 0.0
    %940 = vmatpush.msra.mxu0 0.0
    %941 = vmatpush.msra.mxu0 0.0
    %942 = vmatpush.msra.mxu0 0.0
    %943 = vmatpush.msra.mxu0 0.0
    %944 = vmatpush.msra.mxu0 0.0
    %945 = vmatpush.msra.mxu0 0.0
    %946 = vmatpush.msra.mxu0 0.0
    %947 = vmatpush.msra.mxu0 0.0
    %948 = vmatpush.msra.mxu0 0.0
    %949 = vmatpush.msra.mxu0 %v802
    %950 = vmatmul.f32.gmra.mxu0 %v932
    %v951 = vpop.f32.mrf.mxu0
    %v952 = vadd.f32 0.0, %v951
    %953 = vdwg.mxu0
    %s954 = scalar_lea.vmem %s10, 16
    %v955 = vld [vmem:[%s954] sm:$0xff]
    %v957 = vsel %vm244, %v929, 0
    %v960 = vsel %vm244, %v952, 0
    %962 = vmatpush.msra.mxu0 0.0
    %963 = vmatpush.msra.mxu0 0.0
    %964 = vmatpush.msra.mxu0 0.0
    %965 = vmatpush.msra.mxu0 0.0
    %966 = vmatpush.msra.mxu0 0.0
    %967 = vmatpush.msra.mxu0 0.0
    %968 = vmatpush.msra.mxu0 0.0
    %969 = vmatpush.msra.mxu0 0.0
    %970 = vmatpush.msra.mxu0 0.0
    %971 = vmatpush.msra.mxu0 0.0
    %972 = vmatpush.msra.mxu0 0.0
    %973 = vmatpush.msra.mxu0 0.0
    %974 = vmatpush.msra.mxu0 0.0
    %975 = vmatpush.msra.mxu0 0.0
    %976 = vmatpush.msra.mxu0 0.0
    %977 = vmatpush.msra.mxu0 %v955
    %978 = vmatmul.f32.gmra.mxu0 %v957
    %v979 = vpop.f32.mrf.mxu0
    %v980 = vadd.f32 0.0, %v979
    %981 = vmatmul.f32.gmra.mxu0 %v960
    %v982 = vpop.f32.mrf.mxu0
    %v983 = vadd.f32 0.0, %v982
    %984 = vdwg.mxu0
    %v985 = vadd.f32 %v700, %v980
    %v986 = vadd.f32 %v703, %v983
    %s987 = scalar_lea.vmem %s4, 96
    %v988 = vld [vmem:[%s987] sm:$0xff]
    %v989 = vld [vmem:[%s987 + $0x8] sm:$0xff]
    %v990 = vld [vmem:[%s987 + $0x10] sm:$0xff]
    %v991 = vld [vmem:[%s987 + $0x18] sm:$0xff]
    %s992 = scalar_lea.vmem %s5, 3
    %v993 = vld [vmem:[%s992] sm:$0x1]
    %v995 = vperm.slane %v993, 0
    %997 = vmatpush.msra.mxu0 0.0
    %998 = vmatpush.msra.mxu0 0.0
    %999 = vmatpush.msra.mxu0 0.0
    %1000 = vmatpush.msra.mxu0 0.0
    %1001 = vmatpush.msra.mxu0 0.0
    %1002 = vmatpush.msra.mxu0 0.0
    %1003 = vmatpush.msra.mxu0 0.0
    %1004 = vmatpush.msra.mxu0 0.0
    %1005 = vmatpush.msra.mxu0 0.0
    %1006 = vmatpush.msra.mxu0 0.0
    %1007 = vmatpush.msra.mxu0 0.0
    %1008 = vmatpush.msra.mxu0 0.0
    %1009 = vmatpush.msra.mxu0 %v991
    %1010 = vmatpush.msra.mxu0 %v990
    %1011 = vmatpush.msra.mxu0 %v989
    %1012 = vmatpush.msra.mxu0 %v988
    %1013 = vmatmul.f32.gmra.mxu0 %v154
    %v1014 = vpop.f32.mrf.mxu0
    %v1015 = vadd.f32 %v995, %v1014
    %1016 = vmatmul.f32.gmra.mxu0 %v157
    %v1017 = vpop.f32.mrf.mxu0
    %v1018 = vadd.f32 %v995, %v1017
    %1019 = vdwg.mxu0
    %s1020 = scalar_lea.vmem %s6, 96
    %v1021 = vld [vmem:[%s1020] sm:$0xff]
    %v1022 = vld [vmem:[%s1020 + $0x8] sm:$0xff]
    %v1023 = vld [vmem:[%s1020 + $0x10] sm:$0xff]
    %v1024 = vld [vmem:[%s1020 + $0x18] sm:$0xff]
    %s1025 = scalar_lea.vmem %s7, 3
    %v1026 = vld [vmem:[%s1025] sm:$0x1]
    %v1028 = vperm.slane %v1026, 0
    %1030 = vmatpush.msra.mxu0 0.0
    %1031 = vmatpush.msra.mxu0 0.0
    %1032 = vmatpush.msra.mxu0 0.0
    %1033 = vmatpush.msra.mxu0 0.0
    %1034 = vmatpush.msra.mxu0 0.0
    %1035 = vmatpush.msra.mxu0 0.0
    %1036 = vmatpush.msra.mxu0 0.0
    %1037 = vmatpush.msra.mxu0 0.0
    %1038 = vmatpush.msra.mxu0 0.0
    %1039 = vmatpush.msra.mxu0 0.0
    %1040 = vmatpush.msra.mxu0 0.0
    %1041 = vmatpush.msra.mxu0 0.0
    %1042 = vmatpush.msra.mxu0 %v1024
    %1043 = vmatpush.msra.mxu0 %v1023
    %1044 = vmatpush.msra.mxu0 %v1022
    %1045 = vmatpush.msra.mxu0 %v1021
    %1046 = vmatmul.f32.gmra.mxu0 %v154
    %v1047 = vpop.f32.mrf.mxu0
    %v1048 = vadd.f32 %v1028, %v1047
    %1049 = vmatmul.f32.gmra.mxu0 %v157
    %v1050 = vpop.f32.mrf.mxu0
    %v1051 = vadd.f32 %v1028, %v1050
    %1052 = vdwg.mxu0
    %s1053 = scalar_lea.vmem %s8, 96
    %v1054 = vld [vmem:[%s1053] sm:$0xff]
    %v1055 = vld [vmem:[%s1053 + $0x8] sm:$0xff]
    %v1056 = vld [vmem:[%s1053 + $0x10] sm:$0xff]
    %v1057 = vld [vmem:[%s1053 + $0x18] sm:$0xff]
    %s1058 = scalar_lea.vmem %s9, 3
    %v1059 = vld [vmem:[%s1058] sm:$0x1]
    %v1061 = vperm.slane %v1059, 0
    %1063 = vmatpush.msra.mxu0 0.0
    %1064 = vmatpush.msra.mxu0 0.0
    %1065 = vmatpush.msra.mxu0 0.0
    %1066 = vmatpush.msra.mxu0 0.0
    %1067 = vmatpush.msra.mxu0 0.0
    %1068 = vmatpush.msra.mxu0 0.0
    %1069 = vmatpush.msra.mxu0 0.0
    %1070 = vmatpush.msra.mxu0 0.0
    %1071 = vmatpush.msra.mxu0 0.0
    %1072 = vmatpush.msra.mxu0 0.0
    %1073 = vmatpush.msra.mxu0 0.0
    %1074 = vmatpush.msra.mxu0 0.0
    %1075 = vmatpush.msra.mxu0 %v1057
    %1076 = vmatpush.msra.mxu0 %v1056
    %1077 = vmatpush.msra.mxu0 %v1055
    %1078 = vmatpush.msra.mxu0 %v1054
    %1079 = vmatmul.f32.gmra.mxu0 %v154
    %v1080 = vpop.f32.mrf.mxu0
    %v1081 = vadd.f32 %v1061, %v1080
    %1082 = vmatmul.f32.gmra.mxu0 %v157
    %v1083 = vpop.f32.mrf.mxu0
    %v1084 = vadd.f32 %v1061, %v1083
    %1085 = vdwg.mxu0
    %v1087 = vsel %vm244, %v1015, 0
    %v1090 = vsel %vm244, %v1048, 0
    %1092 = vmatpush.xpose.msra.mxu0 0.0
    %1093 = vmatpush.xpose.msra.mxu0 0.0
    %1094 = vmatpush.xpose.msra.mxu0 0.0
    %1095 = vmatpush.xpose.msra.mxu0 0.0
    %1096 = vmatpush.xpose.msra.mxu0 0.0
    %1097 = vmatpush.xpose.msra.mxu0 0.0
    %1098 = vmatpush.xpose.msra.mxu0 0.0
    %1099 = vmatpush.xpose.msra.mxu0 0.0
    %1100 = vmatpush.xpose.msra.mxu0 0.0
    %1101 = vmatpush.xpose.msra.mxu0 0.0
    %1102 = vmatpush.xpose.msra.mxu0 0.0
    %1103 = vmatpush.xpose.msra.mxu0 0.0
    %1104 = vmatpush.xpose.msra.mxu0 0.0
    %1105 = vmatpush.xpose.msra.mxu0 0.0
    %1106 = vmatpush.xpose.msra.mxu0 0.0
    %1107 = vmatpush.xpose.msra.mxu0 %v1090
    %1108 = vmatmul.f32.gmra.mxu0 %v1087
    %v1109 = vpop.f32.mrf.mxu0
    %v1110 = vadd.f32 0.0, %v1109
    %1111 = vdwg.mxu0
    %v1113 = vsel %vm244, %v1018, 0
    %v1116 = vsel %vm244, %v1051, 0
    %1118 = vmatpush.xpose.msra.mxu0 0.0
    %1119 = vmatpush.xpose.msra.mxu0 0.0
    %1120 = vmatpush.xpose.msra.mxu0 0.0
    %1121 = vmatpush.xpose.msra.mxu0 0.0
    %1122 = vmatpush.xpose.msra.mxu0 0.0
    %1123 = vmatpush.xpose.msra.mxu0 0.0
    %1124 = vmatpush.xpose.msra.mxu0 0.0
    %1125 = vmatpush.xpose.msra.mxu0 0.0
    %1126 = vmatpush.xpose.msra.mxu0 0.0
    %1127 = vmatpush.xpose.msra.mxu0 0.0
    %1128 = vmatpush.xpose.msra.mxu0 0.0
    %1129 = vmatpush.xpose.msra.mxu0 0.0
    %1130 = vmatpush.xpose.msra.mxu0 0.0
    %1131 = vmatpush.xpose.msra.mxu0 0.0
    %1132 = vmatpush.xpose.msra.mxu0 0.0
    %1133 = vmatpush.xpose.msra.mxu0 %v1116
    %1134 = vmatmul.f32.gmra.mxu0 %v1113
    %v1135 = vpop.f32.mrf.mxu0
    %v1136 = vadd.f32 0.0, %v1135
    %1137 = vdwg.mxu0
    %v1138 = vmul.f32 %v1110, 0.35355338
    %v1139 = vmul.f32 %v1136, 0.35355338
    %v1140 = vadd.f32 %v1138, %v141
    %v1141 = vadd.f32 %v1139, %v142
    %v1142 = vsel %vm244, %v1140, -inf
    %1143 = vmax.xlane.f32.xlu0 %v1142
    %v1144 = vpop.xlane.xlu0 %1143
    %v1145 = vsel %vm244, %v1141, -inf
    %1146 = vmax.xlane.f32.xlu0 %v1145
    %v1147 = vpop.xlane.xlu0 %1146
    %v1148 = vsub.f32 %v1140, %v1144
    %v1149 = vsub.f32 %v1141, %v1147
    %v1150 = vmul.f32 %v1148, 1.442695
    %v1151 = vpow.pop %v1150
    %v1152 = vmul.f32 %v1149, 1.442695
    %v1153 = vpow.pop %v1152
    %v1154 = vsel %vm244, %v1151, 0.0
    %1155 = vadd.xlane.f32.xlu0 %v1154
    %v1156 = vpop.xlane.xlu0 %1155
    %v1157 = vsel %vm244, %v1153, 0.0
    %1158 = vadd.xlane.f32.xlu0 %v1157
    %v1159 = vpop.xlane.xlu0 %1158
    %v1160 = vrcp.pop %v1156
    %v1161 = vmul.f32 %v1156, %v1160
    %v1162 = vsub.f32 1.0, %v1161
    %v1163 = vmul.f32 %v1160, %v1162
    %v1164 = vadd.f32 %v1160, %v1163
    %vm1165 = vweird.f32 %v1156
    %vm1166 = vweird.f32 %v1160
    %vm1167 = vmor %vm1165, %vm1166
    %v1168 = vsel %vm1167, %v1160, %v1164
    %v1169 = vand.u32 2147483647, %v1156
    %vm1170 = vcmp.eq.f32.partialorder %v1169, 8.507059e+37
    %v1171 = vand.u32 %v1156, 2147483648
    %v1172 = vor.u32 1.1754944e-38, %v1171
    %v1173 = vsel %vm1170, %v1172, %v1168
    %v1174 = vmul.f32 %v1151, %v1173
    %v1175 = vrcp.pop %v1159
    %v1176 = vmul.f32 %v1159, %v1175
    %v1177 = vsub.f32 1.0, %v1176
    %v1178 = vmul.f32 %v1175, %v1177
    %v1179 = vadd.f32 %v1175, %v1178
    %vm1180 = vweird.f32 %v1159
    %vm1181 = vweird.f32 %v1175
    %vm1182 = vmor %vm1180, %vm1181
    %v1183 = vsel %vm1182, %v1175, %v1179
    %v1184 = vand.u32 2147483647, %v1159
    %vm1185 = vcmp.eq.f32.partialorder %v1184, 8.507059e+37
    %v1186 = vand.u32 %v1159, 2147483648
    %v1187 = vor.u32 1.1754944e-38, %v1186
    %v1188 = vsel %vm1185, %v1187, %v1183
    %v1189 = vmul.f32 %v1153, %v1188
    %v1191 = vsel %vm244, %v1174, 0
    %1193 = vmatpush.msra.mxu0 0.0
    %1194 = vmatpush.msra.mxu0 0.0
    %1195 = vmatpush.msra.mxu0 0.0
    %1196 = vmatpush.msra.mxu0 0.0
    %1197 = vmatpush.msra.mxu0 0.0
    %1198 = vmatpush.msra.mxu0 0.0
    %1199 = vmatpush.msra.mxu0 0.0
    %1200 = vmatpush.msra.mxu0 0.0
    %1201 = vmatpush.msra.mxu0 0.0
    %1202 = vmatpush.msra.mxu0 0.0
    %1203 = vmatpush.msra.mxu0 0.0
    %1204 = vmatpush.msra.mxu0 0.0
    %1205 = vmatpush.msra.mxu0 0.0
    %1206 = vmatpush.msra.mxu0 0.0
    %1207 = vmatpush.msra.mxu0 0.0
    %1208 = vmatpush.msra.mxu0 %v1081
    %1209 = vmatmul.f32.gmra.mxu0 %v1191
    %v1210 = vpop.f32.mrf.mxu0
    %v1211 = vadd.f32 0.0, %v1210
    %1212 = vdwg.mxu0
    %v1214 = vsel %vm244, %v1189, 0
    %1216 = vmatpush.msra.mxu0 0.0
    %1217 = vmatpush.msra.mxu0 0.0
    %1218 = vmatpush.msra.mxu0 0.0
    %1219 = vmatpush.msra.mxu0 0.0
    %1220 = vmatpush.msra.mxu0 0.0
    %1221 = vmatpush.msra.mxu0 0.0
    %1222 = vmatpush.msra.mxu0 0.0
    %1223 = vmatpush.msra.mxu0 0.0
    %1224 = vmatpush.msra.mxu0 0.0
    %1225 = vmatpush.msra.mxu0 0.0
    %1226 = vmatpush.msra.mxu0 0.0
    %1227 = vmatpush.msra.mxu0 0.0
    %1228 = vmatpush.msra.mxu0 0.0
    %1229 = vmatpush.msra.mxu0 0.0
    %1230 = vmatpush.msra.mxu0 0.0
    %1231 = vmatpush.msra.mxu0 %v1084
    %1232 = vmatmul.f32.gmra.mxu0 %v1214
    %v1233 = vpop.f32.mrf.mxu0
    %v1234 = vadd.f32 0.0, %v1233
    %1235 = vdwg.mxu0
    %s1236 = scalar_lea.vmem %s10, 24
    %v1237 = vld [vmem:[%s1236] sm:$0xff]
    %v1239 = vsel %vm244, %v1211, 0
    %v1242 = vsel %vm244, %v1234, 0
    %1244 = vmatpush.msra.mxu0 0.0
    %1245 = vmatpush.msra.mxu0 0.0
    %1246 = vmatpush.msra.mxu0 0.0
    %1247 = vmatpush.msra.mxu0 0.0
    %1248 = vmatpush.msra.mxu0 0.0
    %1249 = vmatpush.msra.mxu0 0.0
    %1250 = vmatpush.msra.mxu0 0.0
    %1251 = vmatpush.msra.mxu0 0.0
    %1252 = vmatpush.msra.mxu0 0.0
    %1253 = vmatpush.msra.mxu0 0.0
    %1254 = vmatpush.msra.mxu0 0.0
    %1255 = vmatpush.msra.mxu0 0.0
    %1256 = vmatpush.msra.mxu0 0.0
    %1257 = vmatpush.msra.mxu0 0.0
    %1258 = vmatpush.msra.mxu0 0.0
    %1259 = vmatpush.msra.mxu0 %v1237
    %1260 = vmatmul.f32.gmra.mxu0 %v1239
    %v1261 = vpop.f32.mrf.mxu0
    %v1262 = vadd.f32 0.0, %v1261
    %1263 = vmatmul.f32.gmra.mxu0 %v1242
    %v1264 = vpop.f32.mrf.mxu0
    %v1265 = vadd.f32 0.0, %v1264
    %1266 = vdwg.mxu0
    %v1267 = vadd.f32 %v985, %v1262
    %v1268 = vadd.f32 %v986, %v1265
    %v1269 = vld [vmem:[%s11] sm:$0x1]
    %v1271 = vperm.slane %v1269, 0
    %v1273 = vadd.f32 %v1267, %v1271
    %v1274 = vadd.f32 %v1268, %v1271
    %v1275 = vadd.f32 %v1273, %v136
    %v1276 = vadd.f32 %v1274, %v137
    %v1277 = vld [vmem:[%s12] sm:$0x1]
    %v1278 = vld [vmem:[%s13] sm:$0x1]
    %v1279 = vsel %vm76, %v1275, 0.0
    %1280 = vadd.xlane.f32.xlu0 %v1279
    %v1281 = vpop.xlane.xlu0 %1280
    %v1282 = vsel %vm76, %v1276, 0.0
    %1283 = vadd.xlane.f32.xlu0 %v1282
    %v1284 = vpop.xlane.xlu0 %1283
    %v1285 = vmul.f32 %v1281, %v89
    %v1286 = vmul.f32 %v1284, %v89
    %v1287 = vsub.f32 %v1275, %v1285
    %v1288 = vsub.f32 %v1276, %v1286
    %v1289 = vmul.f32 %v1287, %v1287
    %v1290 = vmul.f32 %v1288, %v1288
    %v1291 = vsel %vm76, %v1289, 0.0
    %1292 = vadd.xlane.f32.xlu0 %v1291
    %v1293 = vpop.xlane.xlu0 %1292
    %v1294 = vsel %vm76, %v1290, 0.0
    %1295 = vadd.xlane.f32.xlu0 %v1294
    %v1296 = vpop.xlane.xlu0 %1295
    %v1297 = vmul.f32 %v1293, %v89
    %v1298 = vmul.f32 %v1296, %v89
    %v1299 = vadd.f32 %v1297, 1e-12
    %v1300 = vadd.f32 %v1298, 1e-12
    %v1301 = vrsqrt.pop %v1299
    %v1302 = vmul.f32 %v1301, %v1299
    %v1303 = vmul.f32 %v1302, %v1301
    %v1304 = vmul.f32 0.5, %v1303
    %v1305 = vsub.f32 1.5, %v1304
    %v1306 = vmul.f32 %v1301, %v1305
    %vm1307 = vweird.f32 %v1299
    %vm1308 = vweird.f32 %v1301
    %vm1309 = vmor %vm1307, %vm1308
    %v1310 = vsel %vm1309, %v1301, %v1306
    %v1311 = vrsqrt.pop %v1300
    %v1312 = vmul.f32 %v1311, %v1300
    %v1313 = vmul.f32 %v1312, %v1311
    %v1314 = vmul.f32 0.5, %v1313
    %v1315 = vsub.f32 1.5, %v1314
    %v1316 = vmul.f32 %v1311, %v1315
    %vm1317 = vweird.f32 %v1300
    %vm1318 = vweird.f32 %v1311
    %vm1319 = vmor %vm1317, %vm1318
    %v1320 = vsel %vm1319, %v1311, %v1316
    %v1321 = vmul.f32 %v1287, %v1310
    %v1322 = vmul.f32 %v1288, %v1320
    %v1324 = vperm.slane %v1277, 0
    %v1326 = vmul.f32 %v1321, %v1324
    %v1327 = vmul.f32 %v1322, %v1324
    %v1329 = vperm.slane %v1278, 0
    %v1331 = vadd.f32 %v1326, %v1329
    %v1332 = vadd.f32 %v1327, %v1329
    %v1333 = vld [vmem:[%s14] sm:$0xff]
    %v1334 = vld [vmem:[%s14 + $0x8] sm:$0xff]
    %v1335 = vld [vmem:[%s14 + $0x10] sm:$0xff]
    %v1336 = vld [vmem:[%s14 + $0x18] sm:$0xff]
    %v1337 = vld [vmem:[%s15] sm:$0x1]
    %v1339 = vperm.slane %v1337, 0
    %v1342 = vsel %vm76, %v1331, 0
    %v1345 = vsel %vm76, %v1332, 0
    %1347 = vmatpush.msra.mxu0 0.0
    %1348 = vmatpush.msra.mxu0 0.0
    %1349 = vmatpush.msra.mxu0 0.0
    %1350 = vmatpush.msra.mxu0 0.0
    %1351 = vmatpush.msra.mxu0 0.0
    %1352 = vmatpush.msra.mxu0 0.0
    %1353 = vmatpush.msra.mxu0 0.0
    %1354 = vmatpush.msra.mxu0 0.0
    %1355 = vmatpush.msra.mxu0 0.0
    %1356 = vmatpush.msra.mxu0 0.0
    %1357 = vmatpush.msra.mxu0 0.0
    %1358 = vmatpush.msra.mxu0 0.0
    %1359 = vmatpush.msra.mxu0 %v1336
    %1360 = vmatpush.msra.mxu0 %v1335
    %1361 = vmatpush.msra.mxu0 %v1334
    %1362 = vmatpush.msra.mxu0 %v1333
    %1363 = vmatmul.f32.gmra.mxu0 %v1342
    %v1364 = vpop.f32.mrf.mxu0
    %v1365 = vadd.f32 %v1339, %v1364
    %1366 = vmatmul.f32.gmra.mxu0 %v1345
    %v1367 = vpop.f32.mrf.mxu0
    %v1368 = vadd.f32 %v1339, %v1367
    %1369 = vdwg.mxu0
    %v1370 = vmul.f32 %v1365, 0.5
    %v1371 = vmul.f32 %v1368, 0.5
    %v1372 = vmul.f32 %v1365, 0.044715
    %v1373 = vmul.f32 %v1368, 0.044715
    %v1374 = vmul.f32 %v1372, %v1365
    %v1375 = vmul.f32 %v1373, %v1368
    %v1376 = vmul.f32 %v1374, %v1365
    %v1377 = vmul.f32 %v1375, %v1368
    %v1378 = vadd.f32 %v1365, %v1376
    %v1379 = vadd.f32 %v1368, %v1377
    %v1380 = vmul.f32 %v1378, 0.7978846
    %v1381 = vmul.f32 %v1379, 0.7978846
    %v1382 = vtanh.pop %v1380
    %v1383 = vtanh.pop %v1381
    %v1384 = vadd.f32 %v1382, 1.0
    %v1385 = vadd.f32 %v1383, 1.0
    %v1386 = vmul.f32 %v1370, %v1384
    %v1387 = vmul.f32 %v1371, %v1385
    %v1388 = vld [vmem:[%s16] sm:$0xff]
    %v1389 = vld [vmem:[%s16 + $0x8] sm:$0xff]
    %v1390 = vld [vmem:[%s16 + $0x10] sm:$0xff]
    %v1391 = vld [vmem:[%s16 + $0x18] sm:$0xff]
    %v1392 = vld [vmem:[%s16 + $0x20] sm:$0xff]
    %v1393 = vld [vmem:[%s16 + $0x28] sm:$0xff]
    %v1394 = vld [vmem:[%s16 + $0x30] sm:$0xff]
    %v1395 = vld [vmem:[%s16 + $0x38] sm:$0xff]
    %v1396 = vld [vmem:[%s17] sm:$0x1]
    %v1398 = vperm.slane %v1396, 0
    %vm1400 = vcmask 523264
    %v1402 = vsel %vm1400, %v1386, 0
    %v1405 = vsel %vm1400, %v1387, 0
    %1407 = vmatpush.msra.mxu0 0.0
    %1408 = vmatpush.msra.mxu0 0.0
    %1409 = vmatpush.msra.mxu0 0.0
    %1410 = vmatpush.msra.mxu0 0.0
    %1411 = vmatpush.msra.mxu0 0.0
    %1412 = vmatpush.msra.mxu0 0.0
    %1413 = vmatpush.msra.mxu0 0.0
    %1414 = vmatpush.msra.mxu0 0.0
    %1415 = vmatpush.msra.mxu0 %v1395
    %1416 = vmatpush.msra.mxu0 %v1394
    %1417 = vmatpush.msra.mxu0 %v1393
    %1418 = vmatpush.msra.mxu0 %v1392
    %1419 = vmatpush.msra.mxu0 %v1391
    %1420 = vmatpush.msra.mxu0 %v1390
    %1421 = vmatpush.msra.mxu0 %v1389
    %1422 = vmatpush.msra.mxu0 %v1388
    %1423 = vmatmul.f32.gmra.mxu0 %v1402
    %v1424 = vpop.f32.mrf.mxu0
    %v1425 = vadd.f32 %v1398, %v1424
    %1426 = vmatmul.f32.gmra.mxu0 %v1405
    %v1427 = vpop.f32.mrf.mxu0
    %v1428 = vadd.f32 %v1398, %v1427
    %1429 = vdwg.mxu0
    %v1430 = vadd.f32 %v1425, %v1331
    %v1431 = vadd.f32 %v1428, %v1332
    %v1432 = vld [vmem:[%s18] sm:$0x1]
    %v1433 = vld [vmem:[%s19] sm:$0x1]
    %v1434 = vsel %vm76, %v1430, 0.0
    %1435 = vadd.xlane.f32.xlu0 %v1434
    %v1436 = vpop.xlane.xlu0 %1435
    %v1437 = vsel %vm76, %v1431, 0.0
    %1438 = vadd.xlane.f32.xlu0 %v1437
    %v1439 = vpop.xlane.xlu0 %1438
    %v1440 = vmul.f32 %v1436, %v89
    %v1441 = vmul.f32 %v1439, %v89
    %v1442 = vsub.f32 %v1430, %v1440
    %v1443 = vsub.f32 %v1431, %v1441
    %v1444 = vmul.f32 %v1442, %v1442
    %v1445 = vmul.f32 %v1443, %v1443
    %v1446 = vsel %vm76, %v1444, 0.0
    %1447 = vadd.xlane.f32.xlu0 %v1446
    %v1448 = vpop.xlane.xlu0 %1447
    %v1449 = vsel %vm76, %v1445, 0.0
    %1450 = vadd.xlane.f32.xlu0 %v1449
    %v1451 = vpop.xlane.xlu0 %1450
    %v1452 = vmul.f32 %v1448, %v89
    %v1453 = vmul.f32 %v1451, %v89
    %v1454 = vadd.f32 %v1452, 1e-12
    %v1455 = vadd.f32 %v1453, 1e-12
    %v1456 = vrsqrt.pop %v1454
    %v1457 = vmul.f32 %v1456, %v1454
    %v1458 = vmul.f32 %v1457, %v1456
    %v1459 = vmul.f32 0.5, %v1458
    %v1460 = vsub.f32 1.5, %v1459
    %v1461 = vmul.f32 %v1456, %v1460
    %vm1462 = vweird.f32 %v1454
    %vm1463 = vweird.f32 %v1456
    %vm1464 = vmor %vm1462, %vm1463
    %v1465 = vsel %vm1464, %v1456, %v1461
    %v1466 = vrsqrt.pop %v1455
    %v1467 = vmul.f32 %v1466, %v1455
    %v1468 = vmul.f32 %v1467, %v1466
    %v1469 = vmul.f32 0.5, %v1468
    %v1470 = vsub.f32 1.5, %v1469
    %v1471 = vmul.f32 %v1466, %v1470
    %vm1472 = vweird.f32 %v1455
    %vm1473 = vweird.f32 %v1466
    %vm1474 = vmor %vm1472, %vm1473
    %v1475 = vsel %vm1474, %v1466, %v1471
    %v1476 = vmul.f32 %v1442, %v1465
    %v1477 = vmul.f32 %v1443, %v1475
    %v1479 = vperm.slane %v1432, 0
    %v1481 = vmul.f32 %v1476, %v1479
    %v1482 = vmul.f32 %v1477, %v1479
    %v1484 = vperm.slane %v1433, 0
    %v1486 = vadd.f32 %v1481, %v1484
    %v1487 = vadd.f32 %v1482, %v1484
    %s1488 = scalar_lea.vmem %s4, 128
    %v1489 = vld [vmem:[%s1488] sm:$0xff]
    %v1490 = vld [vmem:[%s1488 + $0x8] sm:$0xff]
    %v1491 = vld [vmem:[%s1488 + $0x10] sm:$0xff]
    %v1492 = vld [vmem:[%s1488 + $0x18] sm:$0xff]
    %s1493 = scalar_lea.vmem %s5, 4
    %v1494 = vld [vmem:[%s1493] sm:$0x1]
    %v1496 = vperm.slane %v1494, 0
    %v1499 = vsel %vm76, %v1486, 0
    %v1502 = vsel %vm76, %v1487, 0
    %1504 = vmatpush.msra.mxu0 0.0
    %1505 = vmatpush.msra.mxu0 0.0
    %1506 = vmatpush.msra.mxu0 0.0
    %1507 = vmatpush.msra.mxu0 0.0
    %1508 = vmatpush.msra.mxu0 0.0
    %1509 = vmatpush.msra.mxu0 0.0
    %1510 = vmatpush.msra.mxu0 0.0
    %1511 = vmatpush.msra.mxu0 0.0
    %1512 = vmatpush.msra.mxu0 0.0
    %1513 = vmatpush.msra.mxu0 0.0
    %1514 = vmatpush.msra.mxu0 0.0
    %1515 = vmatpush.msra.mxu0 0.0
    %1516 = vmatpush.msra.mxu0 %v1492
    %1517 = vmatpush.msra.mxu0 %v1491
    %1518 = vmatpush.msra.mxu0 %v1490
    %1519 = vmatpush.msra.mxu0 %v1489
    %1520 = vmatmul.f32.gmra.mxu0 %v1499
    %v1521 = vpop.f32.mrf.mxu0
    %v1522 = vadd.f32 %v1496, %v1521
    %1523 = vmatmul.f32.gmra.mxu0 %v1502
    %v1524 = vpop.f32.mrf.mxu0
    %v1525 = vadd.f32 %v1496, %v1524
    %1526 = vdwg.mxu0
    %s1527 = scalar_lea.vmem %s6, 128
    %v1528 = vld [vmem:[%s1527] sm:$0xff]
    %v1529 = vld [vmem:[%s1527 + $0x8] sm:$0xff]
    %v1530 = vld [vmem:[%s1527 + $0x10] sm:$0xff]
    %v1531 = vld [vmem:[%s1527 + $0x18] sm:$0xff]
    %s1532 = scalar_lea.vmem %s7, 4
    %v1533 = vld [vmem:[%s1532] sm:$0x1]
    %v1535 = vperm.slane %v1533, 0
    %1537 = vmatpush.msra.mxu0 0.0
    %1538 = vmatpush.msra.mxu0 0.0
    %1539 = vmatpush.msra.mxu0 0.0
    %1540 = vmatpush.msra.mxu0 0.0
    %1541 = vmatpush.msra.mxu0 0.0
    %1542 = vmatpush.msra.mxu0 0.0
    %1543 = vmatpush.msra.mxu0 0.0
    %1544 = vmatpush.msra.mxu0 0.0
    %1545 = vmatpush.msra.mxu0 0.0
    %1546 = vmatpush.msra.mxu0 0.0
    %1547 = vmatpush.msra.mxu0 0.0
    %1548 = vmatpush.msra.mxu0 0.0
    %1549 = vmatpush.msra.mxu0 %v1531
    %1550 = vmatpush.msra.mxu0 %v1530
    %1551 = vmatpush.msra.mxu0 %v1529
    %1552 = vmatpush.msra.mxu0 %v1528
    %1553 = vmatmul.f32.gmra.mxu0 %v1499
    %v1554 = vpop.f32.mrf.mxu0
    %v1555 = vadd.f32 %v1535, %v1554
    %1556 = vmatmul.f32.gmra.mxu0 %v1502
    %v1557 = vpop.f32.mrf.mxu0
    %v1558 = vadd.f32 %v1535, %v1557
    %1559 = vdwg.mxu0
    %s1560 = scalar_lea.vmem %s8, 128
    %v1561 = vld [vmem:[%s1560] sm:$0xff]
    %v1562 = vld [vmem:[%s1560 + $0x8] sm:$0xff]
    %v1563 = vld [vmem:[%s1560 + $0x10] sm:$0xff]
    %v1564 = vld [vmem:[%s1560 + $0x18] sm:$0xff]
    %s1565 = scalar_lea.vmem %s9, 4
    %v1566 = vld [vmem:[%s1565] sm:$0x1]
    %v1568 = vperm.slane %v1566, 0
    %1570 = vmatpush.msra.mxu0 0.0
    %1571 = vmatpush.msra.mxu0 0.0
    %1572 = vmatpush.msra.mxu0 0.0
    %1573 = vmatpush.msra.mxu0 0.0
    %1574 = vmatpush.msra.mxu0 0.0
    %1575 = vmatpush.msra.mxu0 0.0
    %1576 = vmatpush.msra.mxu0 0.0
    %1577 = vmatpush.msra.mxu0 0.0
    %1578 = vmatpush.msra.mxu0 0.0
    %1579 = vmatpush.msra.mxu0 0.0
    %1580 = vmatpush.msra.mxu0 0.0
    %1581 = vmatpush.msra.mxu0 0.0
    %1582 = vmatpush.msra.mxu0 %v1564
    %1583 = vmatpush.msra.mxu0 %v1563
    %1584 = vmatpush.msra.mxu0 %v1562
    %1585 = vmatpush.msra.mxu0 %v1561
    %1586 = vmatmul.f32.gmra.mxu0 %v1499
    %v1587 = vpop.f32.mrf.mxu0
    %v1588 = vadd.f32 %v1568, %v1587
    %1589 = vmatmul.f32.gmra.mxu0 %v1502
    %v1590 = vpop.f32.mrf.mxu0
    %v1591 = vadd.f32 %v1568, %v1590
    %1592 = vdwg.mxu0
    %v1594 = vsel %vm244, %v1522, 0
    %v1597 = vsel %vm244, %v1555, 0
    %1599 = vmatpush.xpose.msra.mxu0 0.0
    %1600 = vmatpush.xpose.msra.mxu0 0.0
    %1601 = vmatpush.xpose.msra.mxu0 0.0
    %1602 = vmatpush.xpose.msra.mxu0 0.0
    %1603 = vmatpush.xpose.msra.mxu0 0.0
    %1604 = vmatpush.xpose.msra.mxu0 0.0
    %1605 = vmatpush.xpose.msra.mxu0 0.0
    %1606 = vmatpush.xpose.msra.mxu0 0.0
    %1607 = vmatpush.xpose.msra.mxu0 0.0
    %1608 = vmatpush.xpose.msra.mxu0 0.0
    %1609 = vmatpush.xpose.msra.mxu0 0.0
    %1610 = vmatpush.xpose.msra.mxu0 0.0
    %1611 = vmatpush.xpose.msra.mxu0 0.0
    %1612 = vmatpush.xpose.msra.mxu0 0.0
    %1613 = vmatpush.xpose.msra.mxu0 0.0
    %1614 = vmatpush.xpose.msra.mxu0 %v1597
    %1615 = vmatmul.f32.gmra.mxu0 %v1594
    %v1616 = vpop.f32.mrf.mxu0
    %v1617 = vadd.f32 0.0, %v1616
    %1618 = vdwg.mxu0
    %v1620 = vsel %vm244, %v1525, 0
    %v1623 = vsel %vm244, %v1558, 0
    %1625 = vmatpush.xpose.msra.mxu0 0.0
    %1626 = vmatpush.xpose.msra.mxu0 0.0
    %1627 = vmatpush.xpose.msra.mxu0 0.0
    %1628 = vmatpush.xpose.msra.mxu0 0.0
    %1629 = vmatpush.xpose.msra.mxu0 0.0
    %1630 = vmatpush.xpose.msra.mxu0 0.0
    %1631 = vmatpush.xpose.msra.mxu0 0.0
    %1632 = vmatpush.xpose.msra.mxu0 0.0
    %1633 = vmatpush.xpose.msra.mxu0 0.0
    %1634 = vmatpush.xpose.msra.mxu0 0.0
    %1635 = vmatpush.xpose.msra.mxu0 0.0
    %1636 = vmatpush.xpose.msra.mxu0 0.0
    %1637 = vmatpush.xpose.msra.mxu0 0.0
    %1638 = vmatpush.xpose.msra.mxu0 0.0
    %1639 = vmatpush.xpose.msra.mxu0 0.0
    %1640 = vmatpush.xpose.msra.mxu0 %v1623
    %1641 = vmatmul.f32.gmra.mxu0 %v1620
    %v1642 = vpop.f32.mrf.mxu0
    %v1643 = vadd.f32 0.0, %v1642
    %1644 = vdwg.mxu0
    %v1645 = vmul.f32 %v1617, 0.35355338
    %v1646 = vmul.f32 %v1643, 0.35355338
    %v1647 = vadd.f32 %v1645, %v141
    %v1648 = vadd.f32 %v1646, %v142
    %v1649 = vsel %vm244, %v1647, -inf
    %1650 = vmax.xlane.f32.xlu0 %v1649
    %v1651 = vpop.xlane.xlu0 %1650
    %v1652 = vsel %vm244, %v1648, -inf
    %1653 = vmax.xlane.f32.xlu0 %v1652
    %v1654 = vpop.xlane.xlu0 %1653
    %v1655 = vsub.f32 %v1647, %v1651
    %v1656 = vsub.f32 %v1648, %v1654
    %v1657 = vmul.f32 %v1655, 1.442695
    %v1658 = vpow.pop %v1657
    %v1659 = vmul.f32 %v1656, 1.442695
    %v1660 = vpow.pop %v1659
    %v1661 = vsel %vm244, %v1658, 0.0
    %1662 = vadd.xlane.f32.xlu0 %v1661
    %v1663 = vpop.xlane.xlu0 %1662
    %v1664 = vsel %vm244, %v1660, 0.0
    %1665 = vadd.xlane.f32.xlu0 %v1664
    %v1666 = vpop.xlane.xlu0 %1665
    %v1667 = vrcp.pop %v1663
    %v1668 = vmul.f32 %v1663, %v1667
    %v1669 = vsub.f32 1.0, %v1668
    %v1670 = vmul.f32 %v1667, %v1669
    %v1671 = vadd.f32 %v1667, %v1670
    %vm1672 = vweird.f32 %v1663
    %vm1673 = vweird.f32 %v1667
    %vm1674 = vmor %vm1672, %vm1673
    %v1675 = vsel %vm1674, %v1667, %v1671
    %v1676 = vand.u32 2147483647, %v1663
    %vm1677 = vcmp.eq.f32.partialorder %v1676, 8.507059e+37
    %v1678 = vand.u32 %v1663, 2147483648
    %v1679 = vor.u32 1.1754944e-38, %v1678
    %v1680 = vsel %vm1677, %v1679, %v1675
    %v1681 = vmul.f32 %v1658, %v1680
    %v1682 = vrcp.pop %v1666
    %v1683 = vmul.f32 %v1666, %v1682
    %v1684 = vsub.f32 1.0, %v1683
    %v1685 = vmul.f32 %v1682, %v1684
    %v1686 = vadd.f32 %v1682, %v1685
    %vm1687 = vweird.f32 %v1666
    %vm1688 = vweird.f32 %v1682
    %vm1689 = vmor %vm1687, %vm1688
    %v1690 = vsel %vm1689, %v1682, %v1686
    %v1691 = vand.u32 2147483647, %v1666
    %vm1692 = vcmp.eq.f32.partialorder %v1691, 8.507059e+37
    %v1693 = vand.u32 %v1666, 2147483648
    %v1694 = vor.u32 1.1754944e-38, %v1693
    %v1695 = vsel %vm1692, %v1694, %v1690
    %v1696 = vmul.f32 %v1660, %v1695
    %v1698 = vsel %vm244, %v1681, 0
    %1700 = vmatpush.msra.mxu0 0.0
    %1701 = vmatpush.msra.mxu0 0.0
    %1702 = vmatpush.msra.mxu0 0.0
    %1703 = vmatpush.msra.mxu0 0.0
    %1704 = vmatpush.msra.mxu0 0.0
    %1705 = vmatpush.msra.mxu0 0.0
    %1706 = vmatpush.msra.mxu0 0.0
    %1707 = vmatpush.msra.mxu0 0.0
    %1708 = vmatpush.msra.mxu0 0.0
    %1709 = vmatpush.msra.mxu0 0.0
    %1710 = vmatpush.msra.mxu0 0.0
    %1711 = vmatpush.msra.mxu0 0.0
    %1712 = vmatpush.msra.mxu0 0.0
    %1713 = vmatpush.msra.mxu0 0.0
    %1714 = vmatpush.msra.mxu0 0.0
    %1715 = vmatpush.msra.mxu0 %v1588
    %1716 = vmatmul.f32.gmra.mxu0 %v1698
    %v1717 = vpop.f32.mrf.mxu0
    %v1718 = vadd.f32 0.0, %v1717
    %1719 = vdwg.mxu0
    %v1721 = vsel %vm244, %v1696, 0
    %1723 = vmatpush.msra.mxu0 0.0
    %1724 = vmatpush.msra.mxu0 0.0
    %1725 = vmatpush.msra.mxu0 0.0
    %1726 = vmatpush.msra.mxu0 0.0
    %1727 = vmatpush.msra.mxu0 0.0
    %1728 = vmatpush.msra.mxu0 0.0
    %1729 = vmatpush.msra.mxu0 0.0
    %1730 = vmatpush.msra.mxu0 0.0
    %1731 = vmatpush.msra.mxu0 0.0
    %1732 = vmatpush.msra.mxu0 0.0
    %1733 = vmatpush.msra.mxu0 0.0
    %1734 = vmatpush.msra.mxu0 0.0
    %1735 = vmatpush.msra.mxu0 0.0
    %1736 = vmatpush.msra.mxu0 0.0
    %1737 = vmatpush.msra.mxu0 0.0
    %1738 = vmatpush.msra.mxu0 %v1591
    %1739 = vmatmul.f32.gmra.mxu0 %v1721
    %v1740 = vpop.f32.mrf.mxu0
    %v1741 = vadd.f32 0.0, %v1740
    %1742 = vdwg.mxu0
    %s1743 = scalar_lea.vmem %s10, 32
    %v1744 = vld [vmem:[%s1743] sm:$0xff]
    %s1745 = scalar_lea.vmem %s4, 160
    %v1746 = vld [vmem:[%s1745] sm:$0xff]
    %v1747 = vld [vmem:[%s1745 + $0x8] sm:$0xff]
    %v1748 = vld [vmem:[%s1745 + $0x10] sm:$0xff]
    %v1749 = vld [vmem:[%s1745 + $0x18] sm:$0xff]
    %s1750 = scalar_lea.vmem %s5, 5
    %v1751 = vld [vmem:[%s1750] sm:$0x1]
    %v1753 = vperm.slane %v1751, 0
    %1755 = vmatpush.msra.mxu0 0.0
    %1756 = vmatpush.msra.mxu0 0.0
    %1757 = vmatpush.msra.mxu0 0.0
    %1758 = vmatpush.msra.mxu0 0.0
    %1759 = vmatpush.msra.mxu0 0.0
    %1760 = vmatpush.msra.mxu0 0.0
    %1761 = vmatpush.msra.mxu0 0.0
    %1762 = vmatpush.msra.mxu0 0.0
    %1763 = vmatpush.msra.mxu0 0.0
    %1764 = vmatpush.msra.mxu0 0.0
    %1765 = vmatpush.msra.mxu0 0.0
    %1766 = vmatpush.msra.mxu0 0.0
    %1767 = vmatpush.msra.mxu0 %v1749
    %1768 = vmatpush.msra.mxu0 %v1748
    %1769 = vmatpush.msra.mxu0 %v1747
    %1770 = vmatpush.msra.mxu0 %v1746
    %1771 = vmatmul.f32.gmra.mxu0 %v1499
    %v1772 = vpop.f32.mrf.mxu0
    %v1773 = vadd.f32 %v1753, %v1772
    %1774 = vmatmul.f32.gmra.mxu0 %v1502
    %v1775 = vpop.f32.mrf.mxu0
    %v1776 = vadd.f32 %v1753, %v1775
    %1777 = vdwg.mxu0
    %s1778 = scalar_lea.vmem %s6, 160
    %v1779 = vld [vmem:[%s1778] sm:$0xff]
    %v1780 = vld [vmem:[%s1778 + $0x8] sm:$0xff]
    %v1781 = vld [vmem:[%s1778 + $0x10] sm:$0xff]
    %v1782 = vld [vmem:[%s1778 + $0x18] sm:$0xff]
    %s1783 = scalar_lea.vmem %s7, 5
    %v1784 = vld [vmem:[%s1783] sm:$0x1]
    %v1786 = vperm.slane %v1784, 0
    %1788 = vmatpush.msra.mxu0 0.0
    %1789 = vmatpush.msra.mxu0 0.0
    %1790 = vmatpush.msra.mxu0 0.0
    %1791 = vmatpush.msra.mxu0 0.0
    %1792 = vmatpush.msra.mxu0 0.0
    %1793 = vmatpush.msra.mxu0 0.0
    %1794 = vmatpush.msra.mxu0 0.0
    %1795 = vmatpush.msra.mxu0 0.0
    %1796 = vmatpush.msra.mxu0 0.0
    %1797 = vmatpush.msra.mxu0 0.0
    %1798 = vmatpush.msra.mxu0 0.0
    %1799 = vmatpush.msra.mxu0 0.0
    %1800 = vmatpush.msra.mxu0 %v1782
    %1801 = vmatpush.msra.mxu0 %v1781
    %1802 = vmatpush.msra.mxu0 %v1780
    %1803 = vmatpush.msra.mxu0 %v1779
    %1804 = vmatmul.f32.gmra.mxu0 %v1499
    %v1805 = vpop.f32.mrf.mxu0
    %v1806 = vadd.f32 %v1786, %v1805
    %1807 = vmatmul.f32.gmra.mxu0 %v1502
    %v1808 = vpop.f32.mrf.mxu0
    %v1809 = vadd.f32 %v1786, %v1808
    %1810 = vdwg.mxu0
    %s1811 = scalar_lea.vmem %s8, 160
    %v1812 = vld [vmem:[%s1811] sm:$0xff]
    %v1813 = vld [vmem:[%s1811 + $0x8] sm:$0xff]
    %v1814 = vld [vmem:[%s1811 + $0x10] sm:$0xff]
    %v1815 = vld [vmem:[%s1811 + $0x18] sm:$0xff]
    %s1816 = scalar_lea.vmem %s9, 5
    %v1817 = vld [vmem:[%s1816] sm:$0x1]
    %v1819 = vperm.slane %v1817, 0
    %1821 = vmatpush.msra.mxu0 0.0
    %1822 = vmatpush.msra.mxu0 0.0
    %1823 = vmatpush.msra.mxu0 0.0
    %1824 = vmatpush.msra.mxu0 0.0
    %1825 = vmatpush.msra.mxu0 0.0
    %1826 = vmatpush.msra.mxu0 0.0
    %1827 = vmatpush.msra.mxu0 0.0
    %1828 = vmatpush.msra.mxu0 0.0
    %1829 = vmatpush.msra.mxu0 0.0
    %1830 = vmatpush.msra.mxu0 0.0
    %1831 = vmatpush.msra.mxu0 0.0
    %1832 = vmatpush.msra.mxu0 0.0
    %1833 = vmatpush.msra.mxu0 %v1815
    %1834 = vmatpush.msra.mxu0 %v1814
    %1835 = vmatpush.msra.mxu0 %v1813
    %1836 = vmatpush.msra.mxu0 %v1812
    %1837 = vmatmul.f32.gmra.mxu0 %v1499
    %v1838 = vpop.f32.mrf.mxu0
    %v1839 = vadd.f32 %v1819, %v1838
    %1840 = vmatmul.f32.gmra.mxu0 %v1502
    %v1841 = vpop.f32.mrf.mxu0
    %v1842 = vadd.f32 %v1819, %v1841
    %1843 = vdwg.mxu0
    %v1845 = vsel %vm244, %v1773, 0
    %v1848 = vsel %vm244, %v1806, 0
    %1850 = vmatpush.xpose.msra.mxu0 0.0
    %1851 = vmatpush.xpose.msra.mxu0 0.0
    %1852 = vmatpush.xpose.msra.mxu0 0.0
    %1853 = vmatpush.xpose.msra.mxu0 0.0
    %1854 = vmatpush.xpose.msra.mxu0 0.0
    %1855 = vmatpush.xpose.msra.mxu0 0.0
    %1856 = vmatpush.xpose.msra.mxu0 0.0
    %1857 = vmatpush.xpose.msra.mxu0 0.0
    %1858 = vmatpush.xpose.msra.mxu0 0.0
    %1859 = vmatpush.xpose.msra.mxu0 0.0
    %1860 = vmatpush.xpose.msra.mxu0 0.0
    %1861 = vmatpush.xpose.msra.mxu0 0.0
    %1862 = vmatpush.xpose.msra.mxu0 0.0
    %1863 = vmatpush.xpose.msra.mxu0 0.0
    %1864 = vmatpush.xpose.msra.mxu0 0.0
    %1865 = vmatpush.xpose.msra.mxu0 %v1848
    %1866 = vmatmul.f32.gmra.mxu0 %v1845
    %v1867 = vpop.f32.mrf.mxu0
    %v1868 = vadd.f32 0.0, %v1867
    %1869 = vdwg.mxu0
    %v1871 = vsel %vm244, %v1776, 0
    %v1874 = vsel %vm244, %v1809, 0
    %1876 = vmatpush.xpose.msra.mxu0 0.0
    %1877 = vmatpush.xpose.msra.mxu0 0.0
    %1878 = vmatpush.xpose.msra.mxu0 0.0
    %1879 = vmatpush.xpose.msra.mxu0 0.0
    %1880 = vmatpush.xpose.msra.mxu0 0.0
    %1881 = vmatpush.xpose.msra.mxu0 0.0
    %1882 = vmatpush.xpose.msra.mxu0 0.0
    %1883 = vmatpush.xpose.msra.mxu0 0.0
    %1884 = vmatpush.xpose.msra.mxu0 0.0
    %1885 = vmatpush.xpose.msra.mxu0 0.0
    %1886 = vmatpush.xpose.msra.mxu0 0.0
    %1887 = vmatpush.xpose.msra.mxu0 0.0
    %1888 = vmatpush.xpose.msra.mxu0 0.0
    %1889 = vmatpush.xpose.msra.mxu0 0.0
    %1890 = vmatpush.xpose.msra.mxu0 0.0
    %1891 = vmatpush.xpose.msra.mxu0 %v1874
    %1892 = vmatmul.f32.gmra.mxu0 %v1871
    %v1893 = vpop.f32.mrf.mxu0
    %v1894 = vadd.f32 0.0, %v1893
    %1895 = vdwg.mxu0
    %v1896 = vmul.f32 %v1868, 0.35355338
    %v1897 = vmul.f32 %v1894, 0.35355338
    %v1898 = vadd.f32 %v1896, %v141
    %v1899 = vadd.f32 %v1897, %v142
    %v1900 = vsel %vm244, %v1898, -inf
    %1901 = vmax.xlane.f32.xlu0 %v1900
    %v1902 = vpop.xlane.xlu0 %1901
    %v1903 = vsel %vm244, %v1899, -inf
    %1904 = vmax.xlane.f32.xlu0 %v1903
    %v1905 = vpop.xlane.xlu0 %1904
    %v1906 = vsub.f32 %v1898, %v1902
    %v1907 = vsub.f32 %v1899, %v1905
    %v1908 = vmul.f32 %v1906, 1.442695
    %v1909 = vpow.pop %v1908
    %v1910 = vmul.f32 %v1907, 1.442695
    %v1911 = vpow.pop %v1910
    %v1912 = vsel %vm244, %v1909, 0.0
    %1913 = vadd.xlane.f32.xlu0 %v1912
    %v1914 = vpop.xlane.xlu0 %1913
    %v1915 = vsel %vm244, %v1911, 0.0
    %1916 = vadd.xlane.f32.xlu0 %v1915
    %v1917 = vpop.xlane.xlu0 %1916
    %v1918 = vrcp.pop %v1914
    %v1919 = vmul.f32 %v1914, %v1918
    %v1920 = vsub.f32 1.0, %v1919
    %v1921 = vmul.f32 %v1918, %v1920
    %v1922 = vadd.f32 %v1918, %v1921
    %vm1923 = vweird.f32 %v1914
    %vm1924 = vweird.f32 %v1918
    %vm1925 = vmor %vm1923, %vm1924
    %v1926 = vsel %vm1925, %v1918, %v1922
    %v1927 = vand.u32 2147483647, %v1914
    %vm1928 = vcmp.eq.f32.partialorder %v1927, 8.507059e+37
    %v1929 = vand.u32 %v1914, 2147483648
    %v1930 = vor.u32 1.1754944e-38, %v1929
    %v1931 = vsel %vm1928, %v1930, %v1926
    %v1932 = vmul.f32 %v1909, %v1931
    %v1933 = vrcp.pop %v1917
    %v1934 = vmul.f32 %v1917, %v1933
    %v1935 = vsub.f32 1.0, %v1934
    %v1936 = vmul.f32 %v1933, %v1935
    %v1937 = vadd.f32 %v1933, %v1936
    %vm1938 = vweird.f32 %v1917
    %vm1939 = vweird.f32 %v1933
    %vm1940 = vmor %vm1938, %vm1939
    %v1941 = vsel %vm1940, %v1933, %v1937
    %v1942 = vand.u32 2147483647, %v1917
    %vm1943 = vcmp.eq.f32.partialorder %v1942, 8.507059e+37
    %v1944 = vand.u32 %v1917, 2147483648
    %v1945 = vor.u32 1.1754944e-38, %v1944
    %v1946 = vsel %vm1943, %v1945, %v1941
    %v1947 = vmul.f32 %v1911, %v1946
    %v1949 = vsel %vm244, %v1932, 0
    %1951 = vmatpush.msra.mxu0 0.0
    %1952 = vmatpush.msra.mxu0 0.0
    %1953 = vmatpush.msra.mxu0 0.0
    %1954 = vmatpush.msra.mxu0 0.0
    %1955 = vmatpush.msra.mxu0 0.0
    %1956 = vmatpush.msra.mxu0 0.0
    %1957 = vmatpush.msra.mxu0 0.0
    %1958 = vmatpush.msra.mxu0 0.0
    %1959 = vmatpush.msra.mxu0 0.0
    %1960 = vmatpush.msra.mxu0 0.0
    %1961 = vmatpush.msra.mxu0 0.0
    %1962 = vmatpush.msra.mxu0 0.0
    %1963 = vmatpush.msra.mxu0 0.0
    %1964 = vmatpush.msra.mxu0 0.0
    %1965 = vmatpush.msra.mxu0 0.0
    %1966 = vmatpush.msra.mxu0 %v1839
    %1967 = vmatmul.f32.gmra.mxu0 %v1949
    %v1968 = vpop.f32.mrf.mxu0
    %v1969 = vadd.f32 0.0, %v1968
    %1970 = vdwg.mxu0
    %v1972 = vsel %vm244, %v1947, 0
    %1974 = vmatpush.msra.mxu0 0.0
    %1975 = vmatpush.msra.mxu0 0.0
    %1976 = vmatpush.msra.mxu0 0.0
    %1977 = vmatpush.msra.mxu0 0.0
    %1978 = vmatpush.msra.mxu0 0.0
    %1979 = vmatpush.msra.mxu0 0.0
    %1980 = vmatpush.msra.mxu0 0.0
    %1981 = vmatpush.msra.mxu0 0.0
    %1982 = vmatpush.msra.mxu0 0.0
    %1983 = vmatpush.msra.mxu0 0.0
    %1984 = vmatpush.msra.mxu0 0.0
    %1985 = vmatpush.msra.mxu0 0.0
    %1986 = vmatpush.msra.mxu0 0.0
    %1987 = vmatpush.msra.mxu0 0.0
    %1988 = vmatpush.msra.mxu0 0.0
    %1989 = vmatpush.msra.mxu0 %v1842
    %1990 = vmatmul.f32.gmra.mxu0 %v1972
    %v1991 = vpop.f32.mrf.mxu0
    %v1992 = vadd.f32 0.0, %v1991
    %1993 = vdwg.mxu0
    %s1994 = scalar_lea.vmem %s10, 40
    %v1995 = vld [vmem:[%s1994] sm:$0xff]
    %v1997 = vsel %vm244, %v1969, 0
    %v2000 = vsel %vm244, %v1992, 0
    %2002 = vmatpush.msra.mxu0 0.0
    %2003 = vmatpush.msra.mxu0 0.0
    %2004 = vmatpush.msra.mxu0 0.0
    %2005 = vmatpush.msra.mxu0 0.0
    %2006 = vmatpush.msra.mxu0 0.0
    %2007 = vmatpush.msra.mxu0 0.0
    %2008 = vmatpush.msra.mxu0 0.0
    %2009 = vmatpush.msra.mxu0 0.0
    %2010 = vmatpush.msra.mxu0 0.0
    %2011 = vmatpush.msra.mxu0 0.0
    %2012 = vmatpush.msra.mxu0 0.0
    %2013 = vmatpush.msra.mxu0 0.0
    %2014 = vmatpush.msra.mxu0 0.0
    %2015 = vmatpush.msra.mxu0 0.0
    %2016 = vmatpush.msra.mxu0 0.0
    %2017 = vmatpush.msra.mxu0 %v1995
    %2018 = vmatmul.f32.gmra.mxu0 %v1997
    %v2019 = vpop.f32.mrf.mxu0
    %v2020 = vadd.f32 0.0, %v2019
    %2021 = vmatmul.f32.gmra.mxu0 %v2000
    %v2022 = vpop.f32.mrf.mxu0
    %v2023 = vadd.f32 0.0, %v2022
    %2024 = vdwg.mxu0
    %v2026 = vsel %vm244, %v1718, 0
    %v2029 = vsel %vm244, %v1741, 0
    %2031 = vmatpush.msra.mxu0 0.0
    %2032 = vmatpush.msra.mxu0 0.0
    %2033 = vmatpush.msra.mxu0 0.0
    %2034 = vmatpush.msra.mxu0 0.0
    %2035 = vmatpush.msra.mxu0 0.0
    %2036 = vmatpush.msra.mxu0 0.0
    %2037 = vmatpush.msra.mxu0 0.0
    %2038 = vmatpush.msra.mxu0 0.0
    %2039 = vmatpush.msra.mxu0 0.0
    %2040 = vmatpush.msra.mxu0 0.0
    %2041 = vmatpush.msra.mxu0 0.0
    %2042 = vmatpush.msra.mxu0 0.0
    %2043 = vmatpush.msra.mxu0 0.0
    %2044 = vmatpush.msra.mxu0 0.0
    %2045 = vmatpush.msra.mxu0 0.0
    %2046 = vmatpush.msra.mxu0 %v1744
    %2047 = vmatmul.f32.gmra.mxu0 %v2026
    %v2048 = vpop.f32.mrf.mxu0
    %v2049 = vadd.f32 %v2020, %v2048
    %2050 = vmatmul.f32.gmra.mxu0 %v2029
    %v2051 = vpop.f32.mrf.mxu0
    %v2052 = vadd.f32 %v2023, %v2051
    %2053 = vdwg.mxu0
    %s2054 = scalar_lea.vmem %s4, 192
    %v2055 = vld [vmem:[%s2054] sm:$0xff]
    %v2056 = vld [vmem:[%s2054 + $0x8] sm:$0xff]
    %v2057 = vld [vmem:[%s2054 + $0x10] sm:$0xff]
    %v2058 = vld [vmem:[%s2054 + $0x18] sm:$0xff]
    %s2059 = scalar_lea.vmem %s5, 6
    %v2060 = vld [vmem:[%s2059] sm:$0x1]
    %v2062 = vperm.slane %v2060, 0
    %2064 = vmatpush.msra.mxu0 0.0
    %2065 = vmatpush.msra.mxu0 0.0
    %2066 = vmatpush.msra.mxu0 0.0
    %2067 = vmatpush.msra.mxu0 0.0
    %2068 = vmatpush.msra.mxu0 0.0
    %2069 = vmatpush.msra.mxu0 0.0
    %2070 = vmatpush.msra.mxu0 0.0
    %2071 = vmatpush.msra.mxu0 0.0
    %2072 = vmatpush.msra.mxu0 0.0
    %2073 = vmatpush.msra.mxu0 0.0
    %2074 = vmatpush.msra.mxu0 0.0
    %2075 = vmatpush.msra.mxu0 0.0
    %2076 = vmatpush.msra.mxu0 %v2058
    %2077 = vmatpush.msra.mxu0 %v2057
    %2078 = vmatpush.msra.mxu0 %v2056
    %2079 = vmatpush.msra.mxu0 %v2055
    %2080 = vmatmul.f32.gmra.mxu0 %v1499
    %v2081 = vpop.f32.mrf.mxu0
    %v2082 = vadd.f32 %v2062, %v2081
    %2083 = vmatmul.f32.gmra.mxu0 %v1502
    %v2084 = vpop.f32.mrf.mxu0
    %v2085 = vadd.f32 %v2062, %v2084
    %2086 = vdwg.mxu0
    %s2087 = scalar_lea.vmem %s6, 192
    %v2088 = vld [vmem:[%s2087] sm:$0xff]
    %v2089 = vld [vmem:[%s2087 + $0x8] sm:$0xff]
    %v2090 = vld [vmem:[%s2087 + $0x10] sm:$0xff]
    %v2091 = vld [vmem:[%s2087 + $0x18] sm:$0xff]
    %s2092 = scalar_lea.vmem %s7, 6
    %v2093 = vld [vmem:[%s2092] sm:$0x1]
    %v2095 = vperm.slane %v2093, 0
    %2097 = vmatpush.msra.mxu0 0.0
    %2098 = vmatpush.msra.mxu0 0.0
    %2099 = vmatpush.msra.mxu0 0.0
    %2100 = vmatpush.msra.mxu0 0.0
    %2101 = vmatpush.msra.mxu0 0.0
    %2102 = vmatpush.msra.mxu0 0.0
    %2103 = vmatpush.msra.mxu0 0.0
    %2104 = vmatpush.msra.mxu0 0.0
    %2105 = vmatpush.msra.mxu0 0.0
    %2106 = vmatpush.msra.mxu0 0.0
    %2107 = vmatpush.msra.mxu0 0.0
    %2108 = vmatpush.msra.mxu0 0.0
    %2109 = vmatpush.msra.mxu0 %v2091
    %2110 = vmatpush.msra.mxu0 %v2090
    %2111 = vmatpush.msra.mxu0 %v2089
    %2112 = vmatpush.msra.mxu0 %v2088
    %2113 = vmatmul.f32.gmra.mxu0 %v1499
    %v2114 = vpop.f32.mrf.mxu0
    %v2115 = vadd.f32 %v2095, %v2114
    %2116 = vmatmul.f32.gmra.mxu0 %v1502
    %v2117 = vpop.f32.mrf.mxu0
    %v2118 = vadd.f32 %v2095, %v2117
    %2119 = vdwg.mxu0
    %s2120 = scalar_lea.vmem %s8, 192
    %v2121 = vld [vmem:[%s2120] sm:$0xff]
    %v2122 = vld [vmem:[%s2120 + $0x8] sm:$0xff]
    %v2123 = vld [vmem:[%s2120 + $0x10] sm:$0xff]
    %v2124 = vld [vmem:[%s2120 + $0x18] sm:$0xff]
    %s2125 = scalar_lea.vmem %s9, 6
    %v2126 = vld [vmem:[%s2125] sm:$0x1]
    %v2128 = vperm.slane %v2126, 0
    %2130 = vmatpush.msra.mxu0 0.0
    %2131 = vmatpush.msra.mxu0 0.0
    %2132 = vmatpush.msra.mxu0 0.0
    %2133 = vmatpush.msra.mxu0 0.0
    %2134 = vmatpush.msra.mxu0 0.0
    %2135 = vmatpush.msra.mxu0 0.0
    %2136 = vmatpush.msra.mxu0 0.0
    %2137 = vmatpush.msra.mxu0 0.0
    %2138 = vmatpush.msra.mxu0 0.0
    %2139 = vmatpush.msra.mxu0 0.0
    %2140 = vmatpush.msra.mxu0 0.0
    %2141 = vmatpush.msra.mxu0 0.0
    %2142 = vmatpush.msra.mxu0 %v2124
    %2143 = vmatpush.msra.mxu0 %v2123
    %2144 = vmatpush.msra.mxu0 %v2122
    %2145 = vmatpush.msra.mxu0 %v2121
    %2146 = vmatmul.f32.gmra.mxu0 %v1499
    %v2147 = vpop.f32.mrf.mxu0
    %v2148 = vadd.f32 %v2128, %v2147
    %2149 = vmatmul.f32.gmra.mxu0 %v1502
    %v2150 = vpop.f32.mrf.mxu0
    %v2151 = vadd.f32 %v2128, %v2150
    %2152 = vdwg.mxu0
    %v2154 = vsel %vm244, %v2082, 0
    %v2157 = vsel %vm244, %v2115, 0
    %2159 = vmatpush.xpose.msra.mxu0 0.0
    %2160 = vmatpush.xpose.msra.mxu0 0.0
    %2161 = vmatpush.xpose.msra.mxu0 0.0
    %2162 = vmatpush.xpose.msra.mxu0 0.0
    %2163 = vmatpush.xpose.msra.mxu0 0.0
    %2164 = vmatpush.xpose.msra.mxu0 0.0
    %2165 = vmatpush.xpose.msra.mxu0 0.0
    %2166 = vmatpush.xpose.msra.mxu0 0.0
    %2167 = vmatpush.xpose.msra.mxu0 0.0
    %2168 = vmatpush.xpose.msra.mxu0 0.0
    %2169 = vmatpush.xpose.msra.mxu0 0.0
    %2170 = vmatpush.xpose.msra.mxu0 0.0
    %2171 = vmatpush.xpose.msra.mxu0 0.0
    %2172 = vmatpush.xpose.msra.mxu0 0.0
    %2173 = vmatpush.xpose.msra.mxu0 0.0
    %2174 = vmatpush.xpose.msra.mxu0 %v2157
    %2175 = vmatmul.f32.gmra.mxu0 %v2154
    %v2176 = vpop.f32.mrf.mxu0
    %v2177 = vadd.f32 0.0, %v2176
    %2178 = vdwg.mxu0
    %v2180 = vsel %vm244, %v2085, 0
    %v2183 = vsel %vm244, %v2118, 0
    %2185 = vmatpush.xpose.msra.mxu0 0.0
    %2186 = vmatpush.xpose.msra.mxu0 0.0
    %2187 = vmatpush.xpose.msra.mxu0 0.0
    %2188 = vmatpush.xpose.msra.mxu0 0.0
    %2189 = vmatpush.xpose.msra.mxu0 0.0
    %2190 = vmatpush.xpose.msra.mxu0 0.0
    %2191 = vmatpush.xpose.msra.mxu0 0.0
    %2192 = vmatpush.xpose.msra.mxu0 0.0
    %2193 = vmatpush.xpose.msra.mxu0 0.0
    %2194 = vmatpush.xpose.msra.mxu0 0.0
    %2195 = vmatpush.xpose.msra.mxu0 0.0
    %2196 = vmatpush.xpose.msra.mxu0 0.0
    %2197 = vmatpush.xpose.msra.mxu0 0.0
    %2198 = vmatpush.xpose.msra.mxu0 0.0
    %2199 = vmatpush.xpose.msra.mxu0 0.0
    %2200 = vmatpush.xpose.msra.mxu0 %v2183
    %2201 = vmatmul.f32.gmra.mxu0 %v2180
    %v2202 = vpop.f32.mrf.mxu0
    %v2203 = vadd.f32 0.0, %v2202
    %2204 = vdwg.mxu0
    %v2205 = vmul.f32 %v2177, 0.35355338
    %v2206 = vmul.f32 %v2203, 0.35355338
    %v2207 = vadd.f32 %v2205, %v141
    %v2208 = vadd.f32 %v2206, %v142
    %v2209 = vsel %vm244, %v2207, -inf
    %2210 = vmax.xlane.f32.xlu0 %v2209
    %v2211 = vpop.xlane.xlu0 %2210
    %v2212 = vsel %vm244, %v2208, -inf
    %2213 = vmax.xlane.f32.xlu0 %v2212
    %v2214 = vpop.xlane.xlu0 %2213
    %v2215 = vsub.f32 %v2207, %v2211
    %v2216 = vsub.f32 %v2208, %v2214
    %v2217 = vmul.f32 %v2215, 1.442695
    %v2218 = vpow.pop %v2217
    %v2219 = vmul.f32 %v2216, 1.442695
    %v2220 = vpow.pop %v2219
    %v2221 = vsel %vm244, %v2218, 0.0
    %2222 = vadd.xlane.f32.xlu0 %v2221
    %v2223 = vpop.xlane.xlu0 %2222
    %v2224 = vsel %vm244, %v2220, 0.0
    %2225 = vadd.xlane.f32.xlu0 %v2224
    %v2226 = vpop.xlane.xlu0 %2225
    %v2227 = vrcp.pop %v2223
    %v2228 = vmul.f32 %v2223, %v2227
    %v2229 = vsub.f32 1.0, %v2228
    %v2230 = vmul.f32 %v2227, %v2229
    %v2231 = vadd.f32 %v2227, %v2230
    %vm2232 = vweird.f32 %v2223
    %vm2233 = vweird.f32 %v2227
    %vm2234 = vmor %vm2232, %vm2233
    %v2235 = vsel %vm2234, %v2227, %v2231
    %v2236 = vand.u32 2147483647, %v2223
    %vm2237 = vcmp.eq.f32.partialorder %v2236, 8.507059e+37
    %v2238 = vand.u32 %v2223, 2147483648
    %v2239 = vor.u32 1.1754944e-38, %v2238
    %v2240 = vsel %vm2237, %v2239, %v2235
    %v2241 = vmul.f32 %v2218, %v2240
    %v2242 = vrcp.pop %v2226
    %v2243 = vmul.f32 %v2226, %v2242
    %v2244 = vsub.f32 1.0, %v2243
    %v2245 = vmul.f32 %v2242, %v2244
    %v2246 = vadd.f32 %v2242, %v2245
    %vm2247 = vweird.f32 %v2226
    %vm2248 = vweird.f32 %v2242
    %vm2249 = vmor %vm2247, %vm2248
    %v2250 = vsel %vm2249, %v2242, %v2246
    %v2251 = vand.u32 2147483647, %v2226
    %vm2252 = vcmp.eq.f32.partialorder %v2251, 8.507059e+37
    %v2253 = vand.u32 %v2226, 2147483648
    %v2254 = vor.u32 1.1754944e-38, %v2253
    %v2255 = vsel %vm2252, %v2254, %v2250
    %v2256 = vmul.f32 %v2220, %v2255
    %v2258 = vsel %vm244, %v2241, 0
    %2260 = vmatpush.msra.mxu0 0.0
    %2261 = vmatpush.msra.mxu0 0.0
    %2262 = vmatpush.msra.mxu0 0.0
    %2263 = vmatpush.msra.mxu0 0.0
    %2264 = vmatpush.msra.mxu0 0.0
    %2265 = vmatpush.msra.mxu0 0.0
    %2266 = vmatpush.msra.mxu0 0.0
    %2267 = vmatpush.msra.mxu0 0.0
    %2268 = vmatpush.msra.mxu0 0.0
    %2269 = vmatpush.msra.mxu0 0.0
    %2270 = vmatpush.msra.mxu0 0.0
    %2271 = vmatpush.msra.mxu0 0.0
    %2272 = vmatpush.msra.mxu0 0.0
    %2273 = vmatpush.msra.mxu0 0.0
    %2274 = vmatpush.msra.mxu0 0.0
    %2275 = vmatpush.msra.mxu0 %v2148
    %2276 = vmatmul.f32.gmra.mxu0 %v2258
    %v2277 = vpop.f32.mrf.mxu0
    %v2278 = vadd.f32 0.0, %v2277
    %2279 = vdwg.mxu0
    %v2281 = vsel %vm244, %v2256, 0
    %2283 = vmatpush.msra.mxu0 0.0
    %2284 = vmatpush.msra.mxu0 0.0
    %2285 = vmatpush.msra.mxu0 0.0
    %2286 = vmatpush.msra.mxu0 0.0
    %2287 = vmatpush.msra.mxu0 0.0
    %2288 = vmatpush.msra.mxu0 0.0
    %2289 = vmatpush.msra.mxu0 0.0
    %2290 = vmatpush.msra.mxu0 0.0
    %2291 = vmatpush.msra.mxu0 0.0
    %2292 = vmatpush.msra.mxu0 0.0
    %2293 = vmatpush.msra.mxu0 0.0
    %2294 = vmatpush.msra.mxu0 0.0
    %2295 = vmatpush.msra.mxu0 0.0
    %2296 = vmatpush.msra.mxu0 0.0
    %2297 = vmatpush.msra.mxu0 0.0
    %2298 = vmatpush.msra.mxu0 %v2151
    %2299 = vmatmul.f32.gmra.mxu0 %v2281
    %v2300 = vpop.f32.mrf.mxu0
    %v2301 = vadd.f32 0.0, %v2300
    %2302 = vdwg.mxu0
    %s2303 = scalar_lea.vmem %s10, 48
    %v2304 = vld [vmem:[%s2303] sm:$0xff]
    %v2306 = vsel %vm244, %v2278, 0
    %v2309 = vsel %vm244, %v2301, 0
    %2311 = vmatpush.msra.mxu0 0.0
    %2312 = vmatpush.msra.mxu0 0.0
    %2313 = vmatpush.msra.mxu0 0.0
    %2314 = vmatpush.msra.mxu0 0.0
    %2315 = vmatpush.msra.mxu0 0.0
    %2316 = vmatpush.msra.mxu0 0.0
    %2317 = vmatpush.msra.mxu0 0.0
    %2318 = vmatpush.msra.mxu0 0.0
    %2319 = vmatpush.msra.mxu0 0.0
    %2320 = vmatpush.msra.mxu0 0.0
    %2321 = vmatpush.msra.mxu0 0.0
    %2322 = vmatpush.msra.mxu0 0.0
    %2323 = vmatpush.msra.mxu0 0.0
    %2324 = vmatpush.msra.mxu0 0.0
    %2325 = vmatpush.msra.mxu0 0.0
    %2326 = vmatpush.msra.mxu0 %v2304
    %2327 = vmatmul.f32.gmra.mxu0 %v2306
    %v2328 = vpop.f32.mrf.mxu0
    %v2329 = vadd.f32 0.0, %v2328
    %2330 = vmatmul.f32.gmra.mxu0 %v2309
    %v2331 = vpop.f32.mrf.mxu0
    %v2332 = vadd.f32 0.0, %v2331
    %2333 = vdwg.mxu0
    %v2334 = vadd.f32 %v2049, %v2329
    %v2335 = vadd.f32 %v2052, %v2332
    %s2336 = scalar_lea.vmem %s4, 224
    %v2337 = vld [vmem:[%s2336] sm:$0xff]
    %v2338 = vld [vmem:[%s2336 + $0x8] sm:$0xff]
    %v2339 = vld [vmem:[%s2336 + $0x10] sm:$0xff]
    %v2340 = vld [vmem:[%s2336 + $0x18] sm:$0xff]
    %s2341 = scalar_lea.vmem %s5, 7
    %v2342 = vld [vmem:[%s2341] sm:$0x1]
    %v2344 = vperm.slane %v2342, 0
    %2346 = vmatpush.msra.mxu0 0.0
    %2347 = vmatpush.msra.mxu0 0.0
    %2348 = vmatpush.msra.mxu0 0.0
    %2349 = vmatpush.msra.mxu0 0.0
    %2350 = vmatpush.msra.mxu0 0.0
    %2351 = vmatpush.msra.mxu0 0.0
    %2352 = vmatpush.msra.mxu0 0.0
    %2353 = vmatpush.msra.mxu0 0.0
    %2354 = vmatpush.msra.mxu0 0.0
    %2355 = vmatpush.msra.mxu0 0.0
    %2356 = vmatpush.msra.mxu0 0.0
    %2357 = vmatpush.msra.mxu0 0.0
    %2358 = vmatpush.msra.mxu0 %v2340
    %2359 = vmatpush.msra.mxu0 %v2339
    %2360 = vmatpush.msra.mxu0 %v2338
    %2361 = vmatpush.msra.mxu0 %v2337
    %2362 = vmatmul.f32.gmra.mxu0 %v1499
    %v2363 = vpop.f32.mrf.mxu0
    %v2364 = vadd.f32 %v2344, %v2363
    %2365 = vmatmul.f32.gmra.mxu0 %v1502
    %v2366 = vpop.f32.mrf.mxu0
    %v2367 = vadd.f32 %v2344, %v2366
    %2368 = vdwg.mxu0
    %s2369 = scalar_lea.vmem %s6, 224
    %v2370 = vld [vmem:[%s2369] sm:$0xff]
    %v2371 = vld [vmem:[%s2369 + $0x8] sm:$0xff]
    %v2372 = vld [vmem:[%s2369 + $0x10] sm:$0xff]
    %v2373 = vld [vmem:[%s2369 + $0x18] sm:$0xff]
    %s2374 = scalar_lea.vmem %s7, 7
    %v2375 = vld [vmem:[%s2374] sm:$0x1]
    %v2377 = vperm.slane %v2375, 0
    %2379 = vmatpush.msra.mxu0 0.0
    %2380 = vmatpush.msra.mxu0 0.0
    %2381 = vmatpush.msra.mxu0 0.0
    %2382 = vmatpush.msra.mxu0 0.0
    %2383 = vmatpush.msra.mxu0 0.0
    %2384 = vmatpush.msra.mxu0 0.0
    %2385 = vmatpush.msra.mxu0 0.0
    %2386 = vmatpush.msra.mxu0 0.0
    %2387 = vmatpush.msra.mxu0 0.0
    %2388 = vmatpush.msra.mxu0 0.0
    %2389 = vmatpush.msra.mxu0 0.0
    %2390 = vmatpush.msra.mxu0 0.0
    %2391 = vmatpush.msra.mxu0 %v2373
    %2392 = vmatpush.msra.mxu0 %v2372
    %2393 = vmatpush.msra.mxu0 %v2371
    %2394 = vmatpush.msra.mxu0 %v2370
    %2395 = vmatmul.f32.gmra.mxu0 %v1499
    %v2396 = vpop.f32.mrf.mxu0
    %v2397 = vadd.f32 %v2377, %v2396
    %2398 = vmatmul.f32.gmra.mxu0 %v1502
    %v2399 = vpop.f32.mrf.mxu0
    %v2400 = vadd.f32 %v2377, %v2399
    %2401 = vdwg.mxu0
    %s2402 = scalar_lea.vmem %s8, 224
    %v2403 = vld [vmem:[%s2402] sm:$0xff]
    %v2404 = vld [vmem:[%s2402 + $0x8] sm:$0xff]
    %v2405 = vld [vmem:[%s2402 + $0x10] sm:$0xff]
    %v2406 = vld [vmem:[%s2402 + $0x18] sm:$0xff]
    %s2407 = scalar_lea.vmem %s9, 7
    %v2408 = vld [vmem:[%s2407] sm:$0x1]
    %v2410 = vperm.slane %v2408, 0
    %2412 = vmatpush.msra.mxu0 0.0
    %2413 = vmatpush.msra.mxu0 0.0
    %2414 = vmatpush.msra.mxu0 0.0
    %2415 = vmatpush.msra.mxu0 0.0
    %2416 = vmatpush.msra.mxu0 0.0
    %2417 = vmatpush.msra.mxu0 0.0
    %2418 = vmatpush.msra.mxu0 0.0
    %2419 = vmatpush.msra.mxu0 0.0
    %2420 = vmatpush.msra.mxu0 0.0
    %2421 = vmatpush.msra.mxu0 0.0
    %2422 = vmatpush.msra.mxu0 0.0
    %2423 = vmatpush.msra.mxu0 0.0
    %2424 = vmatpush.msra.mxu0 %v2406
    %2425 = vmatpush.msra.mxu0 %v2405
    %2426 = vmatpush.msra.mxu0 %v2404
    %2427 = vmatpush.msra.mxu0 %v2403
    %2428 = vmatmul.f32.gmra.mxu0 %v1499
    %v2429 = vpop.f32.mrf.mxu0
    %v2430 = vadd.f32 %v2410, %v2429
    %2431 = vmatmul.f32.gmra.mxu0 %v1502
    %v2432 = vpop.f32.mrf.mxu0
    %v2433 = vadd.f32 %v2410, %v2432
    %2434 = vdwg.mxu0
    %v2436 = vsel %vm244, %v2364, 0
    %v2439 = vsel %vm244, %v2397, 0
    %2441 = vmatpush.xpose.msra.mxu0 0.0
    %2442 = vmatpush.xpose.msra.mxu0 0.0
    %2443 = vmatpush.xpose.msra.mxu0 0.0
    %2444 = vmatpush.xpose.msra.mxu0 0.0
    %2445 = vmatpush.xpose.msra.mxu0 0.0
    %2446 = vmatpush.xpose.msra.mxu0 0.0
    %2447 = vmatpush.xpose.msra.mxu0 0.0
    %2448 = vmatpush.xpose.msra.mxu0 0.0
    %2449 = vmatpush.xpose.msra.mxu0 0.0
    %2450 = vmatpush.xpose.msra.mxu0 0.0
    %2451 = vmatpush.xpose.msra.mxu0 0.0
    %2452 = vmatpush.xpose.msra.mxu0 0.0
    %2453 = vmatpush.xpose.msra.mxu0 0.0
    %2454 = vmatpush.xpose.msra.mxu0 0.0
    %2455 = vmatpush.xpose.msra.mxu0 0.0
    %2456 = vmatpush.xpose.msra.mxu0 %v2439
    %2457 = vmatmul.f32.gmra.mxu0 %v2436
    %v2458 = vpop.f32.mrf.mxu0
    %v2459 = vadd.f32 0.0, %v2458
    %2460 = vdwg.mxu0
    %v2462 = vsel %vm244, %v2367, 0
    %v2465 = vsel %vm244, %v2400, 0
    %2467 = vmatpush.xpose.msra.mxu0 0.0
    %2468 = vmatpush.xpose.msra.mxu0 0.0
    %2469 = vmatpush.xpose.msra.mxu0 0.0
    %2470 = vmatpush.xpose.msra.mxu0 0.0
    %2471 = vmatpush.xpose.msra.mxu0 0.0
    %2472 = vmatpush.xpose.msra.mxu0 0.0
    %2473 = vmatpush.xpose.msra.mxu0 0.0
    %2474 = vmatpush.xpose.msra.mxu0 0.0
    %2475 = vmatpush.xpose.msra.mxu0 0.0
    %2476 = vmatpush.xpose.msra.mxu0 0.0
    %2477 = vmatpush.xpose.msra.mxu0 0.0
    %2478 = vmatpush.xpose.msra.mxu0 0.0
    %2479 = vmatpush.xpose.msra.mxu0 0.0
    %2480 = vmatpush.xpose.msra.mxu0 0.0
    %2481 = vmatpush.xpose.msra.mxu0 0.0
    %2482 = vmatpush.xpose.msra.mxu0 %v2465
    %2483 = vmatmul.f32.gmra.mxu0 %v2462
    %v2484 = vpop.f32.mrf.mxu0
    %v2485 = vadd.f32 0.0, %v2484
    %2486 = vdwg.mxu0
    %v2487 = vmul.f32 %v2459, 0.35355338
    %v2488 = vmul.f32 %v2485, 0.35355338
    %v2489 = vadd.f32 %v2487, %v141
    %v2490 = vadd.f32 %v2488, %v142
    %v2491 = vsel %vm244, %v2489, -inf
    %2492 = vmax.xlane.f32.xlu0 %v2491
    %v2493 = vpop.xlane.xlu0 %2492
    %v2494 = vsel %vm244, %v2490, -inf
    %2495 = vmax.xlane.f32.xlu0 %v2494
    %v2496 = vpop.xlane.xlu0 %2495
    %v2497 = vsub.f32 %v2489, %v2493
    %v2498 = vsub.f32 %v2490, %v2496
    %v2499 = vmul.f32 %v2497, 1.442695
    %v2500 = vpow.pop %v2499
    %v2501 = vmul.f32 %v2498, 1.442695
    %v2502 = vpow.pop %v2501
    %v2503 = vsel %vm244, %v2500, 0.0
    %2504 = vadd.xlane.f32.xlu0 %v2503
    %v2505 = vpop.xlane.xlu0 %2504
    %v2506 = vsel %vm244, %v2502, 0.0
    %2507 = vadd.xlane.f32.xlu0 %v2506
    %v2508 = vpop.xlane.xlu0 %2507
    %v2509 = vrcp.pop %v2505
    %v2510 = vmul.f32 %v2505, %v2509
    %v2511 = vsub.f32 1.0, %v2510
    %v2512 = vmul.f32 %v2509, %v2511
    %v2513 = vadd.f32 %v2509, %v2512
    %vm2514 = vweird.f32 %v2505
    %vm2515 = vweird.f32 %v2509
    %vm2516 = vmor %vm2514, %vm2515
    %v2517 = vsel %vm2516, %v2509, %v2513
    %v2518 = vand.u32 2147483647, %v2505
    %vm2519 = vcmp.eq.f32.partialorder %v2518, 8.507059e+37
    %v2520 = vand.u32 %v2505, 2147483648
    %v2521 = vor.u32 1.1754944e-38, %v2520
    %v2522 = vsel %vm2519, %v2521, %v2517
    %v2523 = vmul.f32 %v2500, %v2522
    %v2524 = vrcp.pop %v2508
    %v2525 = vmul.f32 %v2508, %v2524
    %v2526 = vsub.f32 1.0, %v2525
    %v2527 = vmul.f32 %v2524, %v2526
    %v2528 = vadd.f32 %v2524, %v2527
    %vm2529 = vweird.f32 %v2508
    %vm2530 = vweird.f32 %v2524
    %vm2531 = vmor %vm2529, %vm2530
    %v2532 = vsel %vm2531, %v2524, %v2528
    %v2533 = vand.u32 2147483647, %v2508
    %vm2534 = vcmp.eq.f32.partialorder %v2533, 8.507059e+37
    %v2535 = vand.u32 %v2508, 2147483648
    %v2536 = vor.u32 1.1754944e-38, %v2535
    %v2537 = vsel %vm2534, %v2536, %v2532
    %v2538 = vmul.f32 %v2502, %v2537
    %v2540 = vsel %vm244, %v2523, 0
    %2542 = vmatpush.msra.mxu0 0.0
    %2543 = vmatpush.msra.mxu0 0.0
    %2544 = vmatpush.msra.mxu0 0.0
    %2545 = vmatpush.msra.mxu0 0.0
    %2546 = vmatpush.msra.mxu0 0.0
    %2547 = vmatpush.msra.mxu0 0.0
    %2548 = vmatpush.msra.mxu0 0.0
    %2549 = vmatpush.msra.mxu0 0.0
    %2550 = vmatpush.msra.mxu0 0.0
    %2551 = vmatpush.msra.mxu0 0.0
    %2552 = vmatpush.msra.mxu0 0.0
    %2553 = vmatpush.msra.mxu0 0.0
    %2554 = vmatpush.msra.mxu0 0.0
    %2555 = vmatpush.msra.mxu0 0.0
    %2556 = vmatpush.msra.mxu0 0.0
    %2557 = vmatpush.msra.mxu0 %v2430
    %2558 = vmatmul.f32.gmra.mxu0 %v2540
    %v2559 = vpop.f32.mrf.mxu0
    %v2560 = vadd.f32 0.0, %v2559
    %2561 = vdwg.mxu0
    %v2563 = vsel %vm244, %v2538, 0
    %2565 = vmatpush.msra.mxu0 0.0
    %2566 = vmatpush.msra.mxu0 0.0
    %2567 = vmatpush.msra.mxu0 0.0
    %2568 = vmatpush.msra.mxu0 0.0
    %2569 = vmatpush.msra.mxu0 0.0
    %2570 = vmatpush.msra.mxu0 0.0
    %2571 = vmatpush.msra.mxu0 0.0
    %2572 = vmatpush.msra.mxu0 0.0
    %2573 = vmatpush.msra.mxu0 0.0
    %2574 = vmatpush.msra.mxu0 0.0
    %2575 = vmatpush.msra.mxu0 0.0
    %2576 = vmatpush.msra.mxu0 0.0
    %2577 = vmatpush.msra.mxu0 0.0
    %2578 = vmatpush.msra.mxu0 0.0
    %2579 = vmatpush.msra.mxu0 0.0
    %2580 = vmatpush.msra.mxu0 %v2433
    %2581 = vmatmul.f32.gmra.mxu0 %v2563
    %v2582 = vpop.f32.mrf.mxu0
    %v2583 = vadd.f32 0.0, %v2582
    %2584 = vdwg.mxu0
    %s2585 = scalar_lea.vmem %s10, 56
    %v2586 = vld [vmem:[%s2585] sm:$0xff]
    %v2588 = vsel %vm244, %v2560, 0
    %v2591 = vsel %vm244, %v2583, 0
    %2593 = vmatpush.msra.mxu0 0.0
    %2594 = vmatpush.msra.mxu0 0.0
    %2595 = vmatpush.msra.mxu0 0.0
    %2596 = vmatpush.msra.mxu0 0.0
    %2597 = vmatpush.msra.mxu0 0.0
    %2598 = vmatpush.msra.mxu0 0.0
    %2599 = vmatpush.msra.mxu0 0.0
    %2600 = vmatpush.msra.mxu0 0.0
    %2601 = vmatpush.msra.mxu0 0.0
    %2602 = vmatpush.msra.mxu0 0.0
    %2603 = vmatpush.msra.mxu0 0.0
    %2604 = vmatpush.msra.mxu0 0.0
    %2605 = vmatpush.msra.mxu0 0.0
    %2606 = vmatpush.msra.mxu0 0.0
    %2607 = vmatpush.msra.mxu0 0.0
    %2608 = vmatpush.msra.mxu0 %v2586
    %2609 = vmatmul.f32.gmra.mxu0 %v2588
    %v2610 = vpop.f32.mrf.mxu0
    %v2611 = vadd.f32 0.0, %v2610
    %2612 = vmatmul.f32.gmra.mxu0 %v2591
    %v2613 = vpop.f32.mrf.mxu0
    %v2614 = vadd.f32 0.0, %v2613
    %2615 = vdwg.mxu0
    %v2616 = vadd.f32 %v2334, %v2611
    %v2617 = vadd.f32 %v2335, %v2614
    %s2618 = scalar_lea.vmem %s11, 1
    %v2619 = vld [vmem:[%s2618] sm:$0x1]
    %v2621 = vperm.slane %v2619, 0
    %v2623 = vadd.f32 %v2616, %v2621
    %v2624 = vadd.f32 %v2617, %v2621
    %v2625 = vadd.f32 %v2623, %v1486
    %v2626 = vadd.f32 %v2624, %v1487
    %s2627 = scalar_lea.vmem %s12, 1
    %v2628 = vld [vmem:[%s2627] sm:$0x1]
    %s2629 = scalar_lea.vmem %s13, 1
    %v2630 = vld [vmem:[%s2629] sm:$0x1]
    %v2631 = vsel %vm76, %v2625, 0.0
    %2632 = vadd.xlane.f32.xlu0 %v2631
    %v2633 = vpop.xlane.xlu0 %2632
    %v2634 = vsel %vm76, %v2626, 0.0
    %2635 = vadd.xlane.f32.xlu0 %v2634
    %v2636 = vpop.xlane.xlu0 %2635
    %v2637 = vmul.f32 %v2633, %v89
    %v2638 = vmul.f32 %v2636, %v89
    %v2639 = vsub.f32 %v2625, %v2637
    %v2640 = vsub.f32 %v2626, %v2638
    %v2641 = vmul.f32 %v2639, %v2639
    %v2642 = vmul.f32 %v2640, %v2640
    %v2643 = vsel %vm76, %v2641, 0.0
    %2644 = vadd.xlane.f32.xlu0 %v2643
    %v2645 = vpop.xlane.xlu0 %2644
    %v2646 = vsel %vm76, %v2642, 0.0
    %2647 = vadd.xlane.f32.xlu0 %v2646
    %v2648 = vpop.xlane.xlu0 %2647
    %v2649 = vmul.f32 %v2645, %v89
    %v2650 = vmul.f32 %v2648, %v89
    %v2651 = vadd.f32 %v2649, 1e-12
    %v2652 = vadd.f32 %v2650, 1e-12
    %v2653 = vrsqrt.pop %v2651
    %v2654 = vmul.f32 %v2653, %v2651
    %v2655 = vmul.f32 %v2654, %v2653
    %v2656 = vmul.f32 0.5, %v2655
    %v2657 = vsub.f32 1.5, %v2656
    %v2658 = vmul.f32 %v2653, %v2657
    %vm2659 = vweird.f32 %v2651
    %vm2660 = vweird.f32 %v2653
    %vm2661 = vmor %vm2659, %vm2660
    %v2662 = vsel %vm2661, %v2653, %v2658
    %v2663 = vrsqrt.pop %v2652
    %v2664 = vmul.f32 %v2663, %v2652
    %v2665 = vmul.f32 %v2664, %v2663
    %v2666 = vmul.f32 0.5, %v2665
    %v2667 = vsub.f32 1.5, %v2666
    %v2668 = vmul.f32 %v2663, %v2667
    %vm2669 = vweird.f32 %v2652
    %vm2670 = vweird.f32 %v2663
    %vm2671 = vmor %vm2669, %vm2670
    %v2672 = vsel %vm2671, %v2663, %v2668
    %v2673 = vmul.f32 %v2639, %v2662
    %v2674 = vmul.f32 %v2640, %v2672
    %v2676 = vperm.slane %v2628, 0
    %v2678 = vmul.f32 %v2673, %v2676
    %v2679 = vmul.f32 %v2674, %v2676
    %v2681 = vperm.slane %v2630, 0
    %v2683 = vadd.f32 %v2678, %v2681
    %v2684 = vadd.f32 %v2679, %v2681
    %s2685 = scalar_lea.vmem %s14, 32
    %v2686 = vld [vmem:[%s2685] sm:$0xff]
    %v2687 = vld [vmem:[%s2685 + $0x8] sm:$0xff]
    %v2688 = vld [vmem:[%s2685 + $0x10] sm:$0xff]
    %v2689 = vld [vmem:[%s2685 + $0x18] sm:$0xff]
    %s2690 = scalar_lea.vmem %s15, 1
    %v2691 = vld [vmem:[%s2690] sm:$0x1]
    %v2693 = vperm.slane %v2691, 0
    %v2696 = vsel %vm76, %v2683, 0
    %v2699 = vsel %vm76, %v2684, 0
    %2701 = vmatpush.msra.mxu0 0.0
    %2702 = vmatpush.msra.mxu0 0.0
    %2703 = vmatpush.msra.mxu0 0.0
    %2704 = vmatpush.msra.mxu0 0.0
    %2705 = vmatpush.msra.mxu0 0.0
    %2706 = vmatpush.msra.mxu0 0.0
    %2707 = vmatpush.msra.mxu0 0.0
    %2708 = vmatpush.msra.mxu0 0.0
    %2709 = vmatpush.msra.mxu0 0.0
    %2710 = vmatpush.msra.mxu0 0.0
    %2711 = vmatpush.msra.mxu0 0.0
    %2712 = vmatpush.msra.mxu0 0.0
    %2713 = vmatpush.msra.mxu0 %v2689
    %2714 = vmatpush.msra.mxu0 %v2688
    %2715 = vmatpush.msra.mxu0 %v2687
    %2716 = vmatpush.msra.mxu0 %v2686
    %2717 = vmatmul.f32.gmra.mxu0 %v2696
    %v2718 = vpop.f32.mrf.mxu0
    %v2719 = vadd.f32 %v2693, %v2718
    %2720 = vmatmul.f32.gmra.mxu0 %v2699
    %v2721 = vpop.f32.mrf.mxu0
    %v2722 = vadd.f32 %v2693, %v2721
    %2723 = vdwg.mxu0
    %v2724 = vmul.f32 %v2719, 0.5
    %v2725 = vmul.f32 %v2722, 0.5
    %v2726 = vmul.f32 %v2719, 0.044715
    %v2727 = vmul.f32 %v2722, 0.044715
    %v2728 = vmul.f32 %v2726, %v2719
    %v2729 = vmul.f32 %v2727, %v2722
    %v2730 = vmul.f32 %v2728, %v2719
    %v2731 = vmul.f32 %v2729, %v2722
    %v2732 = vadd.f32 %v2719, %v2730
    %v2733 = vadd.f32 %v2722, %v2731
    %v2734 = vmul.f32 %v2732, 0.7978846
    %v2735 = vmul.f32 %v2733, 0.7978846
    %v2736 = vtanh.pop %v2734
    %v2737 = vtanh.pop %v2735
    %v2738 = vadd.f32 %v2736, 1.0
    %v2739 = vadd.f32 %v2737, 1.0
    %v2740 = vmul.f32 %v2724, %v2738
    %v2741 = vmul.f32 %v2725, %v2739
    %s2742 = scalar_lea.vmem %s16, 64
    %v2743 = vld [vmem:[%s2742] sm:$0xff]
    %v2744 = vld [vmem:[%s2742 + $0x8] sm:$0xff]
    %v2745 = vld [vmem:[%s2742 + $0x10] sm:$0xff]
    %v2746 = vld [vmem:[%s2742 + $0x18] sm:$0xff]
    %v2747 = vld [vmem:[%s2742 + $0x20] sm:$0xff]
    %v2748 = vld [vmem:[%s2742 + $0x28] sm:$0xff]
    %v2749 = vld [vmem:[%s2742 + $0x30] sm:$0xff]
    %v2750 = vld [vmem:[%s2742 + $0x38] sm:$0xff]
    %s2751 = scalar_lea.vmem %s17, 1
    %v2752 = vld [vmem:[%s2751] sm:$0x1]
    %v2754 = vperm.slane %v2752, 0
    %v2757 = vsel %vm1400, %v2740, 0
    %v2760 = vsel %vm1400, %v2741, 0
    %2762 = vmatpush.msra.mxu0 0.0
    %2763 = vmatpush.msra.mxu0 0.0
    %2764 = vmatpush.msra.mxu0 0.0
    %2765 = vmatpush.msra.mxu0 0.0
    %2766 = vmatpush.msra.mxu0 0.0
    %2767 = vmatpush.msra.mxu0 0.0
    %2768 = vmatpush.msra.mxu0 0.0
    %2769 = vmatpush.msra.mxu0 0.0
    %2770 = vmatpush.msra.mxu0 %v2750
    %2771 = vmatpush.msra.mxu0 %v2749
    %2772 = vmatpush.msra.mxu0 %v2748
    %2773 = vmatpush.msra.mxu0 %v2747
    %2774 = vmatpush.msra.mxu0 %v2746
    %2775 = vmatpush.msra.mxu0 %v2745
    %2776 = vmatpush.msra.mxu0 %v2744
    %2777 = vmatpush.msra.mxu0 %v2743
    %2778 = vmatmul.f32.gmra.mxu0 %v2757
    %v2779 = vpop.f32.mrf.mxu0
    %v2780 = vadd.f32 %v2754, %v2779
    %2781 = vmatmul.f32.gmra.mxu0 %v2760
    %v2782 = vpop.f32.mrf.mxu0
    %v2783 = vadd.f32 %v2754, %v2782
    %2784 = vdwg.mxu0
    %v2785 = vadd.f32 %v2780, %v2683
    %v2786 = vadd.f32 %v2783, %v2684
    %s2787 = scalar_lea.vmem %s18, 1
    %v2788 = vld [vmem:[%s2787] sm:$0x1]
    %s2789 = scalar_lea.vmem %s19, 1
    %v2790 = vld [vmem:[%s2789] sm:$0x1]
    %v2791 = vsel %vm76, %v2785, 0.0
    %2792 = vadd.xlane.f32.xlu0 %v2791
    %v2793 = vpop.xlane.xlu0 %2792
    %v2794 = vsel %vm76, %v2786, 0.0
    %2795 = vadd.xlane.f32.xlu0 %v2794
    %v2796 = vpop.xlane.xlu0 %2795
    %v2797 = vmul.f32 %v2793, %v89
    %v2798 = vmul.f32 %v2796, %v89
    %v2799 = vsub.f32 %v2785, %v2797
    %v2800 = vsub.f32 %v2786, %v2798
    %v2801 = vmul.f32 %v2799, %v2799
    %v2802 = vmul.f32 %v2800, %v2800
    %v2803 = vsel %vm76, %v2801, 0.0
    %2804 = vadd.xlane.f32.xlu0 %v2803
    %v2805 = vpop.xlane.xlu0 %2804
    %v2806 = vsel %vm76, %v2802, 0.0
    %2807 = vadd.xlane.f32.xlu0 %v2806
    %v2808 = vpop.xlane.xlu0 %2807
    %v2809 = vmul.f32 %v2805, %v89
    %v2810 = vmul.f32 %v2808, %v89
    %v2811 = vadd.f32 %v2809, 1e-12
    %v2812 = vadd.f32 %v2810, 1e-12
    %v2813 = vrsqrt.pop %v2811
    %v2814 = vmul.f32 %v2813, %v2811
    %v2815 = vmul.f32 %v2814, %v2813
    %v2816 = vmul.f32 0.5, %v2815
    %v2817 = vsub.f32 1.5, %v2816
    %v2818 = vmul.f32 %v2813, %v2817
    %vm2819 = vweird.f32 %v2811
    %vm2820 = vweird.f32 %v2813
    %vm2821 = vmor %vm2819, %vm2820
    %v2822 = vsel %vm2821, %v2813, %v2818
    %v2823 = vrsqrt.pop %v2812
    %v2824 = vmul.f32 %v2823, %v2812
    %v2825 = vmul.f32 %v2824, %v2823
    %v2826 = vmul.f32 0.5, %v2825
    %v2827 = vsub.f32 1.5, %v2826
    %v2828 = vmul.f32 %v2823, %v2827
    %vm2829 = vweird.f32 %v2812
    %vm2830 = vweird.f32 %v2823
    %vm2831 = vmor %vm2829, %vm2830
    %v2832 = vsel %vm2831, %v2823, %v2828
    %v2833 = vmul.f32 %v2799, %v2822
    %v2834 = vmul.f32 %v2800, %v2832
    %v2836 = vperm.slane %v2788, 0
    %v2838 = vmul.f32 %v2833, %v2836
    %v2839 = vmul.f32 %v2834, %v2836
    %v2841 = vperm.slane %v2790, 0
    %v2843 = vadd.f32 %v2838, %v2841
    %v2844 = vadd.f32 %v2839, %v2841
    %v2845 = vld [vmem:[%s20] sm:$0xff]
    %v2846 = vld [vmem:[%s20 + $0x8] sm:$0xff]
    %v2847 = vld [vmem:[%s20 + $0x10] sm:$0xff]
    %v2848 = vld [vmem:[%s20 + $0x18] sm:$0xff]
    %v2849 = vld [vmem:[%s21] sm:$0x1]
    %v2851 = vperm.slane %v2849, 0
    %v2855 = vrot.slane %v2844, 7
    %vm2856 = vcmask 1041409
    %v2857 = vsel %vm2856, %v2855, %v2843
    %v2858 = vsel %vm76, %v2857, 0
    %2860 = vmatpush.msra.mxu0 0.0
    %2861 = vmatpush.msra.mxu0 0.0
    %2862 = vmatpush.msra.mxu0 0.0
    %2863 = vmatpush.msra.mxu0 0.0
    %2864 = vmatpush.msra.mxu0 0.0
    %2865 = vmatpush.msra.mxu0 0.0
    %2866 = vmatpush.msra.mxu0 0.0
    %2867 = vmatpush.msra.mxu0 0.0
    %2868 = vmatpush.msra.mxu0 0.0
    %2869 = vmatpush.msra.mxu0 0.0
    %2870 = vmatpush.msra.mxu0 0.0
    %2871 = vmatpush.msra.mxu0 0.0
    %2872 = vmatpush.msra.mxu0 %v2848
    %2873 = vmatpush.msra.mxu0 %v2847
    %2874 = vmatpush.msra.mxu0 %v2846
    %2875 = vmatpush.msra.mxu0 %v2845
    %2876 = vmatmul.f32.gmra.mxu0 %v2858
    %v2877 = vpop.f32.mrf.mxu0
    %v2878 = vadd.f32 %v2851, %v2877
    %2879 = vdwg.mxu0
    %v2880 = vtanh.pop %v2878
    %vm2881 = vcmask 254976
    %2882 = vst.msk [vmem:[#allocation2] sm:$0x3] %vm2881, %v2880
    // Predicated region
    $region90: #{text_encoder_forward.1} parent=1 // pred_check
      _
    $region91: #{text_encoder_forward.1} parent=1 // pred_check_branch
      %2884 = sbr.rel (0) target = $region93
    $region92: #{text_encoder_forward.1} parent=1 // pred_region
      %2886 = vsyncadd [#allocation3], 0
      %s2888 = sshll.u32 [#allocation2], 4
      %s2889 = int_to_ptr.vmem [resolvable:$true] %s2888
      %s2890 = sshll.u32 %s22, 4
      %s2891 = int_to_ptr.hbm [resolvable:$true] %s2890
      %2893 = dma.vmem_to_hbm [thread:$0]  %s2889, 32, %s2891, [#allocation3]
    $region93: #{text_encoder_forward.1} parent=1 // pred_fallthru
      _
    // Predicated region
    $region94: #{text_encoder_forward.1} parent=1 // pred_check
      _
    $region95: #{text_encoder_forward.1} parent=1 // pred_check_branch
      %2895 = sbr.rel (0) target = $region97
    $region96: #{text_encoder_forward.1} parent=1 // pred_region
      %2897 = dma.done [#allocation3], 32
    $region97: #{text_encoder_forward.1} parent=1 // pred_fallthru
      _
    %2898 = vsyncpa [#allocation3], 1

</llo_original>
